<compile_context>
chip_gen: v7x
topology: tpu7x:2x2x1
jax: 0.10.0
libtpu: 0.0.40
codegen_flags: <defaults>
</compile_context>

<pallas_src>
import numpy as np
import jax
import jax.numpy as jnp
from jax.experimental import pallas as pl
from jax.experimental.pallas import tpu as pltpu


# ----------------------------------------------------------------------------
# Host-side setup / bookkeeping (ZMAT ranks, IDCT bases, drop-schedule state).
# ----------------------------------------------------------------------------
def get_zmat(out_features: int, in_features: int) -> np.ndarray:
    """Rank (0-based ascending) of each entry of the zig-zag index matrix
    (getZIdx_2d followed by ZIdx2Int)."""
    M, N = out_features, in_features
    maxval1 = M + 1.0
    maxval2 = N + 1.0
    i = np.arange(M, dtype=np.float64)
    j = np.arange(N, dtype=np.float64)
    matdim = (i + i / maxval1)[:, None] + (j + j / (maxval1 * maxval2))[None, :]
    flat = matdim.reshape(-1)
    ranks = np.argsort(np.argsort(flat, kind="stable"), kind="stable")
    return ranks.reshape(M, N).astype(np.int64)


def idct_matrix(N: int) -> np.ndarray:
    """Basis A (N,N) s.t. idct(X, norm=None) along the last dim == X @ A
    (exact inverse of torch_dct's dct: X_k = 2*sum_n x_n cos(pi k (2n+1)/(2N)))."""
    k = np.arange(N, dtype=np.float64)[:, None]
    n = np.arange(N, dtype=np.float64)[None, :]
    A = 2.0 * np.cos(np.pi * k * (2.0 * n + 1.0) / (2.0 * N))
    A[0, :] = 1.0
    A = A / (2.0 * N)
    return A.astype(np.float32)


def apply_freq_drop(idrop, zmat, keeprate, threval, numel, minnum,
                    minrate, droprate, dynamicdrop):
    """One forward() call's IDROP / keeprate / threval update.
    Host-side numpy on purpose: it mixes python-float schedule state with data
    and a python `if`, so it must stay out of any jitted path."""
    if threval <= minnum + 1:
        if dynamicdrop:
            idrop = np.ones_like(idrop)
            keeprate = 1.0
    else:
        threval = max(keeprate * numel, minnum)
        idrop = np.where(zmat > threval, 0.0, idrop).astype(idrop.dtype)
        keeprate = keeprate - droprate * (keeprate - minrate)
    return idrop, keeprate, threval


# ----------------------------------------------------------------------------
# Pallas tiled-GEMM kernels (f32 VMEM accumulator, pl.when init/finalize).
# ----------------------------------------------------------------------------
def _matmul_kernel(lhs_ref, rhs_ref, o_ref, acc_ref):
    @pl.when(pl.program_id(2) == 0)
    def _init():
        acc_ref[...] = jnp.zeros_like(acc_ref)

    acc_ref[...] += jnp.dot(lhs_ref[...], rhs_ref[...],
                            preferred_element_type=jnp.float32)

    @pl.when(pl.program_id(2) == pl.num_programs(2) - 1)
    def _fin():
        o_ref[...] = acc_ref[...].astype(o_ref.dtype)


def _masked_matmul_kernel(lhs_ref, mask_ref, rhs_ref, o_ref, acc_ref):
    @pl.when(pl.program_id(2) == 0)
    def _init():
        acc_ref[...] = jnp.zeros_like(acc_ref)

    # int8 mask -> VPU compare/select on the f32 LHS tile (frequency drop).
    dw = jnp.where(mask_ref[...] != 0, lhs_ref[...], 0.0)
    acc_ref[...] += jnp.dot(dw, rhs_ref[...],
                            preferred_element_type=jnp.float32)

    @pl.when(pl.program_id(2) == pl.num_programs(2) - 1)
    def _fin():
        o_ref[...] = acc_ref[...].astype(o_ref.dtype)


def _bias_matmul_kernel(lhs_ref, rhs_ref, bias_ref, o_ref, acc_ref):
    @pl.when(pl.program_id(2) == 0)
    def _init():
        acc_ref[...] = jnp.zeros_like(acc_ref)

    acc_ref[...] += jnp.dot(lhs_ref[...], rhs_ref[...],
                            preferred_element_type=jnp.float32)

    @pl.when(pl.program_id(2) == pl.num_programs(2) - 1)
    def _fin():
        o_ref[...] = (acc_ref[...] + bias_ref[...]).astype(o_ref.dtype)


def _pick_tile(dim: int, pref: int) -> int:
    """Prefer MXU-sized tiles; fall back to the full (aligned) dim."""
    return pref if (dim >= pref and dim % pref == 0) else dim


def tiled_matmul(lhs, rhs, *, mask=None, bias=None,
                 tm_pref=256, tn_pref=256, tk_pref=256,
                 out_dtype=jnp.float32):
    """out = (lhs (.) mask) @ rhs [+ bias], tiled over (M, N, K-reduction)."""
    assert mask is None or bias is None
    M, K = lhs.shape
    K2, N = rhs.shape
    assert K == K2
    tm = _pick_tile(M, tm_pref)
    tn = _pick_tile(N, tn_pref)
    tk = _pick_tile(K, tk_pref)
    grid = (M // tm, N // tn, K // tk)

    lhs_spec = pl.BlockSpec((tm, tk), lambda i, j, k: (i, k))
    rhs_spec = pl.BlockSpec((tk, tn), lambda i, j, k: (k, j))
    out_spec = pl.BlockSpec((tm, tn), lambda i, j, k: (i, j))

    if mask is not None:
        kernel = _masked_matmul_kernel
        in_specs = [lhs_spec,
                    pl.BlockSpec((tm, tk), lambda i, j, k: (i, k)),
                    rhs_spec]
        args = (lhs, mask, rhs)
    elif bias is not None:
        kernel = _bias_matmul_kernel
        in_specs = [lhs_spec, rhs_spec,
                    pl.BlockSpec((1, tn), lambda i, j, k: (0, j))]
        args = (lhs, rhs, bias.reshape(1, N))
    else:
        kernel = _matmul_kernel
        in_specs = [lhs_spec, rhs_spec]
        args = (lhs, rhs)

    return pl.pallas_call(
        kernel,
        out_shape=jax.ShapeDtypeStruct((M, N), out_dtype),
        grid_spec=pltpu.PrefetchScalarGridSpec(
            num_scalar_prefetch=0,
            grid=grid,
            in_specs=in_specs,
            out_specs=out_spec,
            scratch_shapes=[pltpu.VMEM((tm, tn), jnp.float32)]),
        compiler_params=pltpu.CompilerParams(
            dimension_semantics=("parallel", "parallel", "arbitrary"),
            vmem_limit_bytes=32 * 1024 * 1024),
    )(*args)


# ----------------------------------------------------------------------------
# Stage A (cached, x-independent weight transform) and Stage B (hot path GEMM).
# ----------------------------------------------------------------------------
@jax.jit
def compute_w_sp_t(weight_t, idrop_t_i8, a_in_t, a_out):
    """W_sp^T = A_in^T @ (W^T (.) IDROP^T) @ A_out  (shape (K, O)).
    Recompute only when weight or IDROP change; cache and reuse otherwise."""
    y = tiled_matmul(weight_t, a_out, mask=idrop_t_i8)   # (K, O)
    return tiled_matmul(a_in_t, y)                       # (K, O)


@jax.jit
def fr_linear_apply(x, w_sp_t, bias):
    """Per-forward hot path: out = x @ W_sp^T + bias (lane-dense on O)."""
    return tiled_matmul(x, w_sp_t, bias=bias)


# ----------------------------------------------------------------------------
# Driver
# ----------------------------------------------------------------------------
if __name__ == "__main__":
    in_features, out_features, batch = 512, 256, 16   # (8,128)-aligned toy sizes
    minrate, droprate, dynamicdrop = 0.01, 0.01, False
    n_forward_calls = 3   # emulate a few forward()s so IDROP has real zeros

    key = jax.random.PRNGKey(0)
    kw, kb, kx = jax.random.split(key, 3)
    # deterministic "normal_(0, 0.1)" init
    weight = (0.1 * jax.random.normal(kw, (out_features, in_features))).astype(jnp.float32)
    bias = (0.1 * jax.random.normal(kb, (out_features,))).astype(jnp.float32)
    x = jax.random.normal(kx, (batch, in_features), dtype=jnp.float32)

    # --- module buffers / drop-schedule state (host side, like the nn.Module) ---
    zmat = get_zmat(out_features, in_features)
    idrop = np.ones((out_features, in_features), np.float32)
    numel = out_features * in_features
    minnum = max(round(numel * minrate), 255)
    keeprate, threval = 1.0, float(numel)
    for _ in range(n_forward_calls):
        idrop, keeprate, threval = apply_freq_drop(
            idrop, zmat, keeprate, threval, numel, minnum,
            minrate, droprate, dynamicdrop)
    weightnum = float(idrop.sum())          # == self.weightnum bookkeeping
    weightrate = weightnum / numel          # == self.weightrate bookkeeping

    # --- device-side operands (transposed layouts; int8 drop mask) ---
    weight_t = weight.T                                   # (K, O) f32
    idrop_t_i8 = jnp.asarray(idrop.T.astype(np.int8))     # (K, O) int8
    a_in = idct_matrix(in_features)                       # (K, K): idct along dim -1
    a_out = idct_matrix(out_features)                     # (O, O): idct along dim -2
    a_in_t = jnp.asarray(a_in.T)
    a_out_j = jnp.asarray(a_out)

    # Stage A once (cache across forwards while weight/IDROP unchanged), then B.
    w_sp_t = compute_w_sp_t(weight_t, idrop_t_i8, a_in_t, a_out_j)
    out = fr_linear_apply(x, w_sp_t, bias)
    out = jax.block_until_ready(out)

    # --- plain-JAX reference (default matmul precision, like the kernel) ---
    dw = weight * jnp.asarray(idrop)
    ref_w_sp = jnp.matmul(jnp.asarray(a_out).T, jnp.matmul(dw, jnp.asarray(a_in)))
    ref = jnp.matmul(x, ref_w_sp.T) + bias
    np.testing.assert_allclose(np.asarray(out), np.asarray(ref),
                               rtol=2e-2, atol=2e-3)
    assert 0.0 < weightrate <= 1.0

    print("KERNEL_OK")
</pallas_src>

<mosaic_0001>
module attributes {stable_mosaic.version = 11 : i64} {
  func.func @_matmul_kernel(%arg0: i32, %arg1: i32, %arg2: i32, %arg3: memref<256x256xf32, #tpu.memory_space<vmem>>, %arg4: memref<256x256xf32, #tpu.memory_space<vmem>>, %arg5: memref<256x256xf32, #tpu.memory_space<vmem>>, %arg6: memref<256x256xf32, #tpu.memory_space<vmem>>) attributes {dimension_semantics = [#tpu.dimension_semantics<parallel>, #tpu.dimension_semantics<parallel>, #tpu.dimension_semantics<arbitrary>], iteration_bounds = array<i64: 2, 1, 2>, scalar_prefetch = 0 : i64, scratch_operands = 1 : i64, tpu.core_type = #tpu.core_type<tc>, window_params = [{transform_indices = @transform_0, window_bounds = array<i64: 256, 256>}, {transform_indices = @transform_1, window_bounds = array<i64: 256, 256>}, {transform_indices = @transform_2, window_bounds = array<i64: 256, 256>}]} {
    %c0_i32 = arith.constant 0 : i32
    %0 = arith.cmpi eq, %arg2, %c0_i32 : i32
    %1 = arith.extui %0 : i1 to i32
    %c0_i32_0 = arith.constant 0 : i32
    %2 = arith.cmpi ne, %1, %c0_i32_0 : i32
    scf.if %2 {
      %cst_9 = arith.constant 0.000000e+00 : f32
      %12 = vector.broadcast %cst_9 : f32 to vector<256x256xf32>
      %c0_10 = arith.constant 0 : index
      %c0_11 = arith.constant 0 : index
      %13 = vector.load %arg6[%c0_10, %c0_11] : memref<256x256xf32, #tpu.memory_space<vmem>>, vector<256x256xf32>
      tpu.vector_store %arg6[%c0_10, %c0_11], %12 {strides = array<i32>} : memref<256x256xf32, #tpu.memory_space<vmem>>, vector<256x256xf32>,
    } else {
    }
    %c0 = arith.constant 0 : index
    %c0_1 = arith.constant 0 : index
    %3 = vector.load %arg6[%c0, %c0_1] : memref<256x256xf32, #tpu.memory_space<vmem>>, vector<256x256xf32>
    %c0_2 = arith.constant 0 : index
    %c0_3 = arith.constant 0 : index
    %4 = vector.load %arg3[%c0_2, %c0_3] : memref<256x256xf32, #tpu.memory_space<vmem>>, vector<256x256xf32>
    %c0_4 = arith.constant 0 : index
    %c0_5 = arith.constant 0 : index
    %5 = vector.load %arg4[%c0_4, %c0_5] : memref<256x256xf32, #tpu.memory_space<vmem>>, vector<256x256xf32>
    %cst = arith.constant dense<0.000000e+00> : vector<256x256xf32>
    %6 = tpu.matmul %4, %5, %cst {dimension_numbers = #tpu.dot_dimension_numbers<[1], [0], [0], [1], [0, 0, 1, 1], [], []>} : vector<256x256xf32>, vector<256x256xf32>, vector<256x256xf32> -> vector<256x256xf32>
    %7 = arith.addf %3, %6 : vector<256x256xf32>
    %c0_6 = arith.constant 0 : index
    %c0_7 = arith.constant 0 : index
    %8 = vector.load %arg6[%c0_6, %c0_7] : memref<256x256xf32, #tpu.memory_space<vmem>>, vector<256x256xf32>
    tpu.vector_store %arg6[%c0_6, %c0_7], %7 {strides = array<i32>} : memref<256x256xf32, #tpu.memory_space<vmem>>, vector<256x256xf32>,
    %c1_i32 = arith.constant 1 : i32
    %9 = arith.cmpi eq, %arg2, %c1_i32 : i32
    %10 = arith.extui %9 : i1 to i32
    %c0_i32_8 = arith.constant 0 : i32
    %11 = arith.cmpi ne, %10, %c0_i32_8 : i32
    scf.if %11 {
      %c0_9 = arith.constant 0 : index
      %c0_10 = arith.constant 0 : index
      %12 = vector.load %arg6[%c0_9, %c0_10] : memref<256x256xf32, #tpu.memory_space<vmem>>, vector<256x256xf32>
      %c0_11 = arith.constant 0 : index
      %c0_12 = arith.constant 0 : index
      %13 = vector.load %arg5[%c0_11, %c0_12] : memref<256x256xf32, #tpu.memory_space<vmem>>, vector<256x256xf32>
      tpu.vector_store %arg5[%c0_11, %c0_12], %12 {strides = array<i32>} : memref<256x256xf32, #tpu.memory_space<vmem>>, vector<256x256xf32>,
    } else {
    }
    return
  }
  func.func @transform_0(%arg0: i32, %arg1: i32, %arg2: i32) -> (i32, i32) {
    %c0_i32 = arith.constant 0 : i32
    return %arg0, %arg2 : i32, i32
  }
  func.func @transform_1(%arg0: i32, %arg1: i32, %arg2: i32) -> (i32, i32) {
    %c0_i32 = arith.constant 0 : i32
    return %arg2, %arg1 : i32, i32
  }
  func.func @transform_2(%arg0: i32, %arg1: i32, %arg2: i32) -> (i32, i32) {
    %c0_i32 = arith.constant 0 : i32
    return %arg0, %arg1 : i32, i32
  }
}

module attributes {stable_mosaic.version = 11 : i64} {
  func.func @_masked_matmul_kernel(%arg0: i32, %arg1: i32, %arg2: i32, %arg3: memref<256x256xf32, #tpu.memory_space<vmem>>, %arg4: memref<256x256xi8, #tpu.memory_space<vmem>>, %arg5: memref<256x256xf32, #tpu.memory_space<vmem>>, %arg6: memref<256x256xf32, #tpu.memory_space<vmem>>, %arg7: memref<256x256xf32, #tpu.memory_space<vmem>>) attributes {dimension_semantics = [#tpu.dimension_semantics<parallel>, #tpu.dimension_semantics<parallel>, #tpu.dimension_semantics<arbitrary>], iteration_bounds = array<i64: 2, 1, 1>, scalar_prefetch = 0 : i64, scratch_operands = 1 : i64, tpu.core_type = #tpu.core_type<tc>, window_params = [{transform_indices = @transform_0, window_bounds = array<i64: 256, 256>}, {transform_indices = @transform_1, window_bounds = array<i64: 256, 256>}, {transform_indices = @transform_2, window_bounds = array<i64: 256, 256>}, {transform_indices = @transform_3, window_bounds = array<i64: 256, 256>}]} {
    %c0_i32 = arith.constant 0 : i32
    %0 = arith.cmpi eq, %arg2, %c0_i32 : i32
    %1 = arith.extui %0 : i1 to i32
    %c0_i32_0 = arith.constant 0 : i32
    %2 = arith.cmpi ne, %1, %c0_i32_0 : i32
    scf.if %2 {
      %cst_13 = arith.constant 0.000000e+00 : f32
      %17 = vector.broadcast %cst_13 : f32 to vector<256x256xf32>
      %c0_14 = arith.constant 0 : index
      %c0_15 = arith.constant 0 : index
      %18 = vector.load %arg7[%c0_14, %c0_15] : memref<256x256xf32, #tpu.memory_space<vmem>>, vector<256x256xf32>
      tpu.vector_store %arg7[%c0_14, %c0_15], %17 {strides = array<i32>} : memref<256x256xf32, #tpu.memory_space<vmem>>, vector<256x256xf32>,
    } else {
    }
    %c0 = arith.constant 0 : index
    %c0_1 = arith.constant 0 : index
    %3 = vector.load %arg4[%c0, %c0_1] : memref<256x256xi8, #tpu.memory_space<vmem>>, vector<256x256xi8>
    %c0_i8 = arith.constant 0 : i8
    %4 = vector.broadcast %c0_i8 : i8 to vector<256x256xi8>
    %5 = arith.cmpi ne, %3, %4 : vector<256x256xi8>
    %c0_2 = arith.constant 0 : index
    %c0_3 = arith.constant 0 : index
    %6 = vector.load %arg3[%c0_2, %c0_3] : memref<256x256xf32, #tpu.memory_space<vmem>>, vector<256x256xf32>
    %cst = arith.constant 0.000000e+00 : f32
    %7 = vector.broadcast %cst : f32 to vector<256x256xf32>
    %8 = arith.select %5, %6, %7 : vector<256x256xi1>, vector<256x256xf32>
    %c0_4 = arith.constant 0 : index
    %c0_5 = arith.constant 0 : index
    %9 = vector.load %arg7[%c0_4, %c0_5] : memref<256x256xf32, #tpu.memory_space<vmem>>, vector<256x256xf32>
    %c0_6 = arith.constant 0 : index
    %c0_7 = arith.constant 0 : index
    %10 = vector.load %arg5[%c0_6, %c0_7] : memref<256x256xf32, #tpu.memory_space<vmem>>, vector<256x256xf32>
    %cst_8 = arith.constant dense<0.000000e+00> : vector<256x256xf32>
    %11 = tpu.matmul %8, %10, %cst_8 {dimension_numbers = #tpu.dot_dimension_numbers<[1], [0], [0], [1], [0, 0, 1, 1], [], []>} : vector<256x256xf32>, vector<256x256xf32>, vector<256x256xf32> -> vector<256x256xf32>
    %12 = arith.addf %9, %11 : vector<256x256xf32>
    %c0_9 = arith.constant 0 : index
    %c0_10 = arith.constant 0 : index
    %13 = vector.load %arg7[%c0_9, %c0_10] : memref<256x256xf32, #tpu.memory_space<vmem>>, vector<256x256xf32>
    tpu.vector_store %arg7[%c0_9, %c0_10], %12 {strides = array<i32>} : memref<256x256xf32, #tpu.memory_space<vmem>>, vector<256x256xf32>,
    %c0_i32_11 = arith.constant 0 : i32
    %14 = arith.cmpi eq, %arg2, %c0_i32_11 : i32
    %15 = arith.extui %14 : i1 to i32
    %c0_i32_12 = arith.constant 0 : i32
    %16 = arith.cmpi ne, %15, %c0_i32_12 : i32
    scf.if %16 {
      %c0_13 = arith.constant 0 : index
      %c0_14 = arith.constant 0 : index
      %17 = vector.load %arg7[%c0_13, %c0_14] : memref<256x256xf32, #tpu.memory_space<vmem>>, vector<256x256xf32>
      %c0_15 = arith.constant 0 : index
      %c0_16 = arith.constant 0 : index
      %18 = vector.load %arg6[%c0_15, %c0_16] : memref<256x256xf32, #tpu.memory_space<vmem>>, vector<256x256xf32>
      tpu.vector_store %arg6[%c0_15, %c0_16], %17 {strides = array<i32>} : memref<256x256xf32, #tpu.memory_space<vmem>>, vector<256x256xf32>,
    } else {
    }
    return
  }
  func.func @transform_0(%arg0: i32, %arg1: i32, %arg2: i32) -> (i32, i32) {
    %c0_i32 = arith.constant 0 : i32
    return %arg0, %arg2 : i32, i32
  }
  func.func @transform_1(%arg0: i32, %arg1: i32, %arg2: i32) -> (i32, i32) {
    %c0_i32 = arith.constant 0 : i32
    return %arg0, %arg2 : i32, i32
  }
  func.func @transform_2(%arg0: i32, %arg1: i32, %arg2: i32) -> (i32, i32) {
    %c0_i32 = arith.constant 0 : i32
    return %arg2, %arg1 : i32, i32
  }
  func.func @transform_3(%arg0: i32, %arg1: i32, %arg2: i32) -> (i32, i32) {
    %c0_i32 = arith.constant 0 : i32
    return %arg0, %arg1 : i32, i32
  }
}

</mosaic_0001>

<llo_original>
// kernel: compute_w_sp_t.3
$region0: #{compute_w_sp_t.3}
  #allocation0 [shape = 'u32[]', space=smem, size = 0x4, offset = 0x4, fixed_abs, tag = 'smem constant byte address 0x4 - core index']
  #allocation1 [shape = 'u32[144,128]{1,0:T(1,128)}', space=vmem, size = 0x12000, scoped, tag = 'internal scratch']
  #allocation2 [shape = 'f32[256,256]{1,0:T(8,128)}', space=vmem, size = 0x40000, scoped, tag = 'scratch operand']
  %s0 = inlined_call_operand.vmem [shape: f32[512,512], index: 0, kind: input, shape index: {}]
  %s1 = inlined_call_operand.vmem [shape: f32[512,256], index: 1, kind: input, shape index: {}]
  %s2 = inlined_call_operand.hbm [shape: f32[512,256], index: 2, kind: output, shape index: {}]
  %s3 = sld [smem:[#allocation0]]
  $region72: #{compute_w_sp_t.3} parent=0
    _
  %s5 = ssub.s32 1, %s3
  %s6 = scalar_select 0, %s5, %s3
  $region1: #{compute_w_sp_t.3} parent=0
    #allocation3 [shape = 'u8[524288]{0}', space=vmem, size = 0x80000, scoped, tag = 'input window, operand 0']
    #allocation4 [shape = 'u8[524288]{0}', space=vmem, size = 0x80000, scoped, tag = 'output window, operand 0']
    #allocation5 [shape = 's32[2]{0}', space=sflag, size = 0x8, scoped, tag = 'scoped memory for compute_w_sp_t.3']
    %7 = vsyncpa [#allocation5], 0
    %s8 = scalar_lea.sflag [#allocation5], 1
    %9 = vsyncpa %s8, 0
    loop: start=0, step=1, limit=6
    $region2: #{compute_w_sp_t.3} parent=1 // loop_pre_header
      _
    $region3: #{compute_w_sp_t.3} parent=1 // loop_header
      %s11 = sphi 0, %s15
      %p12 = scmp.ge.s32.totalorder %s11, 6
      %s18 = sphi 0, %s37
      %s19 = sphi 0, %s33
      %s20 = sphi 0, %s29
      %s21 = sphi 0, %s18
      %s22 = sphi 0, %s19
      %s23 = sphi 0, %s20
      %s24 = sphi 0, %s21
      %s25 = sphi 0, %s22
      %s26 = sphi 0, %s23
      %s42 = sphi 0, %s44
      %s45 = sphi 0, %s42
      %s46 = sphi 0, %s45
      %s62 = sphi 0, %s46
      %s70 = sphi 0, %s72
      %s73 = sphi 0, %s70
      %s74 = sphi 0, %s73
      %s90 = sphi 0, %s74
      %s98 = sphi 0, %s100
      %s101 = sphi 0, %s98
      %s102 = sphi 0, %s101
      %s118 = sphi 0, %s102
    $region4: #{compute_w_sp_t.3} parent=1 // loop_header_branch
      %14 = sbr.rel (%p12) target = $region8
    $region5: #{compute_w_sp_t.3} parent=1 // loop_body
      %s16 = ssub.s32 %s11, 1
      %s17 = ssub.s32 %s11, 2
      %s27 = sadd.s32 1, %s20
      %p28 = scmp.ge.s32.totalorder %s27, 2
      %s29 = scalar_select %p28, 0, %s27
      %s30 = sadd.s32 1, %s19
      %s31 = scalar_select %p28, %s30, %s19
      %p32 = scmp.ge.s32.totalorder %s31, 1
      %s33 = scalar_select %p32, 0, %s31
      %s34 = sadd.s32 1, %s18
      %s35 = scalar_select %p32, %s34, %s18
      %p36 = scmp.ge.s32.totalorder %s35, 2
      %s37 = scalar_select %p36, 0, %s35
      %s38 = ssub.s32 %s18, %s37
      %s39 = ssub.s32 %s20, %s29
      %s40 = sor.u32 %s38, %s39
      %p41 = scmp.eq.s32.totalorder %s40, 0
      %s43 = sadd.s32 %s42, 1
      %s44 = scalar_select %p41, %s42, %s43
      %p47 = pneg %p41
      %p48 = scmp.eq.s32.totalorder %s11, 3
      %p49 = por %p47, %p48
      %p50 = scmp.ne.s32.totalorder %s42, %s45
      %p51 = scmp.eq.s32.totalorder %s11, 0
      %p52 = por %p50, %p51
      %p53 = scmp.ne.s32.totalorder %s42, %s45
      %p54 = scmp.eq.s32.totalorder %s16, 3
      %p55 = por %p53, %p54
      %p56 = scmp.ne.s32.totalorder %s45, %s46
      %p57 = scmp.eq.s32.totalorder %s16, 0
      %p58 = por %p56, %p57
      %p59 = scmp.ne.s32.totalorder %s45, %s46
      %p60 = scmp.eq.s32.totalorder %s17, 3
      %p61 = por %p59, %p60
      %p63 = scmp.ne.s32.totalorder %s46, %s62
      %p64 = scmp.eq.s32.totalorder %s17, 0
      %p65 = por %p63, %p64
      %s66 = ssub.s32 %s20, %s29
      %s67 = ssub.s32 %s19, %s33
      %s68 = sor.u32 %s66, %s67
      %p69 = scmp.eq.s32.totalorder %s68, 0
      %s71 = sadd.s32 %s70, 1
      %s72 = scalar_select %p69, %s70, %s71
      %p75 = pneg %p69
      %p76 = scmp.eq.s32.totalorder %s11, 3
      %p77 = por %p75, %p76
      %p78 = scmp.ne.s32.totalorder %s70, %s73
      %p79 = scmp.eq.s32.totalorder %s11, 0
      %p80 = por %p78, %p79
      %p81 = scmp.ne.s32.totalorder %s70, %s73
      %p82 = scmp.eq.s32.totalorder %s16, 3
      %p83 = por %p81, %p82
      %p84 = scmp.ne.s32.totalorder %s73, %s74
      %p85 = scmp.eq.s32.totalorder %s16, 0
      %p86 = por %p84, %p85
      %p87 = scmp.ne.s32.totalorder %s73, %s74
      %p88 = scmp.eq.s32.totalorder %s17, 3
      %p89 = por %p87, %p88
      %p91 = scmp.ne.s32.totalorder %s74, %s90
      %p92 = scmp.eq.s32.totalorder %s17, 0
      %p93 = por %p91, %p92
      %s94 = ssub.s32 %s18, %s37
      %s95 = ssub.s32 %s19, %s33
      %s96 = sor.u32 %s94, %s95
      %p97 = scmp.eq.s32.totalorder %s96, 0
      %s99 = sadd.s32 %s98, 1
      %s100 = scalar_select %p97, %s98, %s99
      %p103 = pneg %p97
      %p104 = scmp.eq.s32.totalorder %s11, 3
      %p105 = por %p103, %p104
      %p106 = scmp.ne.s32.totalorder %s98, %s101
      %p107 = scmp.eq.s32.totalorder %s11, 0
      %p108 = por %p106, %p107
      %p109 = scmp.ne.s32.totalorder %s98, %s101
      %p110 = scmp.eq.s32.totalorder %s16, 3
      %p111 = por %p109, %p110
      %p112 = scmp.ne.s32.totalorder %s101, %s102
      %p113 = scmp.eq.s32.totalorder %s16, 0
      %p114 = por %p112, %p113
      %p115 = scmp.ne.s32.totalorder %s101, %s102
      %p116 = scmp.eq.s32.totalorder %s17, 3
      %p117 = por %p115, %p116
      %p119 = scmp.ne.s32.totalorder %s102, %s118
      %p120 = scmp.eq.s32.totalorder %s17, 0
      %p121 = por %p119, %p120
      %p122 = scmp.le.s32.totalorder 1, %s11
      %p123 = scmp.lt.s32.totalorder %s11, 5
      %p124 = pnand %p122, %p123
      %p125 = pneg %p124
      // Predicated region
      $region9: #{compute_w_sp_t.3} parent=5 // pred_check
        _
      $region10: #{compute_w_sp_t.3} parent=5 // pred_check_branch
        %127 = sbr.rel (%p124) target = $region12
      $region11: #{compute_w_sp_t.3} parent=5 // pred_region
        %s128 = ssub.s32 %s11, 1
      $region12: #{compute_w_sp_t.3} parent=5 // pred_fallthru
        _
      %p129 = scmp.lt.s32.totalorder %s11, 4
      // Predicated region
      $region13: #{compute_w_sp_t.3} parent=5 // pred_check
        %p130 = pneg %p129
      $region14: #{compute_w_sp_t.3} parent=5 // pred_check_branch
        %132 = sbr.rel (%p130) target = $region16
      $region15: #{compute_w_sp_t.3} parent=5 // pred_region
        // Predicated region
        $region17: #{compute_w_sp_t.3} parent=15 // pred_check
          %p133 = pneg %p52
        $region18: #{compute_w_sp_t.3} parent=15 // pred_check_branch
          %135 = sbr.rel (%p133) target = $region20
        $region19: #{compute_w_sp_t.3} parent=15 // pred_region
          %s136 = sand.u32 %s42, 1
          %s137 = sand.u32 %s42, 1
          %s138 = smul.addr %s137, 512
          %s139 = scalar_lea.vmem [#allocation3], %s138
          %s140 = smul.u32 32, %s18
          %s141 = smul.u32 2, %s20
          %s142 = smul.addr %s140, 4
          %s143 = sadd.s32 %s141, %s142
          %s144 = smul.addr %s143, 8
          %s145 = scalar_lea.vmem %s0, %s144
          // Predicated region
          $region21: #{compute_w_sp_t.3} parent=19 // pred_check
            _
          $region22: #{compute_w_sp_t.3} parent=19 // pred_check_branch
            %147 = sbr.rel (0) target = $region24
          $region23: #{compute_w_sp_t.3} parent=19 // pred_region
            // Predicated region
            $region25: #{compute_w_sp_t.3} parent=23 // pred_check
              _
            $region26: #{compute_w_sp_t.3} parent=23 // pred_check_branch
              %149 = sbr.rel (0) target = $region28
            $region27: #{compute_w_sp_t.3} parent=23 // pred_region
              loop: start=0, step=1, limit=1
              $region29: #{compute_w_sp_t.3} parent=27 // loop_pre_header
                _
              $region30: #{compute_w_sp_t.3} parent=27 // loop_header
                %s151 = sphi 0, %s155
                %p152 = scmp.ge.s32.totalorder %s151, 1
                %s156 = sphi %s145, %s145
                %s157 = sphi %s139, %s139
              $region31: #{compute_w_sp_t.3} parent=27 // loop_header_branch
                %154 = sbr.rel (%p152) target = $region35
              $region32: #{compute_w_sp_t.3} parent=27 // loop_body
                %v158 = vld [vmem:[%s156] sm:$0xff]
                %159 = vst [vmem:[%s157] sm:$0xff] %v158
                %v160 = vld [vmem:[%s156 + $0x8] sm:$0xff]
                %161 = vst [vmem:[%s157 + $0x8] sm:$0xff] %v160
                %v162 = vld [vmem:[%s156 + $0x20] sm:$0xff]
                %163 = vst [vmem:[%s157 + $0x10] sm:$0xff] %v162
                %v164 = vld [vmem:[%s156 + $0x28] sm:$0xff]
                %165 = vst [vmem:[%s157 + $0x18] sm:$0xff] %v164
                %v166 = vld [vmem:[%s156 + $0x40] sm:$0xff]
                %167 = vst [vmem:[%s157 + $0x20] sm:$0xff] %v166
                %v168 = vld [vmem:[%s156 + $0x48] sm:$0xff]
                %169 = vst [vmem:[%s157 + $0x28] sm:$0xff] %v168
                %v170 = vld [vmem:[%s156 + $0x60] sm:$0xff]
                %171 = vst [vmem:[%s157 + $0x30] sm:$0xff] %v170
                %v172 = vld [vmem:[%s156 + $0x68] sm:$0xff]
                %173 = vst [vmem:[%s157 + $0x38] sm:$0xff] %v172
                %v174 = vld [vmem:[%s156 + $0x80] sm:$0xff]
                %175 = vst [vmem:[%s157 + $0x40] sm:$0xff] %v174
                %v176 = vld [vmem:[%s156 + $0x88] sm:$0xff]
                %177 = vst [vmem:[%s157 + $0x48] sm:$0xff] %v176
                %v178 = vld [vmem:[%s156 + $0xa0] sm:$0xff]
                %179 = vst [vmem:[%s157 + $0x50] sm:$0xff] %v178
                %v180 = vld [vmem:[%s156 + $0xa8] sm:$0xff]
                %181 = vst [vmem:[%s157 + $0x58] sm:$0xff] %v180
                %v182 = vld [vmem:[%s156 + $0xc0] sm:$0xff]
                %183 = vst [vmem:[%s157 + $0x60] sm:$0xff] %v182
                %v184 = vld [vmem:[%s156 + $0xc8] sm:$0xff]
                %185 = vst [vmem:[%s157 + $0x68] sm:$0xff] %v184
                %v186 = vld [vmem:[%s156 + $0xe0] sm:$0xff]
                %187 = vst [vmem:[%s157 + $0x70] sm:$0xff] %v186
                %v188 = vld [vmem:[%s156 + $0xe8] sm:$0xff]
                %189 = vst [vmem:[%s157 + $0x78] sm:$0xff] %v188
                %v190 = vld [vmem:[%s156 + $0x100] sm:$0xff]
                %191 = vst [vmem:[%s157 + $0x80] sm:$0xff] %v190
                %v192 = vld [vmem:[%s156 + $0x108] sm:$0xff]
                %193 = vst [vmem:[%s157 + $0x88] sm:$0xff] %v192
                %v194 = vld [vmem:[%s156 + $0x120] sm:$0xff]
                %195 = vst [vmem:[%s157 + $0x90] sm:$0xff] %v194
                %v196 = vld [vmem:[%s156 + $0x128] sm:$0xff]
                %197 = vst [vmem:[%s157 + $0x98] sm:$0xff] %v196
                %v198 = vld [vmem:[%s156 + $0x140] sm:$0xff]
                %199 = vst [vmem:[%s157 + $0xa0] sm:$0xff] %v198
                %v200 = vld [vmem:[%s156 + $0x148] sm:$0xff]
                %201 = vst [vmem:[%s157 + $0xa8] sm:$0xff] %v200
                %v202 = vld [vmem:[%s156 + $0x160] sm:$0xff]
                %203 = vst [vmem:[%s157 + $0xb0] sm:$0xff] %v202
                %v204 = vld [vmem:[%s156 + $0x168] sm:$0xff]
                %205 = vst [vmem:[%s157 + $0xb8] sm:$0xff] %v204
                %v206 = vld [vmem:[%s156 + $0x180] sm:$0xff]
                %207 = vst [vmem:[%s157 + $0xc0] sm:$0xff] %v206
                %v208 = vld [vmem:[%s156 + $0x188] sm:$0xff]
                %209 = vst [vmem:[%s157 + $0xc8] sm:$0xff] %v208
                %v210 = vld [vmem:[%s156 + $0x1a0] sm:$0xff]
                %211 = vst [vmem:[%s157 + $0xd0] sm:$0xff] %v210
                %v212 = vld [vmem:[%s156 + $0x1a8] sm:$0xff]
                %213 = vst [vmem:[%s157 + $0xd8] sm:$0xff] %v212
                %v214 = vld [vmem:[%s156 + $0x1c0] sm:$0xff]
                %215 = vst [vmem:[%s157 + $0xe0] sm:$0xff] %v214
                %v216 = vld [vmem:[%s156 + $0x1c8] sm:$0xff]
                %217 = vst [vmem:[%s157 + $0xe8] sm:$0xff] %v216
                %v218 = vld [vmem:[%s156 + $0x1e0] sm:$0xff]
                %219 = vst [vmem:[%s157 + $0xf0] sm:$0xff] %v218
                %v220 = vld [vmem:[%s156 + $0x1e8] sm:$0xff]
                %221 = vst [vmem:[%s157 + $0xf8] sm:$0xff] %v220
                %v222 = vld [vmem:[%s156 + $0x200] sm:$0xff]
                %223 = vst [vmem:[%s157 + $0x100] sm:$0xff] %v222
                %v224 = vld [vmem:[%s156 + $0x208] sm:$0xff]
                %225 = vst [vmem:[%s157 + $0x108] sm:$0xff] %v224
                %v226 = vld [vmem:[%s156 + $0x220] sm:$0xff]
                %227 = vst [vmem:[%s157 + $0x110] sm:$0xff] %v226
                %v228 = vld [vmem:[%s156 + $0x228] sm:$0xff]
                %229 = vst [vmem:[%s157 + $0x118] sm:$0xff] %v228
                %v230 = vld [vmem:[%s156 + $0x240] sm:$0xff]
                %231 = vst [vmem:[%s157 + $0x120] sm:$0xff] %v230
                %v232 = vld [vmem:[%s156 + $0x248] sm:$0xff]
                %233 = vst [vmem:[%s157 + $0x128] sm:$0xff] %v232
                %v234 = vld [vmem:[%s156 + $0x260] sm:$0xff]
                %235 = vst [vmem:[%s157 + $0x130] sm:$0xff] %v234
                %v236 = vld [vmem:[%s156 + $0x268] sm:$0xff]
                %237 = vst [vmem:[%s157 + $0x138] sm:$0xff] %v236
                %v238 = vld [vmem:[%s156 + $0x280] sm:$0xff]
                %239 = vst [vmem:[%s157 + $0x140] sm:$0xff] %v238
                %v240 = vld [vmem:[%s156 + $0x288] sm:$0xff]
                %241 = vst [vmem:[%s157 + $0x148] sm:$0xff] %v240
                %v242 = vld [vmem:[%s156 + $0x2a0] sm:$0xff]
                %243 = vst [vmem:[%s157 + $0x150] sm:$0xff] %v242
                %v244 = vld [vmem:[%s156 + $0x2a8] sm:$0xff]
                %245 = vst [vmem:[%s157 + $0x158] sm:$0xff] %v244
                %v246 = vld [vmem:[%s156 + $0x2c0] sm:$0xff]
                %247 = vst [vmem:[%s157 + $0x160] sm:$0xff] %v246
                %v248 = vld [vmem:[%s156 + $0x2c8] sm:$0xff]
                %249 = vst [vmem:[%s157 + $0x168] sm:$0xff] %v248
                %v250 = vld [vmem:[%s156 + $0x2e0] sm:$0xff]
                %251 = vst [vmem:[%s157 + $0x170] sm:$0xff] %v250
                %v252 = vld [vmem:[%s156 + $0x2e8] sm:$0xff]
                %253 = vst [vmem:[%s157 + $0x178] sm:$0xff] %v252
                %v254 = vld [vmem:[%s156 + $0x300] sm:$0xff]
                %255 = vst [vmem:[%s157 + $0x180] sm:$0xff] %v254
                %v256 = vld [vmem:[%s156 + $0x308] sm:$0xff]
                %257 = vst [vmem:[%s157 + $0x188] sm:$0xff] %v256
                %v258 = vld [vmem:[%s156 + $0x320] sm:$0xff]
                %259 = vst [vmem:[%s157 + $0x190] sm:$0xff] %v258
                %v260 = vld [vmem:[%s156 + $0x328] sm:$0xff]
                %261 = vst [vmem:[%s157 + $0x198] sm:$0xff] %v260
                %v262 = vld [vmem:[%s156 + $0x340] sm:$0xff]
                %263 = vst [vmem:[%s157 + $0x1a0] sm:$0xff] %v262
                %v264 = vld [vmem:[%s156 + $0x348] sm:$0xff]
                %265 = vst [vmem:[%s157 + $0x1a8] sm:$0xff] %v264
                %v266 = vld [vmem:[%s156 + $0x360] sm:$0xff]
                %267 = vst [vmem:[%s157 + $0x1b0] sm:$0xff] %v266
                %v268 = vld [vmem:[%s156 + $0x368] sm:$0xff]
                %269 = vst [vmem:[%s157 + $0x1b8] sm:$0xff] %v268
                %v270 = vld [vmem:[%s156 + $0x380] sm:$0xff]
                %271 = vst [vmem:[%s157 + $0x1c0] sm:$0xff] %v270
                %v272 = vld [vmem:[%s156 + $0x388] sm:$0xff]
                %273 = vst [vmem:[%s157 + $0x1c8] sm:$0xff] %v272
                %v274 = vld [vmem:[%s156 + $0x3a0] sm:$0xff]
                %275 = vst [vmem:[%s157 + $0x1d0] sm:$0xff] %v274
                %v276 = vld [vmem:[%s156 + $0x3a8] sm:$0xff]
                %277 = vst [vmem:[%s157 + $0x1d8] sm:$0xff] %v276
                %v278 = vld [vmem:[%s156 + $0x3c0] sm:$0xff]
                %279 = vst [vmem:[%s157 + $0x1e0] sm:$0xff] %v278
                %v280 = vld [vmem:[%s156 + $0x3c8] sm:$0xff]
                %281 = vst [vmem:[%s157 + $0x1e8] sm:$0xff] %v280
                %v282 = vld [vmem:[%s156 + $0x3e0] sm:$0xff]
                %283 = vst [vmem:[%s157 + $0x1f0] sm:$0xff] %v282
                %v284 = vld [vmem:[%s156 + $0x3e8] sm:$0xff]
                %285 = vst [vmem:[%s157 + $0x1f8] sm:$0xff] %v284
              $region33: #{compute_w_sp_t.3} parent=27 // loop_footer
                %s155 = sadd.s32 1, %s151
              $region34: #{compute_w_sp_t.3} parent=27 // loop_footer_branch
                %150 = sbr.rel target = $region30
              $region35: #{compute_w_sp_t.3} parent=27 // loop_exit
                _
            $region28: #{compute_w_sp_t.3} parent=23 // pred_fallthru
              _
            // Predicated region
            $region36: #{compute_w_sp_t.3} parent=23 // pred_check
              _
            $region37: #{compute_w_sp_t.3} parent=23 // pred_check_branch
              %287 = sbr.rel target = $region39
            $region38: #{compute_w_sp_t.3} parent=23 // pred_region
              _
            $region39: #{compute_w_sp_t.3} parent=23 // pred_fallthru
              _
          $region24: #{compute_w_sp_t.3} parent=19 // pred_fallthru
            _
          %288 = vnop
        $region20: #{compute_w_sp_t.3} parent=15 // pred_fallthru
          _
        // Predicated region
        $region40: #{compute_w_sp_t.3} parent=15 // pred_check
          %p289 = pneg %p80
        $region41: #{compute_w_sp_t.3} parent=15 // pred_check_branch
          %291 = sbr.rel (%p289) target = $region43
        $region42: #{compute_w_sp_t.3} parent=15 // pred_region
          %s292 = smul.u32 32, %s20
          %s293 = smul.u32 2, %s19
          %p294 = scmp.lt.s32.totalorder %s292, 63
          %s295 = scalar_select %p294, %s292, 63
          %p296 = scmp.lt.s32.totalorder %s293, 1
          %s297 = scalar_select %p296, %s293, 1
          %s298 = smul.addr %s295, 2
          %s299 = sadd.s32 %s297, %s298
          %s300 = smul.addr %s299, 8
          %s301 = scalar_lea.vmem %s1, %s300
          %s302 = smul.u32 32, %s20
          %s303 = smul.u32 2, %s19
        $region43: #{compute_w_sp_t.3} parent=15 // pred_fallthru
          _
      $region16: #{compute_w_sp_t.3} parent=5 // pred_fallthru
        _
      %p304 = scmp.le.s32.totalorder 1, %s11
      %p305 = scmp.lt.s32.totalorder %s11, 5
      %p306 = pnand %p304, %p305
      %p307 = pneg %p306
      // Predicated region
      $region44: #{compute_w_sp_t.3} parent=5 // pred_check
        _
      $region45: #{compute_w_sp_t.3} parent=5 // pred_check_branch
        %309 = sbr.rel (%p306) target = $region47
      $region46: #{compute_w_sp_t.3} parent=5 // pred_region
        %s310 = ssub.s32 %s11, 1
        %s311 = sand.u32 %s45, 1
        %s312 = sand.u32 %s45, 1
        %s313 = smul.addr %s312, 512
        %s314 = scalar_lea.vmem [#allocation3], %s313
        // Predicated region
        $region48: #{compute_w_sp_t.3} parent=46 // pred_check
          %p315 = pneg %p58
        $region49: #{compute_w_sp_t.3} parent=46 // pred_check_branch
          %317 = sbr.rel (%p315) target = $region51
        $region50: #{compute_w_sp_t.3} parent=46 // pred_region
          _
        $region51: #{compute_w_sp_t.3} parent=46 // pred_fallthru
          _
        %s318 = sand.u32 %s45, 1
        %s319 = sand.u32 %s45, 1
        %s320 = smul.addr %s319, 512
        %s321 = scalar_lea.vmem [#allocation3], %s320
        %p322 = pneg %p58
        %p323 = pneg %p55
        %s324 = smul.u32 32, %s23
        %s325 = smul.u32 2, %s22
        %p326 = scmp.lt.s32.totalorder %s324, 63
        %s327 = scalar_select %p326, %s324, 63
        %p328 = scmp.lt.s32.totalorder %s325, 1
        %s329 = scalar_select %p328, %s325, 1
        %s330 = smul.addr %s327, 2
        %s331 = sadd.s32 %s329, %s330
        %s332 = smul.addr %s331, 8
        %s333 = scalar_lea.vmem %s1, %s332
        %p334 = pneg %p86
        %p335 = pneg %p83
        %p336 = pneg %p114
        %p337 = pneg %p111
        %s338 = sand.u32 %s101, 1
        %s339 = scalar_lea.sflag [#allocation5], %s338
        %s340 = sand.u32 %s101, 1
        %s341 = smul.addr %s340, 512
        %s342 = scalar_lea.vmem [#allocation4], %s341
        %s343 = smul.u32 32, %s21
        %s344 = smul.u32 2, %s23
        %s345 = smul.u32 32, %s23
        %s346 = smul.u32 2, %s22
        %p347 = scmp.lt.s32.totalorder %s345, 63
        %s348 = scalar_select %p347, %s345, 63
        %p349 = scmp.lt.s32.totalorder %s346, 1
        %s350 = scalar_select %p349, %s346, 1
        %s351 = smul.addr %s348, 2
        %s352 = sadd.s32 %s350, %s351
        %s353 = smul.addr %s352, 8
        %s354 = scalar_lea.vmem %s1, %s353
        %s355 = smul.u32 32, %s23
        %s356 = smul.u32 2, %s22
        %s357 = smul.u32 32, %s21
        %s358 = smul.u32 2, %s22
        %p359 = scmp.eq.s32.totalorder %s23, 0
        // Predicated region
        $region52: #{compute_w_sp_t.3} parent=46 // pred_check
          %p360 = pneg %p359
        $region53: #{compute_w_sp_t.3} parent=46 // pred_check_branch
          %362 = sbr.rel (%p360) target = $region55
        $region54: #{compute_w_sp_t.3} parent=46 // pred_region
          %363 = vst [vmem:[#allocation2] sm:$0xff] 0.0
          %364 = vst [vmem:[#allocation2 + $0x8] sm:$0xff] 0.0
          %365 = vst [vmem:[#allocation2 + $0x10] sm:$0xff] 0.0
          %366 = vst [vmem:[#allocation2 + $0x18] sm:$0xff] 0.0
          %367 = vst [vmem:[#allocation2 + $0x20] sm:$0xff] 0.0
          %368 = vst [vmem:[#allocation2 + $0x28] sm:$0xff] 0.0
          %369 = vst [vmem:[#allocation2 + $0x30] sm:$0xff] 0.0
          %370 = vst [vmem:[#allocation2 + $0x38] sm:$0xff] 0.0
          %371 = vst [vmem:[#allocation2 + $0x40] sm:$0xff] 0.0
          %372 = vst [vmem:[#allocation2 + $0x48] sm:$0xff] 0.0
          %373 = vst [vmem:[#allocation2 + $0x50] sm:$0xff] 0.0
          %374 = vst [vmem:[#allocation2 + $0x58] sm:$0xff] 0.0
          %375 = vst [vmem:[#allocation2 + $0x60] sm:$0xff] 0.0
          %376 = vst [vmem:[#allocation2 + $0x68] sm:$0xff] 0.0
          %377 = vst [vmem:[#allocation2 + $0x70] sm:$0xff] 0.0
          %378 = vst [vmem:[#allocation2 + $0x78] sm:$0xff] 0.0
          %379 = vst [vmem:[#allocation2 + $0x80] sm:$0xff] 0.0
          %380 = vst [vmem:[#allocation2 + $0x88] sm:$0xff] 0.0
          %381 = vst [vmem:[#allocation2 + $0x90] sm:$0xff] 0.0
          %382 = vst [vmem:[#allocation2 + $0x98] sm:$0xff] 0.0
          %383 = vst [vmem:[#allocation2 + $0xa0] sm:$0xff] 0.0
          %384 = vst [vmem:[#allocation2 + $0xa8] sm:$0xff] 0.0
          %385 = vst [vmem:[#allocation2 + $0xb0] sm:$0xff] 0.0
          %386 = vst [vmem:[#allocation2 + $0xb8] sm:$0xff] 0.0
          %387 = vst [vmem:[#allocation2 + $0xc0] sm:$0xff] 0.0
          %388 = vst [vmem:[#allocation2 + $0xc8] sm:$0xff] 0.0
          %389 = vst [vmem:[#allocation2 + $0xd0] sm:$0xff] 0.0
          %390 = vst [vmem:[#allocation2 + $0xd8] sm:$0xff] 0.0
          %391 = vst [vmem:[#allocation2 + $0xe0] sm:$0xff] 0.0
          %392 = vst [vmem:[#allocation2 + $0xe8] sm:$0xff] 0.0
          %393 = vst [vmem:[#allocation2 + $0xf0] sm:$0xff] 0.0
          %394 = vst [vmem:[#allocation2 + $0xf8] sm:$0xff] 0.0
          %395 = vst [vmem:[#allocation2 + $0x100] sm:$0xff] 0.0
          %396 = vst [vmem:[#allocation2 + $0x108] sm:$0xff] 0.0
          %397 = vst [vmem:[#allocation2 + $0x110] sm:$0xff] 0.0
          %398 = vst [vmem:[#allocation2 + $0x118] sm:$0xff] 0.0
          %399 = vst [vmem:[#allocation2 + $0x120] sm:$0xff] 0.0
          %400 = vst [vmem:[#allocation2 + $0x128] sm:$0xff] 0.0
          %401 = vst [vmem:[#allocation2 + $0x130] sm:$0xff] 0.0
          %402 = vst [vmem:[#allocation2 + $0x138] sm:$0xff] 0.0
          %403 = vst [vmem:[#allocation2 + $0x140] sm:$0xff] 0.0
          %404 = vst [vmem:[#allocation2 + $0x148] sm:$0xff] 0.0
          %405 = vst [vmem:[#allocation2 + $0x150] sm:$0xff] 0.0
          %406 = vst [vmem:[#allocation2 + $0x158] sm:$0xff] 0.0
          %407 = vst [vmem:[#allocation2 + $0x160] sm:$0xff] 0.0
          %408 = vst [vmem:[#allocation2 + $0x168] sm:$0xff] 0.0
          %409 = vst [vmem:[#allocation2 + $0x170] sm:$0xff] 0.0
          %410 = vst [vmem:[#allocation2 + $0x178] sm:$0xff] 0.0
          %411 = vst [vmem:[#allocation2 + $0x180] sm:$0xff] 0.0
          %412 = vst [vmem:[#allocation2 + $0x188] sm:$0xff] 0.0
          %413 = vst [vmem:[#allocation2 + $0x190] sm:$0xff] 0.0
          %414 = vst [vmem:[#allocation2 + $0x198] sm:$0xff] 0.0
          %415 = vst [vmem:[#allocation2 + $0x1a0] sm:$0xff] 0.0
          %416 = vst [vmem:[#allocation2 + $0x1a8] sm:$0xff] 0.0
          %417 = vst [vmem:[#allocation2 + $0x1b0] sm:$0xff] 0.0
          %418 = vst [vmem:[#allocation2 + $0x1b8] sm:$0xff] 0.0
          %419 = vst [vmem:[#allocation2 + $0x1c0] sm:$0xff] 0.0
          %420 = vst [vmem:[#allocation2 + $0x1c8] sm:$0xff] 0.0
          %421 = vst [vmem:[#allocation2 + $0x1d0] sm:$0xff] 0.0
          %422 = vst [vmem:[#allocation2 + $0x1d8] sm:$0xff] 0.0
          %423 = vst [vmem:[#allocation2 + $0x1e0] sm:$0xff] 0.0
          %424 = vst [vmem:[#allocation2 + $0x1e8] sm:$0xff] 0.0
          %425 = vst [vmem:[#allocation2 + $0x1f0] sm:$0xff] 0.0
          %426 = vst [vmem:[#allocation2 + $0x1f8] sm:$0xff] 0.0
        $region55: #{compute_w_sp_t.3} parent=46 // pred_fallthru
          _
        %v427 = vld [vmem:[#allocation2] sm:$0xff]
        %v428 = vld [vmem:[#allocation2 + $0x8] sm:$0xff]
        %v429 = vld [vmem:[#allocation2 + $0x10] sm:$0xff]
        %v430 = vld [vmem:[#allocation2 + $0x18] sm:$0xff]
        %v431 = vld [vmem:[#allocation2 + $0x20] sm:$0xff]
        %v432 = vld [vmem:[#allocation2 + $0x28] sm:$0xff]
        %v433 = vld [vmem:[#allocation2 + $0x30] sm:$0xff]
        %v434 = vld [vmem:[#allocation2 + $0x38] sm:$0xff]
        %v435 = vld [vmem:[#allocation2 + $0x40] sm:$0xff]
        %v436 = vld [vmem:[#allocation2 + $0x48] sm:$0xff]
        %v437 = vld [vmem:[#allocation2 + $0x50] sm:$0xff]
        %v438 = vld [vmem:[#allocation2 + $0x58] sm:$0xff]
        %v439 = vld [vmem:[#allocation2 + $0x60] sm:$0xff]
        %v440 = vld [vmem:[#allocation2 + $0x68] sm:$0xff]
        %v441 = vld [vmem:[#allocation2 + $0x70] sm:$0xff]
        %v442 = vld [vmem:[#allocation2 + $0x78] sm:$0xff]
        %v443 = vld [vmem:[#allocation2 + $0x80] sm:$0xff]
        %v444 = vld [vmem:[#allocation2 + $0x88] sm:$0xff]
        %v445 = vld [vmem:[#allocation2 + $0x90] sm:$0xff]
        %v446 = vld [vmem:[#allocation2 + $0x98] sm:$0xff]
        %v447 = vld [vmem:[#allocation2 + $0xa0] sm:$0xff]
        %v448 = vld [vmem:[#allocation2 + $0xa8] sm:$0xff]
        %v449 = vld [vmem:[#allocation2 + $0xb0] sm:$0xff]
        %v450 = vld [vmem:[#allocation2 + $0xb8] sm:$0xff]
        %v451 = vld [vmem:[#allocation2 + $0xc0] sm:$0xff]
        %v452 = vld [vmem:[#allocation2 + $0xc8] sm:$0xff]
        %v453 = vld [vmem:[#allocation2 + $0xd0] sm:$0xff]
        %v454 = vld [vmem:[#allocation2 + $0xd8] sm:$0xff]
        %v455 = vld [vmem:[#allocation2 + $0xe0] sm:$0xff]
        %v456 = vld [vmem:[#allocation2 + $0xe8] sm:$0xff]
        %v457 = vld [vmem:[#allocation2 + $0xf0] sm:$0xff]
        %v458 = vld [vmem:[#allocation2 + $0xf8] sm:$0xff]
        %v459 = vld [vmem:[#allocation2 + $0x100] sm:$0xff]
        %v460 = vld [vmem:[#allocation2 + $0x108] sm:$0xff]
        %v461 = vld [vmem:[#allocation2 + $0x110] sm:$0xff]
        %v462 = vld [vmem:[#allocation2 + $0x118] sm:$0xff]
        %v463 = vld [vmem:[#allocation2 + $0x120] sm:$0xff]
        %v464 = vld [vmem:[#allocation2 + $0x128] sm:$0xff]
        %v465 = vld [vmem:[#allocation2 + $0x130] sm:$0xff]
        %v466 = vld [vmem:[#allocation2 + $0x138] sm:$0xff]
        %v467 = vld [vmem:[#allocation2 + $0x140] sm:$0xff]
        %v468 = vld [vmem:[#allocation2 + $0x148] sm:$0xff]
        %v469 = vld [vmem:[#allocation2 + $0x150] sm:$0xff]
        %v470 = vld [vmem:[#allocation2 + $0x158] sm:$0xff]
        %v471 = vld [vmem:[#allocation2 + $0x160] sm:$0xff]
        %v472 = vld [vmem:[#allocation2 + $0x168] sm:$0xff]
        %v473 = vld [vmem:[#allocation2 + $0x170] sm:$0xff]
        %v474 = vld [vmem:[#allocation2 + $0x178] sm:$0xff]
        %v475 = vld [vmem:[#allocation2 + $0x180] sm:$0xff]
        %v476 = vld [vmem:[#allocation2 + $0x188] sm:$0xff]
        %v477 = vld [vmem:[#allocation2 + $0x190] sm:$0xff]
        %v478 = vld [vmem:[#allocation2 + $0x198] sm:$0xff]
        %v479 = vld [vmem:[#allocation2 + $0x1a0] sm:$0xff]
        %v480 = vld [vmem:[#allocation2 + $0x1a8] sm:$0xff]
        %v481 = vld [vmem:[#allocation2 + $0x1b0] sm:$0xff]
        %v482 = vld [vmem:[#allocation2 + $0x1b8] sm:$0xff]
        %v483 = vld [vmem:[#allocation2 + $0x1c0] sm:$0xff]
        %v484 = vld [vmem:[#allocation2 + $0x1c8] sm:$0xff]
        %v485 = vld [vmem:[#allocation2 + $0x1d0] sm:$0xff]
        %v486 = vld [vmem:[#allocation2 + $0x1d8] sm:$0xff]
        %v487 = vld [vmem:[#allocation2 + $0x1e0] sm:$0xff]
        %v488 = vld [vmem:[#allocation2 + $0x1e8] sm:$0xff]
        %v489 = vld [vmem:[#allocation2 + $0x1f0] sm:$0xff]
        %v490 = vld [vmem:[#allocation2 + $0x1f8] sm:$0xff]
        %v491 = vld [vmem:[%s314] sm:$0xff]
        %v492 = vld [vmem:[%s314 + $0x8] sm:$0xff]
        %v493 = vld [vmem:[%s314 + $0x10] sm:$0xff]
        %v494 = vld [vmem:[%s314 + $0x18] sm:$0xff]
        %v495 = vld [vmem:[%s314 + $0x20] sm:$0xff]
        %v496 = vld [vmem:[%s314 + $0x28] sm:$0xff]
        %v497 = vld [vmem:[%s314 + $0x30] sm:$0xff]
        %v498 = vld [vmem:[%s314 + $0x38] sm:$0xff]
        %v499 = vld [vmem:[%s314 + $0x40] sm:$0xff]
        %v500 = vld [vmem:[%s314 + $0x48] sm:$0xff]
        %v501 = vld [vmem:[%s314 + $0x50] sm:$0xff]
        %v502 = vld [vmem:[%s314 + $0x58] sm:$0xff]
        %v503 = vld [vmem:[%s314 + $0x60] sm:$0xff]
        %v504 = vld [vmem:[%s314 + $0x68] sm:$0xff]
        %v505 = vld [vmem:[%s314 + $0x70] sm:$0xff]
        %v506 = vld [vmem:[%s314 + $0x78] sm:$0xff]
        %v507 = vld [vmem:[%s314 + $0x80] sm:$0xff]
        %v508 = vld [vmem:[%s314 + $0x88] sm:$0xff]
        %v509 = vld [vmem:[%s314 + $0x90] sm:$0xff]
        %v510 = vld [vmem:[%s314 + $0x98] sm:$0xff]
        %v511 = vld [vmem:[%s314 + $0xa0] sm:$0xff]
        %v512 = vld [vmem:[%s314 + $0xa8] sm:$0xff]
        %v513 = vld [vmem:[%s314 + $0xb0] sm:$0xff]
        %v514 = vld [vmem:[%s314 + $0xb8] sm:$0xff]
        %v515 = vld [vmem:[%s314 + $0xc0] sm:$0xff]
        %v516 = vld [vmem:[%s314 + $0xc8] sm:$0xff]
        %v517 = vld [vmem:[%s314 + $0xd0] sm:$0xff]
        %v518 = vld [vmem:[%s314 + $0xd8] sm:$0xff]
        %v519 = vld [vmem:[%s314 + $0xe0] sm:$0xff]
        %v520 = vld [vmem:[%s314 + $0xe8] sm:$0xff]
        %v521 = vld [vmem:[%s314 + $0xf0] sm:$0xff]
        %v522 = vld [vmem:[%s314 + $0xf8] sm:$0xff]
        %v523 = vld [vmem:[%s314 + $0x100] sm:$0xff]
        %v524 = vld [vmem:[%s314 + $0x108] sm:$0xff]
        %v525 = vld [vmem:[%s314 + $0x110] sm:$0xff]
        %v526 = vld [vmem:[%s314 + $0x118] sm:$0xff]
        %v527 = vld [vmem:[%s314 + $0x120] sm:$0xff]
        %v528 = vld [vmem:[%s314 + $0x128] sm:$0xff]
        %v529 = vld [vmem:[%s314 + $0x130] sm:$0xff]
        %v530 = vld [vmem:[%s314 + $0x138] sm:$0xff]
        %v531 = vld [vmem:[%s314 + $0x140] sm:$0xff]
        %v532 = vld [vmem:[%s314 + $0x148] sm:$0xff]
        %v533 = vld [vmem:[%s314 + $0x150] sm:$0xff]
        %v534 = vld [vmem:[%s314 + $0x158] sm:$0xff]
        %v535 = vld [vmem:[%s314 + $0x160] sm:$0xff]
        %v536 = vld [vmem:[%s314 + $0x168] sm:$0xff]
        %v537 = vld [vmem:[%s314 + $0x170] sm:$0xff]
        %v538 = vld [vmem:[%s314 + $0x178] sm:$0xff]
        %v539 = vld [vmem:[%s314 + $0x180] sm:$0xff]
        %v540 = vld [vmem:[%s314 + $0x188] sm:$0xff]
        %v541 = vld [vmem:[%s314 + $0x190] sm:$0xff]
        %v542 = vld [vmem:[%s314 + $0x198] sm:$0xff]
        %v543 = vld [vmem:[%s314 + $0x1a0] sm:$0xff]
        %v544 = vld [vmem:[%s314 + $0x1a8] sm:$0xff]
        %v545 = vld [vmem:[%s314 + $0x1b0] sm:$0xff]
        %v546 = vld [vmem:[%s314 + $0x1b8] sm:$0xff]
        %v547 = vld [vmem:[%s314 + $0x1c0] sm:$0xff]
        %v548 = vld [vmem:[%s314 + $0x1c8] sm:$0xff]
        %v549 = vld [vmem:[%s314 + $0x1d0] sm:$0xff]
        %v550 = vld [vmem:[%s314 + $0x1d8] sm:$0xff]
        %v551 = vld [vmem:[%s314 + $0x1e0] sm:$0xff]
        %v552 = vld [vmem:[%s314 + $0x1e8] sm:$0xff]
        %v553 = vld [vmem:[%s314 + $0x1f0] sm:$0xff]
        %v554 = vld [vmem:[%s314 + $0x1f8] sm:$0xff]
        %v555 = vld [vmem:[%s354] sm:$0xff]
        %v556 = vld [vmem:[%s354 + $0x8] sm:$0xff]
        %v557 = vld [vmem:[%s354 + $0x10] sm:$0xff]
        %v558 = vld [vmem:[%s354 + $0x18] sm:$0xff]
        %v559 = vld [vmem:[%s354 + $0x20] sm:$0xff]
        %v560 = vld [vmem:[%s354 + $0x28] sm:$0xff]
        %v561 = vld [vmem:[%s354 + $0x30] sm:$0xff]
        %v562 = vld [vmem:[%s354 + $0x38] sm:$0xff]
        %v563 = vld [vmem:[%s354 + $0x40] sm:$0xff]
        %v564 = vld [vmem:[%s354 + $0x48] sm:$0xff]
        %v565 = vld [vmem:[%s354 + $0x50] sm:$0xff]
        %v566 = vld [vmem:[%s354 + $0x58] sm:$0xff]
        %v567 = vld [vmem:[%s354 + $0x60] sm:$0xff]
        %v568 = vld [vmem:[%s354 + $0x68] sm:$0xff]
        %v569 = vld [vmem:[%s354 + $0x70] sm:$0xff]
        %v570 = vld [vmem:[%s354 + $0x78] sm:$0xff]
        %v571 = vld [vmem:[%s354 + $0x80] sm:$0xff]
        %v572 = vld [vmem:[%s354 + $0x88] sm:$0xff]
        %v573 = vld [vmem:[%s354 + $0x90] sm:$0xff]
        %v574 = vld [vmem:[%s354 + $0x98] sm:$0xff]
        %v575 = vld [vmem:[%s354 + $0xa0] sm:$0xff]
        %v576 = vld [vmem:[%s354 + $0xa8] sm:$0xff]
        %v577 = vld [vmem:[%s354 + $0xb0] sm:$0xff]
        %v578 = vld [vmem:[%s354 + $0xb8] sm:$0xff]
        %v579 = vld [vmem:[%s354 + $0xc0] sm:$0xff]
        %v580 = vld [vmem:[%s354 + $0xc8] sm:$0xff]
        %v581 = vld [vmem:[%s354 + $0xd0] sm:$0xff]
        %v582 = vld [vmem:[%s354 + $0xd8] sm:$0xff]
        %v583 = vld [vmem:[%s354 + $0xe0] sm:$0xff]
        %v584 = vld [vmem:[%s354 + $0xe8] sm:$0xff]
        %v585 = vld [vmem:[%s354 + $0xf0] sm:$0xff]
        %v586 = vld [vmem:[%s354 + $0xf8] sm:$0xff]
        %v587 = vld [vmem:[%s354 + $0x100] sm:$0xff]
        %v588 = vld [vmem:[%s354 + $0x108] sm:$0xff]
        %v589 = vld [vmem:[%s354 + $0x110] sm:$0xff]
        %v590 = vld [vmem:[%s354 + $0x118] sm:$0xff]
        %v591 = vld [vmem:[%s354 + $0x120] sm:$0xff]
        %v592 = vld [vmem:[%s354 + $0x128] sm:$0xff]
        %v593 = vld [vmem:[%s354 + $0x130] sm:$0xff]
        %v594 = vld [vmem:[%s354 + $0x138] sm:$0xff]
        %v595 = vld [vmem:[%s354 + $0x140] sm:$0xff]
        %v596 = vld [vmem:[%s354 + $0x148] sm:$0xff]
        %v597 = vld [vmem:[%s354 + $0x150] sm:$0xff]
        %v598 = vld [vmem:[%s354 + $0x158] sm:$0xff]
        %v599 = vld [vmem:[%s354 + $0x160] sm:$0xff]
        %v600 = vld [vmem:[%s354 + $0x168] sm:$0xff]
        %v601 = vld [vmem:[%s354 + $0x170] sm:$0xff]
        %v602 = vld [vmem:[%s354 + $0x178] sm:$0xff]
        %v603 = vld [vmem:[%s354 + $0x180] sm:$0xff]
        %v604 = vld [vmem:[%s354 + $0x188] sm:$0xff]
        %v605 = vld [vmem:[%s354 + $0x190] sm:$0xff]
        %v606 = vld [vmem:[%s354 + $0x198] sm:$0xff]
        %v607 = vld [vmem:[%s354 + $0x1a0] sm:$0xff]
        %v608 = vld [vmem:[%s354 + $0x1a8] sm:$0xff]
        %v609 = vld [vmem:[%s354 + $0x1b0] sm:$0xff]
        %v610 = vld [vmem:[%s354 + $0x1b8] sm:$0xff]
        %v611 = vld [vmem:[%s354 + $0x1c0] sm:$0xff]
        %v612 = vld [vmem:[%s354 + $0x1c8] sm:$0xff]
        %v613 = vld [vmem:[%s354 + $0x1d0] sm:$0xff]
        %v614 = vld [vmem:[%s354 + $0x1d8] sm:$0xff]
        %v615 = vld [vmem:[%s354 + $0x1e0] sm:$0xff]
        %v616 = vld [vmem:[%s354 + $0x1e8] sm:$0xff]
        %v617 = vld [vmem:[%s354 + $0x1f0] sm:$0xff]
        %v618 = vld [vmem:[%s354 + $0x1f8] sm:$0xff]
        %619 = vmatprep.subr.mxu0 %v556
        %620 = vmatpush1.msra.mxu0 %v555
        %621 = vmatprep.subr.mxu0 %v558
        %622 = vmatpush1.msra.mxu0 %v557
        %623 = vmatprep.subr.mxu0 %v560
        %624 = vmatpush1.msra.mxu0 %v559
        %625 = vmatprep.subr.mxu0 %v562
        %626 = vmatpush1.msra.mxu0 %v561
        %627 = vmatprep.subr.mxu0 %v564
        %628 = vmatpush1.msra.mxu0 %v563
        %629 = vmatprep.subr.mxu0 %v566
        %630 = vmatpush1.msra.mxu0 %v565
        %631 = vmatprep.subr.mxu0 %v568
        %632 = vmatpush1.msra.mxu0 %v567
        %633 = vmatprep.subr.mxu0 %v570
        %634 = vmatpush1.msra.mxu0 %v569
        %635 = vmatprep.subr.mxu0 %v572
        %636 = vmatpush1.msra.mxu0 %v571
        %637 = vmatprep.subr.mxu0 %v574
        %638 = vmatpush1.msra.mxu0 %v573
        %639 = vmatprep.subr.mxu0 %v576
        %640 = vmatpush1.msra.mxu0 %v575
        %641 = vmatprep.subr.mxu0 %v578
        %642 = vmatpush1.msra.mxu0 %v577
        %643 = vmatprep.subr.mxu0 %v580
        %644 = vmatpush1.msra.mxu0 %v579
        %645 = vmatprep.subr.mxu0 %v582
        %646 = vmatpush1.msra.mxu0 %v581
        %647 = vmatprep.subr.mxu0 %v584
        %648 = vmatpush1.msra.mxu0 %v583
        %649 = vmatprep.subr.mxu0 %v586
        %650 = vmatpush1.msra.mxu0 %v585
        %651 = vmatprep.subr.mxu0 %v588
        %652 = vmatpush1.msra.mxu0 %v587
        %653 = vmatprep.subr.mxu0 %v590
        %654 = vmatpush1.msra.mxu0 %v589
        %655 = vmatprep.subr.mxu0 %v592
        %656 = vmatpush1.msra.mxu0 %v591
        %657 = vmatprep.subr.mxu0 %v594
        %658 = vmatpush1.msra.mxu0 %v593
        %659 = vmatprep.subr.mxu0 %v596
        %660 = vmatpush1.msra.mxu0 %v595
        %661 = vmatprep.subr.mxu0 %v598
        %662 = vmatpush1.msra.mxu0 %v597
        %663 = vmatprep.subr.mxu0 %v600
        %664 = vmatpush1.msra.mxu0 %v599
        %665 = vmatprep.subr.mxu0 %v602
        %666 = vmatpush1.msra.mxu0 %v601
        %667 = vmatprep.subr.mxu0 %v604
        %668 = vmatpush1.msra.mxu0 %v603
        %669 = vmatprep.subr.mxu0 %v606
        %670 = vmatpush1.msra.mxu0 %v605
        %671 = vmatprep.subr.mxu0 %v608
        %672 = vmatpush1.msra.mxu0 %v607
        %673 = vmatprep.subr.mxu0 %v610
        %674 = vmatpush1.msra.mxu0 %v609
        %675 = vmatprep.subr.mxu0 %v612
        %676 = vmatpush1.msra.mxu0 %v611
        %677 = vmatprep.subr.mxu0 %v614
        %678 = vmatpush1.msra.mxu0 %v613
        %679 = vmatprep.subr.mxu0 %v616
        %680 = vmatpush1.msra.mxu0 %v615
        %681 = vmatprep.subr.mxu0 %v618
        %682 = vmatpush1.msra.mxu0 %v617
        %683 = vmatprep.mubr.f32.mxu0 %v492
        %684 = vmatmul.mubr.f32.gmra.mrb[0].mxu0 %v491
        %v685 = vpop.f32.mrb[0].mxu0
        %v686 = vadd.f32 0.0, %v685
        %v687 = vpop.f32.mrb[0].mxu0
        %v688 = vadd.f32 0.0, %v687
        %689 = vmatprep.mubr.f32.mxu0 %v494
        %690 = vmatmul.mubr.f32.gmra.mrb[0].mxu0 %v493
        %v691 = vpop.f32.mrb[0].mxu0
        %v692 = vadd.f32 0.0, %v691
        %v693 = vpop.f32.mrb[0].mxu0
        %v694 = vadd.f32 0.0, %v693
        %695 = vmatprep.mubr.f32.mxu0 %v496
        %696 = vmatmul.mubr.f32.gmra.mrb[0].mxu0 %v495
        %v697 = vpop.f32.mrb[0].mxu0
        %v698 = vadd.f32 0.0, %v697
        %v699 = vpop.f32.mrb[0].mxu0
        %v700 = vadd.f32 0.0, %v699
        %701 = vmatprep.mubr.f32.mxu0 %v498
        %702 = vmatmul.mubr.f32.gmra.mrb[0].mxu0 %v497
        %v703 = vpop.f32.mrb[0].mxu0
        %v704 = vadd.f32 0.0, %v703
        %v705 = vpop.f32.mrb[0].mxu0
        %v706 = vadd.f32 0.0, %v705
        %707 = vmatprep.mubr.f32.mxu0 %v500
        %708 = vmatmul.mubr.f32.gmra.mrb[0].mxu0 %v499
        %v709 = vpop.f32.mrb[0].mxu0
        %v710 = vadd.f32 0.0, %v709
        %v711 = vpop.f32.mrb[0].mxu0
        %v712 = vadd.f32 0.0, %v711
        %713 = vmatprep.mubr.f32.mxu0 %v502
        %714 = vmatmul.mubr.f32.gmra.mrb[0].mxu0 %v501
        %v715 = vpop.f32.mrb[0].mxu0
        %v716 = vadd.f32 0.0, %v715
        %v717 = vpop.f32.mrb[0].mxu0
        %v718 = vadd.f32 0.0, %v717
        %719 = vmatprep.mubr.f32.mxu0 %v504
        %720 = vmatmul.mubr.f32.gmra.mrb[0].mxu0 %v503
        %v721 = vpop.f32.mrb[0].mxu0
        %v722 = vadd.f32 0.0, %v721
        %v723 = vpop.f32.mrb[0].mxu0
        %v724 = vadd.f32 0.0, %v723
        %725 = vmatprep.mubr.f32.mxu0 %v506
        %726 = vmatmul.mubr.f32.gmra.mrb[0].mxu0 %v505
        %v727 = vpop.f32.mrb[0].mxu0
        %v728 = vadd.f32 0.0, %v727
        %v729 = vpop.f32.mrb[0].mxu0
        %v730 = vadd.f32 0.0, %v729
        %731 = vmatprep.mubr.f32.mxu0 %v508
        %732 = vmatmul.mubr.f32.gmra.mrb[0].mxu0 %v507
        %v733 = vpop.f32.mrb[0].mxu0
        %v734 = vadd.f32 0.0, %v733
        %v735 = vpop.f32.mrb[0].mxu0
        %v736 = vadd.f32 0.0, %v735
        %737 = vmatprep.mubr.f32.mxu0 %v510
        %738 = vmatmul.mubr.f32.gmra.mrb[0].mxu0 %v509
        %v739 = vpop.f32.mrb[0].mxu0
        %v740 = vadd.f32 0.0, %v739
        %v741 = vpop.f32.mrb[0].mxu0
        %v742 = vadd.f32 0.0, %v741
        %743 = vmatprep.mubr.f32.mxu0 %v512
        %744 = vmatmul.mubr.f32.gmra.mrb[0].mxu0 %v511
        %v745 = vpop.f32.mrb[0].mxu0
        %v746 = vadd.f32 0.0, %v745
        %v747 = vpop.f32.mrb[0].mxu0
        %v748 = vadd.f32 0.0, %v747
        %749 = vmatprep.mubr.f32.mxu0 %v514
        %750 = vmatmul.mubr.f32.gmra.mrb[0].mxu0 %v513
        %v751 = vpop.f32.mrb[0].mxu0
        %v752 = vadd.f32 0.0, %v751
        %v753 = vpop.f32.mrb[0].mxu0
        %v754 = vadd.f32 0.0, %v753
        %755 = vmatprep.mubr.f32.mxu0 %v516
        %756 = vmatmul.mubr.f32.gmra.mrb[0].mxu0 %v515
        %v757 = vpop.f32.mrb[0].mxu0
        %v758 = vadd.f32 0.0, %v757
        %v759 = vpop.f32.mrb[0].mxu0
        %v760 = vadd.f32 0.0, %v759
        %761 = vmatprep.mubr.f32.mxu0 %v518
        %762 = vmatmul.mubr.f32.gmra.mrb[0].mxu0 %v517
        %v763 = vpop.f32.mrb[0].mxu0
        %v764 = vadd.f32 0.0, %v763
        %v765 = vpop.f32.mrb[0].mxu0
        %v766 = vadd.f32 0.0, %v765
        %767 = vmatprep.mubr.f32.mxu0 %v520
        %768 = vmatmul.mubr.f32.gmra.mrb[0].mxu0 %v519
        %v769 = vpop.f32.mrb[0].mxu0
        %v770 = vadd.f32 0.0, %v769
        %v771 = vpop.f32.mrb[0].mxu0
        %v772 = vadd.f32 0.0, %v771
        %773 = vmatprep.mubr.f32.mxu0 %v522
        %774 = vmatmul.mubr.f32.gmra.mrb[0].mxu0 %v521
        %v775 = vpop.f32.mrb[0].mxu0
        %v776 = vadd.f32 0.0, %v775
        %v777 = vpop.f32.mrb[0].mxu0
        %v778 = vadd.f32 0.0, %v777
        %779 = vmatprep.mubr.f32.mxu0 %v524
        %780 = vmatmul.mubr.f32.gmra.mrb[0].mxu0 %v523
        %v781 = vpop.f32.mrb[0].mxu0
        %v782 = vadd.f32 0.0, %v781
        %v783 = vpop.f32.mrb[0].mxu0
        %v784 = vadd.f32 0.0, %v783
        %785 = vmatprep.mubr.f32.mxu0 %v526
        %786 = vmatmul.mubr.f32.gmra.mrb[0].mxu0 %v525
        %v787 = vpop.f32.mrb[0].mxu0
        %v788 = vadd.f32 0.0, %v787
        %v789 = vpop.f32.mrb[0].mxu0
        %v790 = vadd.f32 0.0, %v789
        %791 = vmatprep.mubr.f32.mxu0 %v528
        %792 = vmatmul.mubr.f32.gmra.mrb[0].mxu0 %v527
        %v793 = vpop.f32.mrb[0].mxu0
        %v794 = vadd.f32 0.0, %v793
        %v795 = vpop.f32.mrb[0].mxu0
        %v796 = vadd.f32 0.0, %v795
        %797 = vmatprep.mubr.f32.mxu0 %v530
        %798 = vmatmul.mubr.f32.gmra.mrb[0].mxu0 %v529
        %v799 = vpop.f32.mrb[0].mxu0
        %v800 = vadd.f32 0.0, %v799
        %v801 = vpop.f32.mrb[0].mxu0
        %v802 = vadd.f32 0.0, %v801
        %803 = vmatprep.mubr.f32.mxu0 %v532
        %804 = vmatmul.mubr.f32.gmra.mrb[0].mxu0 %v531
        %v805 = vpop.f32.mrb[0].mxu0
        %v806 = vadd.f32 0.0, %v805
        %v807 = vpop.f32.mrb[0].mxu0
        %v808 = vadd.f32 0.0, %v807
        %809 = vmatprep.mubr.f32.mxu0 %v534
        %810 = vmatmul.mubr.f32.gmra.mrb[0].mxu0 %v533
        %v811 = vpop.f32.mrb[0].mxu0
        %v812 = vadd.f32 0.0, %v811
        %v813 = vpop.f32.mrb[0].mxu0
        %v814 = vadd.f32 0.0, %v813
        %815 = vmatprep.mubr.f32.mxu0 %v536
        %816 = vmatmul.mubr.f32.gmra.mrb[0].mxu0 %v535
        %v817 = vpop.f32.mrb[0].mxu0
        %v818 = vadd.f32 0.0, %v817
        %v819 = vpop.f32.mrb[0].mxu0
        %v820 = vadd.f32 0.0, %v819
        %821 = vmatprep.mubr.f32.mxu0 %v538
        %822 = vmatmul.mubr.f32.gmra.mrb[0].mxu0 %v537
        %v823 = vpop.f32.mrb[0].mxu0
        %v824 = vadd.f32 0.0, %v823
        %v825 = vpop.f32.mrb[0].mxu0
        %v826 = vadd.f32 0.0, %v825
        %827 = vmatprep.mubr.f32.mxu0 %v540
        %828 = vmatmul.mubr.f32.gmra.mrb[0].mxu0 %v539
        %v829 = vpop.f32.mrb[0].mxu0
        %v830 = vadd.f32 0.0, %v829
        %v831 = vpop.f32.mrb[0].mxu0
        %v832 = vadd.f32 0.0, %v831
        %833 = vmatprep.mubr.f32.mxu0 %v542
        %834 = vmatmul.mubr.f32.gmra.mrb[0].mxu0 %v541
        %v835 = vpop.f32.mrb[0].mxu0
        %v836 = vadd.f32 0.0, %v835
        %v837 = vpop.f32.mrb[0].mxu0
        %v838 = vadd.f32 0.0, %v837
        %839 = vmatprep.mubr.f32.mxu0 %v544
        %840 = vmatmul.mubr.f32.gmra.mrb[0].mxu0 %v543
        %v841 = vpop.f32.mrb[0].mxu0
        %v842 = vadd.f32 0.0, %v841
        %v843 = vpop.f32.mrb[0].mxu0
        %v844 = vadd.f32 0.0, %v843
        %845 = vmatprep.mubr.f32.mxu0 %v546
        %846 = vmatmul.mubr.f32.gmra.mrb[0].mxu0 %v545
        %v847 = vpop.f32.mrb[0].mxu0
        %v848 = vadd.f32 0.0, %v847
        %v849 = vpop.f32.mrb[0].mxu0
        %v850 = vadd.f32 0.0, %v849
        %851 = vmatprep.mubr.f32.mxu0 %v548
        %852 = vmatmul.mubr.f32.gmra.mrb[0].mxu0 %v547
        %v853 = vpop.f32.mrb[0].mxu0
        %v854 = vadd.f32 0.0, %v853
        %v855 = vpop.f32.mrb[0].mxu0
        %v856 = vadd.f32 0.0, %v855
        %857 = vmatprep.mubr.f32.mxu0 %v550
        %858 = vmatmul.mubr.f32.gmra.mrb[0].mxu0 %v549
        %v859 = vpop.f32.mrb[0].mxu0
        %v860 = vadd.f32 0.0, %v859
        %v861 = vpop.f32.mrb[0].mxu0
        %v862 = vadd.f32 0.0, %v861
        %863 = vmatprep.mubr.f32.mxu0 %v552
        %864 = vmatmul.mubr.f32.gmra.mrb[0].mxu0 %v551
        %v865 = vpop.f32.mrb[0].mxu0
        %v866 = vadd.f32 0.0, %v865
        %v867 = vpop.f32.mrb[0].mxu0
        %v868 = vadd.f32 0.0, %v867
        %869 = vmatprep.mubr.f32.mxu0 %v554
        %870 = vmatmul.mubr.f32.gmra.mrb[0].mxu0 %v553
        %v871 = vpop.f32.mrb[0].mxu0
        %v872 = vadd.f32 0.0, %v871
        %v873 = vpop.f32.mrb[0].mxu0
        %v874 = vadd.f32 0.0, %v873
        %875 = vdwg.mxu0
        %v876 = vadd.f32 %v427, %v686
        %v877 = vadd.f32 %v428, %v688
        %v878 = vadd.f32 %v429, %v692
        %v879 = vadd.f32 %v430, %v694
        %v880 = vadd.f32 %v431, %v698
        %v881 = vadd.f32 %v432, %v700
        %v882 = vadd.f32 %v433, %v704
        %v883 = vadd.f32 %v434, %v706
        %v884 = vadd.f32 %v435, %v710
        %v885 = vadd.f32 %v436, %v712
        %v886 = vadd.f32 %v437, %v716
        %v887 = vadd.f32 %v438, %v718
        %v888 = vadd.f32 %v439, %v722
        %v889 = vadd.f32 %v440, %v724
        %v890 = vadd.f32 %v441, %v728
        %v891 = vadd.f32 %v442, %v730
        %v892 = vadd.f32 %v443, %v734
        %v893 = vadd.f32 %v444, %v736
        %v894 = vadd.f32 %v445, %v740
        %v895 = vadd.f32 %v446, %v742
        %v896 = vadd.f32 %v447, %v746
        %v897 = vadd.f32 %v448, %v748
        %v898 = vadd.f32 %v449, %v752
        %v899 = vadd.f32 %v450, %v754
        %v900 = vadd.f32 %v451, %v758
        %v901 = vadd.f32 %v452, %v760
        %v902 = vadd.f32 %v453, %v764
        %v903 = vadd.f32 %v454, %v766
        %v904 = vadd.f32 %v455, %v770
        %v905 = vadd.f32 %v456, %v772
        %v906 = vadd.f32 %v457, %v776
        %v907 = vadd.f32 %v458, %v778
        %v908 = vadd.f32 %v459, %v782
        %v909 = vadd.f32 %v460, %v784
        %v910 = vadd.f32 %v461, %v788
        %v911 = vadd.f32 %v462, %v790
        %v912 = vadd.f32 %v463, %v794
        %v913 = vadd.f32 %v464, %v796
        %v914 = vadd.f32 %v465, %v800
        %v915 = vadd.f32 %v466, %v802
        %v916 = vadd.f32 %v467, %v806
        %v917 = vadd.f32 %v468, %v808
        %v918 = vadd.f32 %v469, %v812
        %v919 = vadd.f32 %v470, %v814
        %v920 = vadd.f32 %v471, %v818
        %v921 = vadd.f32 %v472, %v820
        %v922 = vadd.f32 %v473, %v824
        %v923 = vadd.f32 %v474, %v826
        %v924 = vadd.f32 %v475, %v830
        %v925 = vadd.f32 %v476, %v832
        %v926 = vadd.f32 %v477, %v836
        %v927 = vadd.f32 %v478, %v838
        %v928 = vadd.f32 %v479, %v842
        %v929 = vadd.f32 %v480, %v844
        %v930 = vadd.f32 %v481, %v848
        %v931 = vadd.f32 %v482, %v850
        %v932 = vadd.f32 %v483, %v854
        %v933 = vadd.f32 %v484, %v856
        %v934 = vadd.f32 %v485, %v860
        %v935 = vadd.f32 %v486, %v862
        %v936 = vadd.f32 %v487, %v866
        %v937 = vadd.f32 %v488, %v868
        %v938 = vadd.f32 %v489, %v872
        %v939 = vadd.f32 %v490, %v874
        %940 = vst [vmem:[#allocation2] sm:$0xff] %v876
        %941 = vst [vmem:[#allocation2 + $0x8] sm:$0xff] %v877
        %942 = vst [vmem:[#allocation2 + $0x10] sm:$0xff] %v878
        %943 = vst [vmem:[#allocation2 + $0x18] sm:$0xff] %v879
        %944 = vst [vmem:[#allocation2 + $0x20] sm:$0xff] %v880
        %945 = vst [vmem:[#allocation2 + $0x28] sm:$0xff] %v881
        %946 = vst [vmem:[#allocation2 + $0x30] sm:$0xff] %v882
        %947 = vst [vmem:[#allocation2 + $0x38] sm:$0xff] %v883
        %948 = vst [vmem:[#allocation2 + $0x40] sm:$0xff] %v884
        %949 = vst [vmem:[#allocation2 + $0x48] sm:$0xff] %v885
        %950 = vst [vmem:[#allocation2 + $0x50] sm:$0xff] %v886
        %951 = vst [vmem:[#allocation2 + $0x58] sm:$0xff] %v887
        %952 = vst [vmem:[#allocation2 + $0x60] sm:$0xff] %v888
        %953 = vst [vmem:[#allocation2 + $0x68] sm:$0xff] %v889
        %954 = vst [vmem:[#allocation2 + $0x70] sm:$0xff] %v890
        %955 = vst [vmem:[#allocation2 + $0x78] sm:$0xff] %v891
        %956 = vst [vmem:[#allocation2 + $0x80] sm:$0xff] %v892
        %957 = vst [vmem:[#allocation2 + $0x88] sm:$0xff] %v893
        %958 = vst [vmem:[#allocation2 + $0x90] sm:$0xff] %v894
        %959 = vst [vmem:[#allocation2 + $0x98] sm:$0xff] %v895
        %960 = vst [vmem:[#allocation2 + $0xa0] sm:$0xff] %v896
        %961 = vst [vmem:[#allocation2 + $0xa8] sm:$0xff] %v897
        %962 = vst [vmem:[#allocation2 + $0xb0] sm:$0xff] %v898
        %963 = vst [vmem:[#allocation2 + $0xb8] sm:$0xff] %v899
        %964 = vst [vmem:[#allocation2 + $0xc0] sm:$0xff] %v900
        %965 = vst [vmem:[#allocation2 + $0xc8] sm:$0xff] %v901
        %966 = vst [vmem:[#allocation2 + $0xd0] sm:$0xff] %v902
        %967 = vst [vmem:[#allocation2 + $0xd8] sm:$0xff] %v903
        %968 = vst [vmem:[#allocation2 + $0xe0] sm:$0xff] %v904
        %969 = vst [vmem:[#allocation2 + $0xe8] sm:$0xff] %v905
        %970 = vst [vmem:[#allocation2 + $0xf0] sm:$0xff] %v906
        %971 = vst [vmem:[#allocation2 + $0xf8] sm:$0xff] %v907
        %972 = vst [vmem:[#allocation2 + $0x100] sm:$0xff] %v908
        %973 = vst [vmem:[#allocation2 + $0x108] sm:$0xff] %v909
        %974 = vst [vmem:[#allocation2 + $0x110] sm:$0xff] %v910
        %975 = vst [vmem:[#allocation2 + $0x118] sm:$0xff] %v911
        %976 = vst [vmem:[#allocation2 + $0x120] sm:$0xff] %v912
        %977 = vst [vmem:[#allocation2 + $0x128] sm:$0xff] %v913
        %978 = vst [vmem:[#allocation2 + $0x130] sm:$0xff] %v914
        %979 = vst [vmem:[#allocation2 + $0x138] sm:$0xff] %v915
        %980 = vst [vmem:[#allocation2 + $0x140] sm:$0xff] %v916
        %981 = vst [vmem:[#allocation2 + $0x148] sm:$0xff] %v917
        %982 = vst [vmem:[#allocation2 + $0x150] sm:$0xff] %v918
        %983 = vst [vmem:[#allocation2 + $0x158] sm:$0xff] %v919
        %984 = vst [vmem:[#allocation2 + $0x160] sm:$0xff] %v920
        %985 = vst [vmem:[#allocation2 + $0x168] sm:$0xff] %v921
        %986 = vst [vmem:[#allocation2 + $0x170] sm:$0xff] %v922
        %987 = vst [vmem:[#allocation2 + $0x178] sm:$0xff] %v923
        %988 = vst [vmem:[#allocation2 + $0x180] sm:$0xff] %v924
        %989 = vst [vmem:[#allocation2 + $0x188] sm:$0xff] %v925
        %990 = vst [vmem:[#allocation2 + $0x190] sm:$0xff] %v926
        %991 = vst [vmem:[#allocation2 + $0x198] sm:$0xff] %v927
        %992 = vst [vmem:[#allocation2 + $0x1a0] sm:$0xff] %v928
        %993 = vst [vmem:[#allocation2 + $0x1a8] sm:$0xff] %v929
        %994 = vst [vmem:[#allocation2 + $0x1b0] sm:$0xff] %v930
        %995 = vst [vmem:[#allocation2 + $0x1b8] sm:$0xff] %v931
        %996 = vst [vmem:[#allocation2 + $0x1c0] sm:$0xff] %v932
        %997 = vst [vmem:[#allocation2 + $0x1c8] sm:$0xff] %v933
        %998 = vst [vmem:[#allocation2 + $0x1d0] sm:$0xff] %v934
        %999 = vst [vmem:[#allocation2 + $0x1d8] sm:$0xff] %v935
        %1000 = vst [vmem:[#allocation2 + $0x1e0] sm:$0xff] %v936
        %1001 = vst [vmem:[#allocation2 + $0x1e8] sm:$0xff] %v937
        %1002 = vst [vmem:[#allocation2 + $0x1f0] sm:$0xff] %v938
        %1003 = vst [vmem:[#allocation2 + $0x1f8] sm:$0xff] %v939
        %p1004 = scmp.eq.s32.totalorder %s23, 1
        // Predicated region
        $region56: #{compute_w_sp_t.3} parent=46 // pred_check
          %p1005 = pneg %p1004
        $region57: #{compute_w_sp_t.3} parent=46 // pred_check_branch
          %1007 = sbr.rel (%p1005) target = $region59
        $region58: #{compute_w_sp_t.3} parent=46 // pred_region
          %v1008 = vld [vmem:[#allocation2] sm:$0xff]
          %v1009 = vld [vmem:[#allocation2 + $0x8] sm:$0xff]
          %v1010 = vld [vmem:[#allocation2 + $0x10] sm:$0xff]
          %v1011 = vld [vmem:[#allocation2 + $0x18] sm:$0xff]
          %v1012 = vld [vmem:[#allocation2 + $0x20] sm:$0xff]
          %v1013 = vld [vmem:[#allocation2 + $0x28] sm:$0xff]
          %v1014 = vld [vmem:[#allocation2 + $0x30] sm:$0xff]
          %v1015 = vld [vmem:[#allocation2 + $0x38] sm:$0xff]
          %v1016 = vld [vmem:[#allocation2 + $0x40] sm:$0xff]
          %v1017 = vld [vmem:[#allocation2 + $0x48] sm:$0xff]
          %v1018 = vld [vmem:[#allocation2 + $0x50] sm:$0xff]
          %v1019 = vld [vmem:[#allocation2 + $0x58] sm:$0xff]
          %v1020 = vld [vmem:[#allocation2 + $0x60] sm:$0xff]
          %v1021 = vld [vmem:[#allocation2 + $0x68] sm:$0xff]
          %v1022 = vld [vmem:[#allocation2 + $0x70] sm:$0xff]
          %v1023 = vld [vmem:[#allocation2 + $0x78] sm:$0xff]
          %v1024 = vld [vmem:[#allocation2 + $0x80] sm:$0xff]
          %v1025 = vld [vmem:[#allocation2 + $0x88] sm:$0xff]
          %v1026 = vld [vmem:[#allocation2 + $0x90] sm:$0xff]
          %v1027 = vld [vmem:[#allocation2 + $0x98] sm:$0xff]
          %v1028 = vld [vmem:[#allocation2 + $0xa0] sm:$0xff]
          %v1029 = vld [vmem:[#allocation2 + $0xa8] sm:$0xff]
          %v1030 = vld [vmem:[#allocation2 + $0xb0] sm:$0xff]
          %v1031 = vld [vmem:[#allocation2 + $0xb8] sm:$0xff]
          %v1032 = vld [vmem:[#allocation2 + $0xc0] sm:$0xff]
          %v1033 = vld [vmem:[#allocation2 + $0xc8] sm:$0xff]
          %v1034 = vld [vmem:[#allocation2 + $0xd0] sm:$0xff]
          %v1035 = vld [vmem:[#allocation2 + $0xd8] sm:$0xff]
          %v1036 = vld [vmem:[#allocation2 + $0xe0] sm:$0xff]
          %v1037 = vld [vmem:[#allocation2 + $0xe8] sm:$0xff]
          %v1038 = vld [vmem:[#allocation2 + $0xf0] sm:$0xff]
          %v1039 = vld [vmem:[#allocation2 + $0xf8] sm:$0xff]
          %v1040 = vld [vmem:[#allocation2 + $0x100] sm:$0xff]
          %v1041 = vld [vmem:[#allocation2 + $0x108] sm:$0xff]
          %v1042 = vld [vmem:[#allocation2 + $0x110] sm:$0xff]
          %v1043 = vld [vmem:[#allocation2 + $0x118] sm:$0xff]
          %v1044 = vld [vmem:[#allocation2 + $0x120] sm:$0xff]
          %v1045 = vld [vmem:[#allocation2 + $0x128] sm:$0xff]
          %v1046 = vld [vmem:[#allocation2 + $0x130] sm:$0xff]
          %v1047 = vld [vmem:[#allocation2 + $0x138] sm:$0xff]
          %v1048 = vld [vmem:[#allocation2 + $0x140] sm:$0xff]
          %v1049 = vld [vmem:[#allocation2 + $0x148] sm:$0xff]
          %v1050 = vld [vmem:[#allocation2 + $0x150] sm:$0xff]
          %v1051 = vld [vmem:[#allocation2 + $0x158] sm:$0xff]
          %v1052 = vld [vmem:[#allocation2 + $0x160] sm:$0xff]
          %v1053 = vld [vmem:[#allocation2 + $0x168] sm:$0xff]
          %v1054 = vld [vmem:[#allocation2 + $0x170] sm:$0xff]
          %v1055 = vld [vmem:[#allocation2 + $0x178] sm:$0xff]
          %v1056 = vld [vmem:[#allocation2 + $0x180] sm:$0xff]
          %v1057 = vld [vmem:[#allocation2 + $0x188] sm:$0xff]
          %v1058 = vld [vmem:[#allocation2 + $0x190] sm:$0xff]
          %v1059 = vld [vmem:[#allocation2 + $0x198] sm:$0xff]
          %v1060 = vld [vmem:[#allocation2 + $0x1a0] sm:$0xff]
          %v1061 = vld [vmem:[#allocation2 + $0x1a8] sm:$0xff]
          %v1062 = vld [vmem:[#allocation2 + $0x1b0] sm:$0xff]
          %v1063 = vld [vmem:[#allocation2 + $0x1b8] sm:$0xff]
          %v1064 = vld [vmem:[#allocation2 + $0x1c0] sm:$0xff]
          %v1065 = vld [vmem:[#allocation2 + $0x1c8] sm:$0xff]
          %v1066 = vld [vmem:[#allocation2 + $0x1d0] sm:$0xff]
          %v1067 = vld [vmem:[#allocation2 + $0x1d8] sm:$0xff]
          %v1068 = vld [vmem:[#allocation2 + $0x1e0] sm:$0xff]
          %v1069 = vld [vmem:[#allocation2 + $0x1e8] sm:$0xff]
          %v1070 = vld [vmem:[#allocation2 + $0x1f0] sm:$0xff]
          %v1071 = vld [vmem:[#allocation2 + $0x1f8] sm:$0xff]
          %1072 = vst [vmem:[%s342] sm:$0xff] %v1008
          %1073 = vst [vmem:[%s342 + $0x8] sm:$0xff] %v1009
          %1074 = vst [vmem:[%s342 + $0x10] sm:$0xff] %v1010
          %1075 = vst [vmem:[%s342 + $0x18] sm:$0xff] %v1011
          %1076 = vst [vmem:[%s342 + $0x20] sm:$0xff] %v1012
          %1077 = vst [vmem:[%s342 + $0x28] sm:$0xff] %v1013
          %1078 = vst [vmem:[%s342 + $0x30] sm:$0xff] %v1014
          %1079 = vst [vmem:[%s342 + $0x38] sm:$0xff] %v1015
          %1080 = vst [vmem:[%s342 + $0x40] sm:$0xff] %v1016
          %1081 = vst [vmem:[%s342 + $0x48] sm:$0xff] %v1017
          %1082 = vst [vmem:[%s342 + $0x50] sm:$0xff] %v1018
          %1083 = vst [vmem:[%s342 + $0x58] sm:$0xff] %v1019
          %1084 = vst [vmem:[%s342 + $0x60] sm:$0xff] %v1020
          %1085 = vst [vmem:[%s342 + $0x68] sm:$0xff] %v1021
          %1086 = vst [vmem:[%s342 + $0x70] sm:$0xff] %v1022
          %1087 = vst [vmem:[%s342 + $0x78] sm:$0xff] %v1023
          %1088 = vst [vmem:[%s342 + $0x80] sm:$0xff] %v1024
          %1089 = vst [vmem:[%s342 + $0x88] sm:$0xff] %v1025
          %1090 = vst [vmem:[%s342 + $0x90] sm:$0xff] %v1026
          %1091 = vst [vmem:[%s342 + $0x98] sm:$0xff] %v1027
          %1092 = vst [vmem:[%s342 + $0xa0] sm:$0xff] %v1028
          %1093 = vst [vmem:[%s342 + $0xa8] sm:$0xff] %v1029
          %1094 = vst [vmem:[%s342 + $0xb0] sm:$0xff] %v1030
          %1095 = vst [vmem:[%s342 + $0xb8] sm:$0xff] %v1031
          %1096 = vst [vmem:[%s342 + $0xc0] sm:$0xff] %v1032
          %1097 = vst [vmem:[%s342 + $0xc8] sm:$0xff] %v1033
          %1098 = vst [vmem:[%s342 + $0xd0] sm:$0xff] %v1034
          %1099 = vst [vmem:[%s342 + $0xd8] sm:$0xff] %v1035
          %1100 = vst [vmem:[%s342 + $0xe0] sm:$0xff] %v1036
          %1101 = vst [vmem:[%s342 + $0xe8] sm:$0xff] %v1037
          %1102 = vst [vmem:[%s342 + $0xf0] sm:$0xff] %v1038
          %1103 = vst [vmem:[%s342 + $0xf8] sm:$0xff] %v1039
          %1104 = vst [vmem:[%s342 + $0x100] sm:$0xff] %v1040
          %1105 = vst [vmem:[%s342 + $0x108] sm:$0xff] %v1041
          %1106 = vst [vmem:[%s342 + $0x110] sm:$0xff] %v1042
          %1107 = vst [vmem:[%s342 + $0x118] sm:$0xff] %v1043
          %1108 = vst [vmem:[%s342 + $0x120] sm:$0xff] %v1044
          %1109 = vst [vmem:[%s342 + $0x128] sm:$0xff] %v1045
          %1110 = vst [vmem:[%s342 + $0x130] sm:$0xff] %v1046
          %1111 = vst [vmem:[%s342 + $0x138] sm:$0xff] %v1047
          %1112 = vst [vmem:[%s342 + $0x140] sm:$0xff] %v1048
          %1113 = vst [vmem:[%s342 + $0x148] sm:$0xff] %v1049
          %1114 = vst [vmem:[%s342 + $0x150] sm:$0xff] %v1050
          %1115 = vst [vmem:[%s342 + $0x158] sm:$0xff] %v1051
          %1116 = vst [vmem:[%s342 + $0x160] sm:$0xff] %v1052
          %1117 = vst [vmem:[%s342 + $0x168] sm:$0xff] %v1053
          %1118 = vst [vmem:[%s342 + $0x170] sm:$0xff] %v1054
          %1119 = vst [vmem:[%s342 + $0x178] sm:$0xff] %v1055
          %1120 = vst [vmem:[%s342 + $0x180] sm:$0xff] %v1056
          %1121 = vst [vmem:[%s342 + $0x188] sm:$0xff] %v1057
          %1122 = vst [vmem:[%s342 + $0x190] sm:$0xff] %v1058
          %1123 = vst [vmem:[%s342 + $0x198] sm:$0xff] %v1059
          %1124 = vst [vmem:[%s342 + $0x1a0] sm:$0xff] %v1060
          %1125 = vst [vmem:[%s342 + $0x1a8] sm:$0xff] %v1061
          %1126 = vst [vmem:[%s342 + $0x1b0] sm:$0xff] %v1062
          %1127 = vst [vmem:[%s342 + $0x1b8] sm:$0xff] %v1063
          %1128 = vst [vmem:[%s342 + $0x1c0] sm:$0xff] %v1064
          %1129 = vst [vmem:[%s342 + $0x1c8] sm:$0xff] %v1065
          %1130 = vst [vmem:[%s342 + $0x1d0] sm:$0xff] %v1066
          %1131 = vst [vmem:[%s342 + $0x1d8] sm:$0xff] %v1067
          %1132 = vst [vmem:[%s342 + $0x1e0] sm:$0xff] %v1068
          %1133 = vst [vmem:[%s342 + $0x1e8] sm:$0xff] %v1069
          %1134 = vst [vmem:[%s342 + $0x1f0] sm:$0xff] %v1070
          %1135 = vst [vmem:[%s342 + $0x1f8] sm:$0xff] %v1071
        $region59: #{compute_w_sp_t.3} parent=46 // pred_fallthru
          _
        %s1136 = sand.u32 %s101, 1
        %s1137 = scalar_lea.sflag [#allocation5], %s1136
        %s1138 = sand.u32 %s101, 1
        %s1139 = smul.addr %s1138, 512
        %s1140 = scalar_lea.vmem [#allocation4], %s1139
        // Predicated region
        $region60: #{compute_w_sp_t.3} parent=46 // pred_check
          %p1141 = pneg %p111
        $region61: #{compute_w_sp_t.3} parent=46 // pred_check_branch
          %1143 = sbr.rel (%p1141) target = $region63
        $region62: #{compute_w_sp_t.3} parent=46 // pred_region
          %s1144 = smul.u32 32, %s21
          %s1145 = smul.u32 2, %s22
          %s1147 = ssub.s32 8192, 8192
          %1148 = vsyncadd %s1137, %s1147
          %s1149 = smul.addr %s1144, 2
          %s1150 = sadd.s32 %s1145, %s1149
          %s1151 = smul.addr %s1150, 128
          %s1152 = scalar_lea.hbm %s2, %s1151
          %s1153 = sshll.u32 %s1140, 4
          %s1154 = int_to_ptr.vmem [resolvable:$true] %s1153
          %1159 = dma.vmem_to_hbm [thread:$0]  %s1154, 8192, %s1152, %s1137, 256, 256, 16
        $region63: #{compute_w_sp_t.3} parent=46 // pred_fallthru
          _
      $region47: #{compute_w_sp_t.3} parent=5 // pred_fallthru
        _
      %p1160 = scmp.le.s32.totalorder 2, %s11
      // Predicated region
      $region64: #{compute_w_sp_t.3} parent=5 // pred_check
        %p1161 = pneg %p1160
      $region65: #{compute_w_sp_t.3} parent=5 // pred_check_branch
        %1163 = sbr.rel (%p1161) target = $region67
      $region66: #{compute_w_sp_t.3} parent=5 // pred_region
        %s1164 = ssub.s32 %s11, 2
        // Predicated region
        $region68: #{compute_w_sp_t.3} parent=66 // pred_check
          %p1165 = pneg %p117
        $region69: #{compute_w_sp_t.3} parent=66 // pred_check_branch
          %1167 = sbr.rel (%p1165) target = $region71
        $region70: #{compute_w_sp_t.3} parent=66 // pred_region
          %s1168 = sand.u32 %s102, 1
          %s1169 = scalar_lea.sflag [#allocation5], %s1168
          %s1170 = sand.u32 %s102, 1
          %s1171 = smul.addr %s1170, 512
          %s1172 = scalar_lea.vmem [#allocation4], %s1171
          %1173 = dma.done %s1169, 8192
        $region71: #{compute_w_sp_t.3} parent=66 // pred_fallthru
          _
      $region67: #{compute_w_sp_t.3} parent=5 // pred_fallthru
        _
    $region6: #{compute_w_sp_t.3} parent=1 // loop_footer
      %s15 = sadd.s32 1, %s11
    $region7: #{compute_w_sp_t.3} parent=1 // loop_footer_branch
      %10 = sbr.rel target = $region3
    $region8: #{compute_w_sp_t.3} parent=1 // loop_exit
      _
    %1174 = vsyncpa [#allocation5], 1
    %s1175 = scalar_lea.sflag [#allocation5], 1
    %1176 = vsyncpa %s1175, 1

// kernel: compute_w_sp_t.2
$region0: #{compute_w_sp_t.2}
  #allocation0 [shape = 'u32[]', space=smem, size = 0x4, offset = 0x4, fixed_abs, tag = 'smem constant byte address 0x4 - core index']
  #allocation1 [shape = 'u32[144,128]{1,0:T(1,128)}', space=vmem, size = 0x12000, scoped, tag = 'internal scratch']
  #allocation2 [shape = 'f32[256,256]{1,0:T(8,128)}', space=vmem, size = 0x40000, scoped, tag = 'scratch operand']
  %s0 = inlined_call_operand.hbm [shape: f32[512,256], index: 0, kind: input, shape index: {}]
  %s1 = inlined_call_operand.hbm [shape: s8[512,256], index: 1, kind: input, shape index: {}]
  %s2 = inlined_call_operand.hbm [shape: f32[256,256], index: 2, kind: input, shape index: {}]
  %s3 = inlined_call_operand.vmem [shape: f32[512,256], index: 3, kind: output, shape index: {}]
  %s4 = sld [smem:[#allocation0]]
  $region65: #{compute_w_sp_t.2} parent=0
    _
  %s6 = ssub.s32 1, %s4
  %s7 = scalar_select 0, %s6, %s4
  $region1: #{compute_w_sp_t.2} parent=0
    #allocation3 [shape = 'u8[524288]{0}', space=vmem, size = 0x80000, scoped, tag = 'input window, operand 0']
    #allocation4 [shape = 's32[2]{0}', space=sflag, size = 0x8, scoped, tag = 'scoped memory for compute_w_sp_t.2']
    #allocation5 [shape = 'u8[131072]{0}', space=vmem, size = 0x20000, scoped, tag = 'input window, operand 1']
    #allocation6 [shape = 's32[2]{0}', space=sflag, size = 0x8, scoped, tag = 'scoped memory for compute_w_sp_t.2']
    #allocation7 [shape = 'u8[262144]{0}', space=vmem, size = 0x40000, scoped, tag = 'input window, operand 2, single buffered']
    %8 = vsyncpa [#allocation4], 0
    %s9 = scalar_lea.sflag [#allocation4], 1
    %10 = vsyncpa %s9, 0
    %11 = vsyncpa [#allocation6], 0
    %s12 = scalar_lea.sflag [#allocation6], 1
    %13 = vsyncpa %s12, 0
    loop: start=0, step=1, limit=4
    $region2: #{compute_w_sp_t.2} parent=1 // loop_pre_header
      _
    $region3: #{compute_w_sp_t.2} parent=1 // loop_header
      %s15 = sphi 0, %s19
      %p16 = scmp.ge.s32.totalorder %s15, 4
      %s22 = sphi 0, %s41
      %s23 = sphi 0, %s37
      %s24 = sphi 0, %s33
      %s25 = sphi 0, %s22
      %s26 = sphi 0, %s23
      %s27 = sphi 0, %s24
      %s28 = sphi 0, %s25
      %s29 = sphi 0, %s26
      %s30 = sphi 0, %s27
      %s46 = sphi 0, %s48
      %s49 = sphi 0, %s46
      %s50 = sphi 0, %s49
      %s66 = sphi 0, %s50
      %s74 = sphi 0, %s76
      %s77 = sphi 0, %s74
      %s78 = sphi 0, %s77
      %s94 = sphi 0, %s78
      %s102 = sphi 0, %s104
      %s105 = sphi 0, %s102
      %s106 = sphi 0, %s105
      %s122 = sphi 0, %s106
      %s130 = sphi 0, %s132
      %s133 = sphi 0, %s130
      %s134 = sphi 0, %s133
      %s150 = sphi 0, %s134
    $region4: #{compute_w_sp_t.2} parent=1 // loop_header_branch
      %18 = sbr.rel (%p16) target = $region8
    $region5: #{compute_w_sp_t.2} parent=1 // loop_body
      %s20 = ssub.s32 %s15, 1
      %s21 = ssub.s32 %s15, 2
      %s31 = sadd.s32 1, %s24
      %p32 = scmp.ge.s32.totalorder %s31, 1
      %s33 = scalar_select %p32, 0, %s31
      %s34 = sadd.s32 1, %s23
      %s35 = scalar_select %p32, %s34, %s23
      %p36 = scmp.ge.s32.totalorder %s35, 1
      %s37 = scalar_select %p36, 0, %s35
      %s38 = sadd.s32 1, %s22
      %s39 = scalar_select %p36, %s38, %s22
      %p40 = scmp.ge.s32.totalorder %s39, 2
      %s41 = scalar_select %p40, 0, %s39
      %s42 = ssub.s32 %s22, %s41
      %s43 = ssub.s32 %s24, %s33
      %s44 = sor.u32 %s42, %s43
      %p45 = scmp.eq.s32.totalorder %s44, 0
      %s47 = sadd.s32 %s46, 1
      %s48 = scalar_select %p45, %s46, %s47
      %p51 = pneg %p45
      %p52 = scmp.eq.s32.totalorder %s15, 1
      %p53 = por %p51, %p52
      %p54 = scmp.ne.s32.totalorder %s46, %s49
      %p55 = scmp.eq.s32.totalorder %s15, 0
      %p56 = por %p54, %p55
      %p57 = scmp.ne.s32.totalorder %s46, %s49
      %p58 = scmp.eq.s32.totalorder %s20, 1
      %p59 = por %p57, %p58
      %p60 = scmp.ne.s32.totalorder %s49, %s50
      %p61 = scmp.eq.s32.totalorder %s20, 0
      %p62 = por %p60, %p61
      %p63 = scmp.ne.s32.totalorder %s49, %s50
      %p64 = scmp.eq.s32.totalorder %s21, 1
      %p65 = por %p63, %p64
      %p67 = scmp.ne.s32.totalorder %s50, %s66
      %p68 = scmp.eq.s32.totalorder %s21, 0
      %p69 = por %p67, %p68
      %s70 = ssub.s32 %s22, %s41
      %s71 = ssub.s32 %s24, %s33
      %s72 = sor.u32 %s70, %s71
      %p73 = scmp.eq.s32.totalorder %s72, 0
      %s75 = sadd.s32 %s74, 1
      %s76 = scalar_select %p73, %s74, %s75
      %p79 = pneg %p73
      %p80 = scmp.eq.s32.totalorder %s15, 1
      %p81 = por %p79, %p80
      %p82 = scmp.ne.s32.totalorder %s74, %s77
      %p83 = scmp.eq.s32.totalorder %s15, 0
      %p84 = por %p82, %p83
      %p85 = scmp.ne.s32.totalorder %s74, %s77
      %p86 = scmp.eq.s32.totalorder %s20, 1
      %p87 = por %p85, %p86
      %p88 = scmp.ne.s32.totalorder %s77, %s78
      %p89 = scmp.eq.s32.totalorder %s20, 0
      %p90 = por %p88, %p89
      %p91 = scmp.ne.s32.totalorder %s77, %s78
      %p92 = scmp.eq.s32.totalorder %s21, 1
      %p93 = por %p91, %p92
      %p95 = scmp.ne.s32.totalorder %s78, %s94
      %p96 = scmp.eq.s32.totalorder %s21, 0
      %p97 = por %p95, %p96
      %s98 = ssub.s32 %s24, %s33
      %s99 = ssub.s32 %s23, %s37
      %s100 = sor.u32 %s98, %s99
      %p101 = scmp.eq.s32.totalorder %s100, 0
      %s103 = sadd.s32 %s102, 1
      %s104 = scalar_select %p101, %s102, %s103
      %p107 = pneg %p101
      %p108 = scmp.eq.s32.totalorder %s15, 1
      %p109 = por %p107, %p108
      %p110 = scmp.ne.s32.totalorder %s102, %s105
      %p111 = scmp.eq.s32.totalorder %s15, 0
      %p112 = por %p110, %p111
      %p113 = scmp.ne.s32.totalorder %s102, %s105
      %p114 = scmp.eq.s32.totalorder %s20, 1
      %p115 = por %p113, %p114
      %p116 = scmp.ne.s32.totalorder %s105, %s106
      %p117 = scmp.eq.s32.totalorder %s20, 0
      %p118 = por %p116, %p117
      %p119 = scmp.ne.s32.totalorder %s105, %s106
      %p120 = scmp.eq.s32.totalorder %s21, 1
      %p121 = por %p119, %p120
      %p123 = scmp.ne.s32.totalorder %s106, %s122
      %p124 = scmp.eq.s32.totalorder %s21, 0
      %p125 = por %p123, %p124
      %s126 = ssub.s32 %s22, %s41
      %s127 = ssub.s32 %s23, %s37
      %s128 = sor.u32 %s126, %s127
      %p129 = scmp.eq.s32.totalorder %s128, 0
      %s131 = sadd.s32 %s130, 1
      %s132 = scalar_select %p129, %s130, %s131
      %p135 = pneg %p129
      %p136 = scmp.eq.s32.totalorder %s15, 1
      %p137 = por %p135, %p136
      %p138 = scmp.ne.s32.totalorder %s130, %s133
      %p139 = scmp.eq.s32.totalorder %s15, 0
      %p140 = por %p138, %p139
      %p141 = scmp.ne.s32.totalorder %s130, %s133
      %p142 = scmp.eq.s32.totalorder %s20, 1
      %p143 = por %p141, %p142
      %p144 = scmp.ne.s32.totalorder %s133, %s134
      %p145 = scmp.eq.s32.totalorder %s20, 0
      %p146 = por %p144, %p145
      %p147 = scmp.ne.s32.totalorder %s133, %s134
      %p148 = scmp.eq.s32.totalorder %s21, 1
      %p149 = por %p147, %p148
      %p151 = scmp.ne.s32.totalorder %s134, %s150
      %p152 = scmp.eq.s32.totalorder %s21, 0
      %p153 = por %p151, %p152
      %p154 = scmp.le.s32.totalorder 1, %s15
      %p155 = scmp.lt.s32.totalorder %s15, 3
      %p156 = pnand %p154, %p155
      %p157 = pneg %p156
      // Predicated region
      $region9: #{compute_w_sp_t.2} parent=5 // pred_check
        _
      $region10: #{compute_w_sp_t.2} parent=5 // pred_check_branch
        %159 = sbr.rel (%p156) target = $region12
      $region11: #{compute_w_sp_t.2} parent=5 // pred_region
        %s160 = ssub.s32 %s15, 1
        // Predicated region
        $region13: #{compute_w_sp_t.2} parent=11 // pred_check
          %p161 = pneg %p118
        $region14: #{compute_w_sp_t.2} parent=11 // pred_check_branch
          %163 = sbr.rel (%p161) target = $region16
        $region15: #{compute_w_sp_t.2} parent=11 // pred_region
          %s164 = smul.u32 32, %s27
          %s165 = smul.u32 2, %s26
          %s167 = ssub.s32 8192, 8192
          %168 = vsyncadd [#allocation6], %s167
          %s169 = smul.addr %s164, 2
          %s170 = sadd.s32 %s165, %s169
          %s171 = smul.addr %s170, 128
          %s172 = scalar_lea.hbm %s2, %s171
          %s173 = sshll.u32 [#allocation7], 4
          %s174 = int_to_ptr.vmem [resolvable:$true] %s173
          %179 = dma.hbm_to_vmem [thread:$0]  %s172, 8192, %s174, [#allocation6], 256, 256, 16
        $region16: #{compute_w_sp_t.2} parent=11 // pred_fallthru
          _
      $region12: #{compute_w_sp_t.2} parent=5 // pred_fallthru
        _
      %p180 = scmp.lt.s32.totalorder %s15, 2
      // Predicated region
      $region17: #{compute_w_sp_t.2} parent=5 // pred_check
        %p181 = pneg %p180
      $region18: #{compute_w_sp_t.2} parent=5 // pred_check_branch
        %183 = sbr.rel (%p181) target = $region20
      $region19: #{compute_w_sp_t.2} parent=5 // pred_region
        // Predicated region
        $region21: #{compute_w_sp_t.2} parent=19 // pred_check
          %p184 = pneg %p56
        $region22: #{compute_w_sp_t.2} parent=19 // pred_check_branch
          %186 = sbr.rel (%p184) target = $region24
        $region23: #{compute_w_sp_t.2} parent=19 // pred_region
          %s187 = sand.u32 %s46, 1
          %s188 = scalar_lea.sflag [#allocation4], %s187
          %s189 = sand.u32 %s46, 1
          %s190 = smul.addr %s189, 512
          %s191 = scalar_lea.vmem [#allocation3], %s190
          %s192 = smul.u32 32, %s22
          %s193 = smul.u32 2, %s24
          %s195 = ssub.s32 8192, 8192
          %196 = vsyncadd %s188, %s195
          %s197 = smul.addr %s192, 2
          %s198 = sadd.s32 %s193, %s197
          %s199 = smul.addr %s198, 128
          %s200 = scalar_lea.hbm %s0, %s199
          %s201 = sshll.u32 %s191, 4
          %s202 = int_to_ptr.vmem [resolvable:$true] %s201
          %207 = dma.hbm_to_vmem [thread:$0]  %s200, 8192, %s202, %s188, 256, 256, 16
        $region24: #{compute_w_sp_t.2} parent=19 // pred_fallthru
          _
        // Predicated region
        $region25: #{compute_w_sp_t.2} parent=19 // pred_check
          %p208 = pneg %p84
        $region26: #{compute_w_sp_t.2} parent=19 // pred_check_branch
          %210 = sbr.rel (%p208) target = $region28
        $region27: #{compute_w_sp_t.2} parent=19 // pred_region
          %s211 = sand.u32 %s15, 1
          %s212 = scalar_lea.sflag [#allocation6], %s211
          %s213 = sand.u32 %s74, 1
          %s214 = smul.addr %s213, 128
          %s215 = scalar_lea.vmem [#allocation5], %s214
          %s216 = smul.u32 8, %s22
          %s217 = smul.u32 2, %s24
          %s219 = ssub.s32 2048, 2048
          %220 = vsyncadd %s212, %s219
          %s221 = smul.addr %s216, 2
          %s222 = sadd.s32 %s217, %s221
          %s223 = smul.addr %s222, 128
          %s224 = scalar_lea.hbm %s1, %s223
          %s225 = sshll.u32 %s215, 4
          %s226 = int_to_ptr.vmem [resolvable:$true] %s225
          %231 = dma.hbm_to_vmem [thread:$0]  %s224, 2048, %s226, %s212, 256, 256, 16
        $region28: #{compute_w_sp_t.2} parent=19 // pred_fallthru
          _
      $region20: #{compute_w_sp_t.2} parent=5 // pred_fallthru
        _
      %p232 = scmp.le.s32.totalorder 1, %s15
      %p233 = scmp.lt.s32.totalorder %s15, 3
      %p234 = pnand %p232, %p233
      %p235 = pneg %p234
      // Predicated region
      $region29: #{compute_w_sp_t.2} parent=5 // pred_check
        _
      $region30: #{compute_w_sp_t.2} parent=5 // pred_check_branch
        %237 = sbr.rel (%p234) target = $region32
      $region31: #{compute_w_sp_t.2} parent=5 // pred_region
        %s238 = ssub.s32 %s15, 1
        %s239 = sand.u32 %s49, 1
        %s240 = scalar_lea.sflag [#allocation4], %s239
        %s241 = sand.u32 %s49, 1
        %s242 = smul.addr %s241, 512
        %s243 = scalar_lea.vmem [#allocation3], %s242
        // Predicated region
        $region33: #{compute_w_sp_t.2} parent=31 // pred_check
          %p244 = pneg %p62
        $region34: #{compute_w_sp_t.2} parent=31 // pred_check_branch
          %246 = sbr.rel (%p244) target = $region36
        $region35: #{compute_w_sp_t.2} parent=31 // pred_region
          %247 = dma.done %s240, 8192
        $region36: #{compute_w_sp_t.2} parent=31 // pred_fallthru
          _
        %s248 = sand.u32 %s20, 1
        %s249 = scalar_lea.sflag [#allocation6], %s248
        %s250 = sand.u32 %s77, 1
        %s251 = smul.addr %s250, 128
        %s252 = scalar_lea.vmem [#allocation5], %s251
        // Predicated region
        $region37: #{compute_w_sp_t.2} parent=31 // pred_check
          %p253 = pneg %p90
        $region38: #{compute_w_sp_t.2} parent=31 // pred_check_branch
          %255 = sbr.rel (%p253) target = $region40
        $region39: #{compute_w_sp_t.2} parent=31 // pred_region
          %256 = dma.done %s249, 2048
        $region40: #{compute_w_sp_t.2} parent=31 // pred_fallthru
          _
        // Predicated region
        $region41: #{compute_w_sp_t.2} parent=31 // pred_check
          %p257 = pneg %p118
        $region42: #{compute_w_sp_t.2} parent=31 // pred_check_branch
          %259 = sbr.rel (%p257) target = $region44
        $region43: #{compute_w_sp_t.2} parent=31 // pred_region
          %260 = dma.done [#allocation6], 8192
        $region44: #{compute_w_sp_t.2} parent=31 // pred_fallthru
          _
        %s261 = sand.u32 %s49, 1
        %s262 = scalar_lea.sflag [#allocation4], %s261
        %s263 = sand.u32 %s49, 1
        %s264 = smul.addr %s263, 512
        %s265 = scalar_lea.vmem [#allocation3], %s264
        %p266 = pneg %p62
        %p267 = pneg %p59
        %s268 = sand.u32 %s20, 1
        %s269 = scalar_lea.sflag [#allocation6], %s268
        %s270 = sand.u32 %s77, 1
        %s271 = smul.addr %s270, 128
        %s272 = scalar_lea.vmem [#allocation5], %s271
        %p273 = pneg %p90
        %p274 = pneg %p87
        %p275 = pneg %p118
        %p276 = pneg %p115
        %p277 = pneg %p146
        %p278 = pneg %p143
        %s279 = smul.u32 32, %s25
        %s280 = smul.u32 2, %s26
        %p281 = scmp.lt.s32.totalorder %s279, 63
        %s282 = scalar_select %p281, %s279, 63
        %p283 = scmp.lt.s32.totalorder %s280, 1
        %s284 = scalar_select %p283, %s280, 1
        %s285 = smul.addr %s282, 2
        %s286 = sadd.s32 %s284, %s285
        %s287 = smul.addr %s286, 8
        %s288 = scalar_lea.vmem %s3, %s287
        %s289 = smul.u32 32, %s25
        %s290 = smul.u32 2, %s27
        %s291 = smul.u32 8, %s25
        %s292 = smul.u32 2, %s27
        %s293 = smul.u32 32, %s27
        %s294 = smul.u32 2, %s26
        %s295 = smul.u32 32, %s25
        %s296 = smul.u32 2, %s26
        %p297 = scmp.lt.s32.totalorder %s295, 63
        %s298 = scalar_select %p297, %s295, 63
        %p299 = scmp.lt.s32.totalorder %s296, 1
        %s300 = scalar_select %p299, %s296, 1
        %s301 = smul.addr %s298, 2
        %s302 = sadd.s32 %s300, %s301
        %s303 = smul.addr %s302, 8
        %s304 = scalar_lea.vmem %s3, %s303
        %s305 = smul.u32 32, %s25
        %s306 = smul.u32 2, %s26
        %p309 = scmp.eq.s32.totalorder %s27, 0
        // Predicated region
        $region45: #{compute_w_sp_t.2} parent=31 // pred_check
          %p310 = pneg %p309
        $region46: #{compute_w_sp_t.2} parent=31 // pred_check_branch
          %312 = sbr.rel (%p310) target = $region48
        $region47: #{compute_w_sp_t.2} parent=31 // pred_region
          %313 = vst [vmem:[#allocation2] sm:$0xff] 0.0
          %314 = vst [vmem:[#allocation2 + $0x8] sm:$0xff] 0.0
          %315 = vst [vmem:[#allocation2 + $0x10] sm:$0xff] 0.0
          %316 = vst [vmem:[#allocation2 + $0x18] sm:$0xff] 0.0
          %317 = vst [vmem:[#allocation2 + $0x20] sm:$0xff] 0.0
          %318 = vst [vmem:[#allocation2 + $0x28] sm:$0xff] 0.0
          %319 = vst [vmem:[#allocation2 + $0x30] sm:$0xff] 0.0
          %320 = vst [vmem:[#allocation2 + $0x38] sm:$0xff] 0.0
          %321 = vst [vmem:[#allocation2 + $0x40] sm:$0xff] 0.0
          %322 = vst [vmem:[#allocation2 + $0x48] sm:$0xff] 0.0
          %323 = vst [vmem:[#allocation2 + $0x50] sm:$0xff] 0.0
          %324 = vst [vmem:[#allocation2 + $0x58] sm:$0xff] 0.0
          %325 = vst [vmem:[#allocation2 + $0x60] sm:$0xff] 0.0
          %326 = vst [vmem:[#allocation2 + $0x68] sm:$0xff] 0.0
          %327 = vst [vmem:[#allocation2 + $0x70] sm:$0xff] 0.0
          %328 = vst [vmem:[#allocation2 + $0x78] sm:$0xff] 0.0
          %329 = vst [vmem:[#allocation2 + $0x80] sm:$0xff] 0.0
          %330 = vst [vmem:[#allocation2 + $0x88] sm:$0xff] 0.0
          %331 = vst [vmem:[#allocation2 + $0x90] sm:$0xff] 0.0
          %332 = vst [vmem:[#allocation2 + $0x98] sm:$0xff] 0.0
          %333 = vst [vmem:[#allocation2 + $0xa0] sm:$0xff] 0.0
          %334 = vst [vmem:[#allocation2 + $0xa8] sm:$0xff] 0.0
          %335 = vst [vmem:[#allocation2 + $0xb0] sm:$0xff] 0.0
          %336 = vst [vmem:[#allocation2 + $0xb8] sm:$0xff] 0.0
          %337 = vst [vmem:[#allocation2 + $0xc0] sm:$0xff] 0.0
          %338 = vst [vmem:[#allocation2 + $0xc8] sm:$0xff] 0.0
          %339 = vst [vmem:[#allocation2 + $0xd0] sm:$0xff] 0.0
          %340 = vst [vmem:[#allocation2 + $0xd8] sm:$0xff] 0.0
          %341 = vst [vmem:[#allocation2 + $0xe0] sm:$0xff] 0.0
          %342 = vst [vmem:[#allocation2 + $0xe8] sm:$0xff] 0.0
          %343 = vst [vmem:[#allocation2 + $0xf0] sm:$0xff] 0.0
          %344 = vst [vmem:[#allocation2 + $0xf8] sm:$0xff] 0.0
          %345 = vst [vmem:[#allocation2 + $0x100] sm:$0xff] 0.0
          %346 = vst [vmem:[#allocation2 + $0x108] sm:$0xff] 0.0
          %347 = vst [vmem:[#allocation2 + $0x110] sm:$0xff] 0.0
          %348 = vst [vmem:[#allocation2 + $0x118] sm:$0xff] 0.0
          %349 = vst [vmem:[#allocation2 + $0x120] sm:$0xff] 0.0
          %350 = vst [vmem:[#allocation2 + $0x128] sm:$0xff] 0.0
          %351 = vst [vmem:[#allocation2 + $0x130] sm:$0xff] 0.0
          %352 = vst [vmem:[#allocation2 + $0x138] sm:$0xff] 0.0
          %353 = vst [vmem:[#allocation2 + $0x140] sm:$0xff] 0.0
          %354 = vst [vmem:[#allocation2 + $0x148] sm:$0xff] 0.0
          %355 = vst [vmem:[#allocation2 + $0x150] sm:$0xff] 0.0
          %356 = vst [vmem:[#allocation2 + $0x158] sm:$0xff] 0.0
          %357 = vst [vmem:[#allocation2 + $0x160] sm:$0xff] 0.0
          %358 = vst [vmem:[#allocation2 + $0x168] sm:$0xff] 0.0
          %359 = vst [vmem:[#allocation2 + $0x170] sm:$0xff] 0.0
          %360 = vst [vmem:[#allocation2 + $0x178] sm:$0xff] 0.0
          %361 = vst [vmem:[#allocation2 + $0x180] sm:$0xff] 0.0
          %362 = vst [vmem:[#allocation2 + $0x188] sm:$0xff] 0.0
          %363 = vst [vmem:[#allocation2 + $0x190] sm:$0xff] 0.0
          %364 = vst [vmem:[#allocation2 + $0x198] sm:$0xff] 0.0
          %365 = vst [vmem:[#allocation2 + $0x1a0] sm:$0xff] 0.0
          %366 = vst [vmem:[#allocation2 + $0x1a8] sm:$0xff] 0.0
          %367 = vst [vmem:[#allocation2 + $0x1b0] sm:$0xff] 0.0
          %368 = vst [vmem:[#allocation2 + $0x1b8] sm:$0xff] 0.0
          %369 = vst [vmem:[#allocation2 + $0x1c0] sm:$0xff] 0.0
          %370 = vst [vmem:[#allocation2 + $0x1c8] sm:$0xff] 0.0
          %371 = vst [vmem:[#allocation2 + $0x1d0] sm:$0xff] 0.0
          %372 = vst [vmem:[#allocation2 + $0x1d8] sm:$0xff] 0.0
          %373 = vst [vmem:[#allocation2 + $0x1e0] sm:$0xff] 0.0
          %374 = vst [vmem:[#allocation2 + $0x1e8] sm:$0xff] 0.0
          %375 = vst [vmem:[#allocation2 + $0x1f0] sm:$0xff] 0.0
          %376 = vst [vmem:[#allocation2 + $0x1f8] sm:$0xff] 0.0
        $region48: #{compute_w_sp_t.2} parent=31 // pred_fallthru
          _
        %v377 = vld [vmem:[%s252] sm:$0xff]
        %v378 = vld [vmem:[%s252 + $0x8] sm:$0xff]
        %v379 = vld [vmem:[%s252 + $0x10] sm:$0xff]
        %v380 = vld [vmem:[%s252 + $0x18] sm:$0xff]
        %v381 = vld [vmem:[%s252 + $0x20] sm:$0xff]
        %v382 = vld [vmem:[%s252 + $0x28] sm:$0xff]
        %v383 = vld [vmem:[%s252 + $0x30] sm:$0xff]
        %v384 = vld [vmem:[%s252 + $0x38] sm:$0xff]
        %v385 = vld [vmem:[%s252 + $0x40] sm:$0xff]
        %v386 = vld [vmem:[%s252 + $0x48] sm:$0xff]
        %v387 = vld [vmem:[%s252 + $0x50] sm:$0xff]
        %v388 = vld [vmem:[%s252 + $0x58] sm:$0xff]
        %v389 = vld [vmem:[%s252 + $0x60] sm:$0xff]
        %v390 = vld [vmem:[%s252 + $0x68] sm:$0xff]
        %v391 = vld [vmem:[%s252 + $0x70] sm:$0xff]
        %v392 = vld [vmem:[%s252 + $0x78] sm:$0xff]
        %vm393 = vnez %v377
        %vm394 = vnez %v378
        %vm395 = vnez %v379
        %vm396 = vnez %v380
        %vm397 = vnez %v381
        %vm398 = vnez %v382
        %vm399 = vnez %v383
        %vm400 = vnez %v384
        %vm401 = vnez %v385
        %vm402 = vnez %v386
        %vm403 = vnez %v387
        %vm404 = vnez %v388
        %vm405 = vnez %v389
        %vm406 = vnez %v390
        %vm407 = vnez %v391
        %vm408 = vnez %v392
        %v409 = vld [vmem:[%s243] sm:$0xff]
        %v410 = vld [vmem:[%s243 + $0x8] sm:$0xff]
        %v411 = vld [vmem:[%s243 + $0x10] sm:$0xff]
        %v412 = vld [vmem:[%s243 + $0x18] sm:$0xff]
        %v413 = vld [vmem:[%s243 + $0x20] sm:$0xff]
        %v414 = vld [vmem:[%s243 + $0x28] sm:$0xff]
        %v415 = vld [vmem:[%s243 + $0x30] sm:$0xff]
        %v416 = vld [vmem:[%s243 + $0x38] sm:$0xff]
        %v417 = vld [vmem:[%s243 + $0x40] sm:$0xff]
        %v418 = vld [vmem:[%s243 + $0x48] sm:$0xff]
        %v419 = vld [vmem:[%s243 + $0x50] sm:$0xff]
        %v420 = vld [vmem:[%s243 + $0x58] sm:$0xff]
        %v421 = vld [vmem:[%s243 + $0x60] sm:$0xff]
        %v422 = vld [vmem:[%s243 + $0x68] sm:$0xff]
        %v423 = vld [vmem:[%s243 + $0x70] sm:$0xff]
        %v424 = vld [vmem:[%s243 + $0x78] sm:$0xff]
        %v425 = vld [vmem:[%s243 + $0x80] sm:$0xff]
        %v426 = vld [vmem:[%s243 + $0x88] sm:$0xff]
        %v427 = vld [vmem:[%s243 + $0x90] sm:$0xff]
        %v428 = vld [vmem:[%s243 + $0x98] sm:$0xff]
        %v429 = vld [vmem:[%s243 + $0xa0] sm:$0xff]
        %v430 = vld [vmem:[%s243 + $0xa8] sm:$0xff]
        %v431 = vld [vmem:[%s243 + $0xb0] sm:$0xff]
        %v432 = vld [vmem:[%s243 + $0xb8] sm:$0xff]
        %v433 = vld [vmem:[%s243 + $0xc0] sm:$0xff]
        %v434 = vld [vmem:[%s243 + $0xc8] sm:$0xff]
        %v435 = vld [vmem:[%s243 + $0xd0] sm:$0xff]
        %v436 = vld [vmem:[%s243 + $0xd8] sm:$0xff]
        %v437 = vld [vmem:[%s243 + $0xe0] sm:$0xff]
        %v438 = vld [vmem:[%s243 + $0xe8] sm:$0xff]
        %v439 = vld [vmem:[%s243 + $0xf0] sm:$0xff]
        %v440 = vld [vmem:[%s243 + $0xf8] sm:$0xff]
        %v441 = vld [vmem:[%s243 + $0x100] sm:$0xff]
        %v442 = vld [vmem:[%s243 + $0x108] sm:$0xff]
        %v443 = vld [vmem:[%s243 + $0x110] sm:$0xff]
        %v444 = vld [vmem:[%s243 + $0x118] sm:$0xff]
        %v445 = vld [vmem:[%s243 + $0x120] sm:$0xff]
        %v446 = vld [vmem:[%s243 + $0x128] sm:$0xff]
        %v447 = vld [vmem:[%s243 + $0x130] sm:$0xff]
        %v448 = vld [vmem:[%s243 + $0x138] sm:$0xff]
        %v449 = vld [vmem:[%s243 + $0x140] sm:$0xff]
        %v450 = vld [vmem:[%s243 + $0x148] sm:$0xff]
        %v451 = vld [vmem:[%s243 + $0x150] sm:$0xff]
        %v452 = vld [vmem:[%s243 + $0x158] sm:$0xff]
        %v453 = vld [vmem:[%s243 + $0x160] sm:$0xff]
        %v454 = vld [vmem:[%s243 + $0x168] sm:$0xff]
        %v455 = vld [vmem:[%s243 + $0x170] sm:$0xff]
        %v456 = vld [vmem:[%s243 + $0x178] sm:$0xff]
        %v457 = vld [vmem:[%s243 + $0x180] sm:$0xff]
        %v458 = vld [vmem:[%s243 + $0x188] sm:$0xff]
        %v459 = vld [vmem:[%s243 + $0x190] sm:$0xff]
        %v460 = vld [vmem:[%s243 + $0x198] sm:$0xff]
        %v461 = vld [vmem:[%s243 + $0x1a0] sm:$0xff]
        %v462 = vld [vmem:[%s243 + $0x1a8] sm:$0xff]
        %v463 = vld [vmem:[%s243 + $0x1b0] sm:$0xff]
        %v464 = vld [vmem:[%s243 + $0x1b8] sm:$0xff]
        %v465 = vld [vmem:[%s243 + $0x1c0] sm:$0xff]
        %v466 = vld [vmem:[%s243 + $0x1c8] sm:$0xff]
        %v467 = vld [vmem:[%s243 + $0x1d0] sm:$0xff]
        %v468 = vld [vmem:[%s243 + $0x1d8] sm:$0xff]
        %v469 = vld [vmem:[%s243 + $0x1e0] sm:$0xff]
        %v470 = vld [vmem:[%s243 + $0x1e8] sm:$0xff]
        %v471 = vld [vmem:[%s243 + $0x1f0] sm:$0xff]
        %v472 = vld [vmem:[%s243 + $0x1f8] sm:$0xff]
        %v473 = vsel %vm393, 16843009, 0
        %v474 = vsel %vm394, 16843009, 0
        %v475 = vsel %vm395, 16843009, 0
        %v476 = vsel %vm396, 16843009, 0
        %v477 = vsel %vm397, 16843009, 0
        %v478 = vsel %vm398, 16843009, 0
        %v479 = vsel %vm399, 16843009, 0
        %v480 = vsel %vm400, 16843009, 0
        %v481 = vsel %vm401, 16843009, 0
        %v482 = vsel %vm402, 16843009, 0
        %v483 = vsel %vm403, 16843009, 0
        %v484 = vsel %vm404, 16843009, 0
        %v485 = vsel %vm405, 16843009, 0
        %v486 = vsel %vm406, 16843009, 0
        %v487 = vsel %vm407, 16843009, 0
        %v488 = vsel %vm408, 16843009, 0
        %v489 = vunpack.c.0.s8 %v473
        %v490 = vunpack.c.0.s8 %v474
        %v491 = vunpack.c.1.s8 %v473
        %v492 = vunpack.c.1.s8 %v474
        %v493 = vunpack.c.2.s8 %v473
        %v494 = vunpack.c.2.s8 %v474
        %v495 = vunpack.c.3.s8 %v473
        %v496 = vunpack.c.3.s8 %v474
        %v497 = vunpack.c.0.s8 %v475
        %v498 = vunpack.c.0.s8 %v476
        %v499 = vunpack.c.1.s8 %v475
        %v500 = vunpack.c.1.s8 %v476
        %v501 = vunpack.c.2.s8 %v475
        %v502 = vunpack.c.2.s8 %v476
        %v503 = vunpack.c.3.s8 %v475
        %v504 = vunpack.c.3.s8 %v476
        %v505 = vunpack.c.0.s8 %v477
        %v506 = vunpack.c.0.s8 %v478
        %v507 = vunpack.c.1.s8 %v477
        %v508 = vunpack.c.1.s8 %v478
        %v509 = vunpack.c.2.s8 %v477
        %v510 = vunpack.c.2.s8 %v478
        %v511 = vunpack.c.3.s8 %v477
        %v512 = vunpack.c.3.s8 %v478
        %v513 = vunpack.c.0.s8 %v479
        %v514 = vunpack.c.0.s8 %v480
        %v515 = vunpack.c.1.s8 %v479
        %v516 = vunpack.c.1.s8 %v480
        %v517 = vunpack.c.2.s8 %v479
        %v518 = vunpack.c.2.s8 %v480
        %v519 = vunpack.c.3.s8 %v479
        %v520 = vunpack.c.3.s8 %v480
        %v521 = vunpack.c.0.s8 %v481
        %v522 = vunpack.c.0.s8 %v482
        %v523 = vunpack.c.1.s8 %v481
        %v524 = vunpack.c.1.s8 %v482
        %v525 = vunpack.c.2.s8 %v481
        %v526 = vunpack.c.2.s8 %v482
        %v527 = vunpack.c.3.s8 %v481
        %v528 = vunpack.c.3.s8 %v482
        %v529 = vunpack.c.0.s8 %v483
        %v530 = vunpack.c.0.s8 %v484
        %v531 = vunpack.c.1.s8 %v483
        %v532 = vunpack.c.1.s8 %v484
        %v533 = vunpack.c.2.s8 %v483
        %v534 = vunpack.c.2.s8 %v484
        %v535 = vunpack.c.3.s8 %v483
        %v536 = vunpack.c.3.s8 %v484
        %v537 = vunpack.c.0.s8 %v485
        %v538 = vunpack.c.0.s8 %v486
        %v539 = vunpack.c.1.s8 %v485
        %v540 = vunpack.c.1.s8 %v486
        %v541 = vunpack.c.2.s8 %v485
        %v542 = vunpack.c.2.s8 %v486
        %v543 = vunpack.c.3.s8 %v485
        %v544 = vunpack.c.3.s8 %v486
        %v545 = vunpack.c.0.s8 %v487
        %v546 = vunpack.c.0.s8 %v488
        %v547 = vunpack.c.1.s8 %v487
        %v548 = vunpack.c.1.s8 %v488
        %v549 = vunpack.c.2.s8 %v487
        %v550 = vunpack.c.2.s8 %v488
        %v551 = vunpack.c.3.s8 %v487
        %v552 = vunpack.c.3.s8 %v488
        %v553 = vpack.c.b16 %v490, %v489
        %v554 = vpack.c.b8 %v553, %v553
        %v555 = vpack.c.b16 %v492, %v491
        %v556 = vpack.c.b8 %v555, %v555
        %v557 = vpack.c.b16 %v494, %v493
        %v558 = vpack.c.b8 %v557, %v557
        %v559 = vpack.c.b16 %v496, %v495
        %v560 = vpack.c.b8 %v559, %v559
        %v561 = vpack.c.b16 %v498, %v497
        %v562 = vpack.c.b8 %v561, %v561
        %v563 = vpack.c.b16 %v500, %v499
        %v564 = vpack.c.b8 %v563, %v563
        %v565 = vpack.c.b16 %v502, %v501
        %v566 = vpack.c.b8 %v565, %v565
        %v567 = vpack.c.b16 %v504, %v503
        %v568 = vpack.c.b8 %v567, %v567
        %v569 = vpack.c.b16 %v506, %v505
        %v570 = vpack.c.b8 %v569, %v569
        %v571 = vpack.c.b16 %v508, %v507
        %v572 = vpack.c.b8 %v571, %v571
        %v573 = vpack.c.b16 %v510, %v509
        %v574 = vpack.c.b8 %v573, %v573
        %v575 = vpack.c.b16 %v512, %v511
        %v576 = vpack.c.b8 %v575, %v575
        %v577 = vpack.c.b16 %v514, %v513
        %v578 = vpack.c.b8 %v577, %v577
        %v579 = vpack.c.b16 %v516, %v515
        %v580 = vpack.c.b8 %v579, %v579
        %v581 = vpack.c.b16 %v518, %v517
        %v582 = vpack.c.b8 %v581, %v581
        %v583 = vpack.c.b16 %v520, %v519
        %v584 = vpack.c.b8 %v583, %v583
        %v585 = vpack.c.b16 %v522, %v521
        %v586 = vpack.c.b8 %v585, %v585
        %v587 = vpack.c.b16 %v524, %v523
        %v588 = vpack.c.b8 %v587, %v587
        %v589 = vpack.c.b16 %v526, %v525
        %v590 = vpack.c.b8 %v589, %v589
        %v591 = vpack.c.b16 %v528, %v527
        %v592 = vpack.c.b8 %v591, %v591
        %v593 = vpack.c.b16 %v530, %v529
        %v594 = vpack.c.b8 %v593, %v593
        %v595 = vpack.c.b16 %v532, %v531
        %v596 = vpack.c.b8 %v595, %v595
        %v597 = vpack.c.b16 %v534, %v533
        %v598 = vpack.c.b8 %v597, %v597
        %v599 = vpack.c.b16 %v536, %v535
        %v600 = vpack.c.b8 %v599, %v599
        %v601 = vpack.c.b16 %v538, %v537
        %v602 = vpack.c.b8 %v601, %v601
        %v603 = vpack.c.b16 %v540, %v539
        %v604 = vpack.c.b8 %v603, %v603
        %v605 = vpack.c.b16 %v542, %v541
        %v606 = vpack.c.b8 %v605, %v605
        %v607 = vpack.c.b16 %v544, %v543
        %v608 = vpack.c.b8 %v607, %v607
        %v609 = vpack.c.b16 %v546, %v545
        %v610 = vpack.c.b8 %v609, %v609
        %v611 = vpack.c.b16 %v548, %v547
        %v612 = vpack.c.b8 %v611, %v611
        %v613 = vpack.c.b16 %v550, %v549
        %v614 = vpack.c.b8 %v613, %v613
        %v615 = vpack.c.b16 %v552, %v551
        %v616 = vpack.c.b8 %v615, %v615
        %vm617 = vnez %v554
        %vm618 = vnez %v556
        %vm619 = vnez %v558
        %vm620 = vnez %v560
        %vm621 = vnez %v562
        %vm622 = vnez %v564
        %vm623 = vnez %v566
        %vm624 = vnez %v568
        %vm625 = vnez %v570
        %vm626 = vnez %v572
        %vm627 = vnez %v574
        %vm628 = vnez %v576
        %vm629 = vnez %v578
        %vm630 = vnez %v580
        %vm631 = vnez %v582
        %vm632 = vnez %v584
        %vm633 = vnez %v586
        %vm634 = vnez %v588
        %vm635 = vnez %v590
        %vm636 = vnez %v592
        %vm637 = vnez %v594
        %vm638 = vnez %v596
        %vm639 = vnez %v598
        %vm640 = vnez %v600
        %vm641 = vnez %v602
        %vm642 = vnez %v604
        %vm643 = vnez %v606
        %vm644 = vnez %v608
        %vm645 = vnez %v610
        %vm646 = vnez %v612
        %vm647 = vnez %v614
        %vm648 = vnez %v616
        %v649 = vsel %vm617, 16843009, 0
        %v650 = vsel %vm618, 16843009, 0
        %v651 = vsel %vm619, 16843009, 0
        %v652 = vsel %vm620, 16843009, 0
        %v653 = vsel %vm621, 16843009, 0
        %v654 = vsel %vm622, 16843009, 0
        %v655 = vsel %vm623, 16843009, 0
        %v656 = vsel %vm624, 16843009, 0
        %v657 = vsel %vm625, 16843009, 0
        %v658 = vsel %vm626, 16843009, 0
        %v659 = vsel %vm627, 16843009, 0
        %v660 = vsel %vm628, 16843009, 0
        %v661 = vsel %vm629, 16843009, 0
        %v662 = vsel %vm630, 16843009, 0
        %v663 = vsel %vm631, 16843009, 0
        %v664 = vsel %vm632, 16843009, 0
        %v665 = vsel %vm633, 16843009, 0
        %v666 = vsel %vm634, 16843009, 0
        %v667 = vsel %vm635, 16843009, 0
        %v668 = vsel %vm636, 16843009, 0
        %v669 = vsel %vm637, 16843009, 0
        %v670 = vsel %vm638, 16843009, 0
        %v671 = vsel %vm639, 16843009, 0
        %v672 = vsel %vm640, 16843009, 0
        %v673 = vsel %vm641, 16843009, 0
        %v674 = vsel %vm642, 16843009, 0
        %v675 = vsel %vm643, 16843009, 0
        %v676 = vsel %vm644, 16843009, 0
        %v677 = vsel %vm645, 16843009, 0
        %v678 = vsel %vm646, 16843009, 0
        %v679 = vsel %vm647, 16843009, 0
        %v680 = vsel %vm648, 16843009, 0
        %v681 = vunpack.c.0.s8 %v649
        %v682 = vunpack.c.1.s8 %v649
        %v683 = vunpack.c.0.s8 %v650
        %v684 = vunpack.c.1.s8 %v650
        %v685 = vunpack.c.0.s8 %v651
        %v686 = vunpack.c.1.s8 %v651
        %v687 = vunpack.c.0.s8 %v652
        %v688 = vunpack.c.1.s8 %v652
        %v689 = vunpack.c.0.s8 %v653
        %v690 = vunpack.c.1.s8 %v653
        %v691 = vunpack.c.0.s8 %v654
        %v692 = vunpack.c.1.s8 %v654
        %v693 = vunpack.c.0.s8 %v655
        %v694 = vunpack.c.1.s8 %v655
        %v695 = vunpack.c.0.s8 %v656
        %v696 = vunpack.c.1.s8 %v656
        %v697 = vunpack.c.0.s8 %v657
        %v698 = vunpack.c.1.s8 %v657
        %v699 = vunpack.c.0.s8 %v658
        %v700 = vunpack.c.1.s8 %v658
        %v701 = vunpack.c.0.s8 %v659
        %v702 = vunpack.c.1.s8 %v659
        %v703 = vunpack.c.0.s8 %v660
        %v704 = vunpack.c.1.s8 %v660
        %v705 = vunpack.c.0.s8 %v661
        %v706 = vunpack.c.1.s8 %v661
        %v707 = vunpack.c.0.s8 %v662
        %v708 = vunpack.c.1.s8 %v662
        %v709 = vunpack.c.0.s8 %v663
        %v710 = vunpack.c.1.s8 %v663
        %v711 = vunpack.c.0.s8 %v664
        %v712 = vunpack.c.1.s8 %v664
        %v713 = vunpack.c.0.s8 %v665
        %v714 = vunpack.c.1.s8 %v665
        %v715 = vunpack.c.0.s8 %v666
        %v716 = vunpack.c.1.s8 %v666
        %v717 = vunpack.c.0.s8 %v667
        %v718 = vunpack.c.1.s8 %v667
        %v719 = vunpack.c.0.s8 %v668
        %v720 = vunpack.c.1.s8 %v668
        %v721 = vunpack.c.0.s8 %v669
        %v722 = vunpack.c.1.s8 %v669
        %v723 = vunpack.c.0.s8 %v670
        %v724 = vunpack.c.1.s8 %v670
        %v725 = vunpack.c.0.s8 %v671
        %v726 = vunpack.c.1.s8 %v671
        %v727 = vunpack.c.0.s8 %v672
        %v728 = vunpack.c.1.s8 %v672
        %v729 = vunpack.c.0.s8 %v673
        %v730 = vunpack.c.1.s8 %v673
        %v731 = vunpack.c.0.s8 %v674
        %v732 = vunpack.c.1.s8 %v674
        %v733 = vunpack.c.0.s8 %v675
        %v734 = vunpack.c.1.s8 %v675
        %v735 = vunpack.c.0.s8 %v676
        %v736 = vunpack.c.1.s8 %v676
        %v737 = vunpack.c.0.s8 %v677
        %v738 = vunpack.c.1.s8 %v677
        %v739 = vunpack.c.0.s8 %v678
        %v740 = vunpack.c.1.s8 %v678
        %v741 = vunpack.c.0.s8 %v679
        %v742 = vunpack.c.1.s8 %v679
        %v743 = vunpack.c.0.s8 %v680
        %v744 = vunpack.c.1.s8 %v680
        %vm745 = vcmp.ne.s32.totalorder %v681, 0
        %vm746 = vcmp.ne.s32.totalorder %v682, 0
        %vm747 = vcmp.ne.s32.totalorder %v683, 0
        %vm748 = vcmp.ne.s32.totalorder %v684, 0
        %vm749 = vcmp.ne.s32.totalorder %v685, 0
        %vm750 = vcmp.ne.s32.totalorder %v686, 0
        %vm751 = vcmp.ne.s32.totalorder %v687, 0
        %vm752 = vcmp.ne.s32.totalorder %v688, 0
        %vm753 = vcmp.ne.s32.totalorder %v689, 0
        %vm754 = vcmp.ne.s32.totalorder %v690, 0
        %vm755 = vcmp.ne.s32.totalorder %v691, 0
        %vm756 = vcmp.ne.s32.totalorder %v692, 0
        %vm757 = vcmp.ne.s32.totalorder %v693, 0
        %vm758 = vcmp.ne.s32.totalorder %v694, 0
        %vm759 = vcmp.ne.s32.totalorder %v695, 0
        %vm760 = vcmp.ne.s32.totalorder %v696, 0
        %vm761 = vcmp.ne.s32.totalorder %v697, 0
        %vm762 = vcmp.ne.s32.totalorder %v698, 0
        %vm763 = vcmp.ne.s32.totalorder %v699, 0
        %vm764 = vcmp.ne.s32.totalorder %v700, 0
        %vm765 = vcmp.ne.s32.totalorder %v701, 0
        %vm766 = vcmp.ne.s32.totalorder %v702, 0
        %vm767 = vcmp.ne.s32.totalorder %v703, 0
        %vm768 = vcmp.ne.s32.totalorder %v704, 0
        %vm769 = vcmp.ne.s32.totalorder %v705, 0
        %vm770 = vcmp.ne.s32.totalorder %v706, 0
        %vm771 = vcmp.ne.s32.totalorder %v707, 0
        %vm772 = vcmp.ne.s32.totalorder %v708, 0
        %vm773 = vcmp.ne.s32.totalorder %v709, 0
        %vm774 = vcmp.ne.s32.totalorder %v710, 0
        %vm775 = vcmp.ne.s32.totalorder %v711, 0
        %vm776 = vcmp.ne.s32.totalorder %v712, 0
        %vm777 = vcmp.ne.s32.totalorder %v713, 0
        %vm778 = vcmp.ne.s32.totalorder %v714, 0
        %vm779 = vcmp.ne.s32.totalorder %v715, 0
        %vm780 = vcmp.ne.s32.totalorder %v716, 0
        %vm781 = vcmp.ne.s32.totalorder %v717, 0
        %vm782 = vcmp.ne.s32.totalorder %v718, 0
        %vm783 = vcmp.ne.s32.totalorder %v719, 0
        %vm784 = vcmp.ne.s32.totalorder %v720, 0
        %vm785 = vcmp.ne.s32.totalorder %v721, 0
        %vm786 = vcmp.ne.s32.totalorder %v722, 0
        %vm787 = vcmp.ne.s32.totalorder %v723, 0
        %vm788 = vcmp.ne.s32.totalorder %v724, 0
        %vm789 = vcmp.ne.s32.totalorder %v725, 0
        %vm790 = vcmp.ne.s32.totalorder %v726, 0
        %vm791 = vcmp.ne.s32.totalorder %v727, 0
        %vm792 = vcmp.ne.s32.totalorder %v728, 0
        %vm793 = vcmp.ne.s32.totalorder %v729, 0
        %vm794 = vcmp.ne.s32.totalorder %v730, 0
        %vm795 = vcmp.ne.s32.totalorder %v731, 0
        %vm796 = vcmp.ne.s32.totalorder %v732, 0
        %vm797 = vcmp.ne.s32.totalorder %v733, 0
        %vm798 = vcmp.ne.s32.totalorder %v734, 0
        %vm799 = vcmp.ne.s32.totalorder %v735, 0
        %vm800 = vcmp.ne.s32.totalorder %v736, 0
        %vm801 = vcmp.ne.s32.totalorder %v737, 0
        %vm802 = vcmp.ne.s32.totalorder %v738, 0
        %vm803 = vcmp.ne.s32.totalorder %v739, 0
        %vm804 = vcmp.ne.s32.totalorder %v740, 0
        %vm805 = vcmp.ne.s32.totalorder %v741, 0
        %vm806 = vcmp.ne.s32.totalorder %v742, 0
        %vm807 = vcmp.ne.s32.totalorder %v743, 0
        %vm808 = vcmp.ne.s32.totalorder %v744, 0
        %v809 = vsel %vm745, %v409, 0.0
        %v810 = vsel %vm746, %v410, 0.0
        %v811 = vsel %vm747, %v411, 0.0
        %v812 = vsel %vm748, %v412, 0.0
        %v813 = vsel %vm749, %v413, 0.0
        %v814 = vsel %vm750, %v414, 0.0
        %v815 = vsel %vm751, %v415, 0.0
        %v816 = vsel %vm752, %v416, 0.0
        %v817 = vsel %vm753, %v417, 0.0
        %v818 = vsel %vm754, %v418, 0.0
        %v819 = vsel %vm755, %v419, 0.0
        %v820 = vsel %vm756, %v420, 0.0
        %v821 = vsel %vm757, %v421, 0.0
        %v822 = vsel %vm758, %v422, 0.0
        %v823 = vsel %vm759, %v423, 0.0
        %v824 = vsel %vm760, %v424, 0.0
        %v825 = vsel %vm761, %v425, 0.0
        %v826 = vsel %vm762, %v426, 0.0
        %v827 = vsel %vm763, %v427, 0.0
        %v828 = vsel %vm764, %v428, 0.0
        %v829 = vsel %vm765, %v429, 0.0
        %v830 = vsel %vm766, %v430, 0.0
        %v831 = vsel %vm767, %v431, 0.0
        %v832 = vsel %vm768, %v432, 0.0
        %v833 = vsel %vm769, %v433, 0.0
        %v834 = vsel %vm770, %v434, 0.0
        %v835 = vsel %vm771, %v435, 0.0
        %v836 = vsel %vm772, %v436, 0.0
        %v837 = vsel %vm773, %v437, 0.0
        %v838 = vsel %vm774, %v438, 0.0
        %v839 = vsel %vm775, %v439, 0.0
        %v840 = vsel %vm776, %v440, 0.0
        %v841 = vsel %vm777, %v441, 0.0
        %v842 = vsel %vm778, %v442, 0.0
        %v843 = vsel %vm779, %v443, 0.0
        %v844 = vsel %vm780, %v444, 0.0
        %v845 = vsel %vm781, %v445, 0.0
        %v846 = vsel %vm782, %v446, 0.0
        %v847 = vsel %vm783, %v447, 0.0
        %v848 = vsel %vm784, %v448, 0.0
        %v849 = vsel %vm785, %v449, 0.0
        %v850 = vsel %vm786, %v450, 0.0
        %v851 = vsel %vm787, %v451, 0.0
        %v852 = vsel %vm788, %v452, 0.0
        %v853 = vsel %vm789, %v453, 0.0
        %v854 = vsel %vm790, %v454, 0.0
        %v855 = vsel %vm791, %v455, 0.0
        %v856 = vsel %vm792, %v456, 0.0
        %v857 = vsel %vm793, %v457, 0.0
        %v858 = vsel %vm794, %v458, 0.0
        %v859 = vsel %vm795, %v459, 0.0
        %v860 = vsel %vm796, %v460, 0.0
        %v861 = vsel %vm797, %v461, 0.0
        %v862 = vsel %vm798, %v462, 0.0
        %v863 = vsel %vm799, %v463, 0.0
        %v864 = vsel %vm800, %v464, 0.0
        %v865 = vsel %vm801, %v465, 0.0
        %v866 = vsel %vm802, %v466, 0.0
        %v867 = vsel %vm803, %v467, 0.0
        %v868 = vsel %vm804, %v468, 0.0
        %v869 = vsel %vm805, %v469, 0.0
        %v870 = vsel %vm806, %v470, 0.0
        %v871 = vsel %vm807, %v471, 0.0
        %v872 = vsel %vm808, %v472, 0.0
        %v873 = vld [vmem:[#allocation2] sm:$0xff]
        %v874 = vld [vmem:[#allocation2 + $0x8] sm:$0xff]
        %v875 = vld [vmem:[#allocation2 + $0x10] sm:$0xff]
        %v876 = vld [vmem:[#allocation2 + $0x18] sm:$0xff]
        %v877 = vld [vmem:[#allocation2 + $0x20] sm:$0xff]
        %v878 = vld [vmem:[#allocation2 + $0x28] sm:$0xff]
        %v879 = vld [vmem:[#allocation2 + $0x30] sm:$0xff]
        %v880 = vld [vmem:[#allocation2 + $0x38] sm:$0xff]
        %v881 = vld [vmem:[#allocation2 + $0x40] sm:$0xff]
        %v882 = vld [vmem:[#allocation2 + $0x48] sm:$0xff]
        %v883 = vld [vmem:[#allocation2 + $0x50] sm:$0xff]
        %v884 = vld [vmem:[#allocation2 + $0x58] sm:$0xff]
        %v885 = vld [vmem:[#allocation2 + $0x60] sm:$0xff]
        %v886 = vld [vmem:[#allocation2 + $0x68] sm:$0xff]
        %v887 = vld [vmem:[#allocation2 + $0x70] sm:$0xff]
        %v888 = vld [vmem:[#allocation2 + $0x78] sm:$0xff]
        %v889 = vld [vmem:[#allocation2 + $0x80] sm:$0xff]
        %v890 = vld [vmem:[#allocation2 + $0x88] sm:$0xff]
        %v891 = vld [vmem:[#allocation2 + $0x90] sm:$0xff]
        %v892 = vld [vmem:[#allocation2 + $0x98] sm:$0xff]
        %v893 = vld [vmem:[#allocation2 + $0xa0] sm:$0xff]
        %v894 = vld [vmem:[#allocation2 + $0xa8] sm:$0xff]
        %v895 = vld [vmem:[#allocation2 + $0xb0] sm:$0xff]
        %v896 = vld [vmem:[#allocation2 + $0xb8] sm:$0xff]
        %v897 = vld [vmem:[#allocation2 + $0xc0] sm:$0xff]
        %v898 = vld [vmem:[#allocation2 + $0xc8] sm:$0xff]
        %v899 = vld [vmem:[#allocation2 + $0xd0] sm:$0xff]
        %v900 = vld [vmem:[#allocation2 + $0xd8] sm:$0xff]
        %v901 = vld [vmem:[#allocation2 + $0xe0] sm:$0xff]
        %v902 = vld [vmem:[#allocation2 + $0xe8] sm:$0xff]
        %v903 = vld [vmem:[#allocation2 + $0xf0] sm:$0xff]
        %v904 = vld [vmem:[#allocation2 + $0xf8] sm:$0xff]
        %v905 = vld [vmem:[#allocation2 + $0x100] sm:$0xff]
        %v906 = vld [vmem:[#allocation2 + $0x108] sm:$0xff]
        %v907 = vld [vmem:[#allocation2 + $0x110] sm:$0xff]
        %v908 = vld [vmem:[#allocation2 + $0x118] sm:$0xff]
        %v909 = vld [vmem:[#allocation2 + $0x120] sm:$0xff]
        %v910 = vld [vmem:[#allocation2 + $0x128] sm:$0xff]
        %v911 = vld [vmem:[#allocation2 + $0x130] sm:$0xff]
        %v912 = vld [vmem:[#allocation2 + $0x138] sm:$0xff]
        %v913 = vld [vmem:[#allocation2 + $0x140] sm:$0xff]
        %v914 = vld [vmem:[#allocation2 + $0x148] sm:$0xff]
        %v915 = vld [vmem:[#allocation2 + $0x150] sm:$0xff]
        %v916 = vld [vmem:[#allocation2 + $0x158] sm:$0xff]
        %v917 = vld [vmem:[#allocation2 + $0x160] sm:$0xff]
        %v918 = vld [vmem:[#allocation2 + $0x168] sm:$0xff]
        %v919 = vld [vmem:[#allocation2 + $0x170] sm:$0xff]
        %v920 = vld [vmem:[#allocation2 + $0x178] sm:$0xff]
        %v921 = vld [vmem:[#allocation2 + $0x180] sm:$0xff]
        %v922 = vld [vmem:[#allocation2 + $0x188] sm:$0xff]
        %v923 = vld [vmem:[#allocation2 + $0x190] sm:$0xff]
        %v924 = vld [vmem:[#allocation2 + $0x198] sm:$0xff]
        %v925 = vld [vmem:[#allocation2 + $0x1a0] sm:$0xff]
        %v926 = vld [vmem:[#allocation2 + $0x1a8] sm:$0xff]
        %v927 = vld [vmem:[#allocation2 + $0x1b0] sm:$0xff]
        %v928 = vld [vmem:[#allocation2 + $0x1b8] sm:$0xff]
        %v929 = vld [vmem:[#allocation2 + $0x1c0] sm:$0xff]
        %v930 = vld [vmem:[#allocation2 + $0x1c8] sm:$0xff]
        %v931 = vld [vmem:[#allocation2 + $0x1d0] sm:$0xff]
        %v932 = vld [vmem:[#allocation2 + $0x1d8] sm:$0xff]
        %v933 = vld [vmem:[#allocation2 + $0x1e0] sm:$0xff]
        %v934 = vld [vmem:[#allocation2 + $0x1e8] sm:$0xff]
        %v935 = vld [vmem:[#allocation2 + $0x1f0] sm:$0xff]
        %v936 = vld [vmem:[#allocation2 + $0x1f8] sm:$0xff]
        %v937 = vld [vmem:[#allocation7] sm:$0xff]
        %v938 = vld [vmem:[#allocation7 + $0x8] sm:$0xff]
        %v939 = vld [vmem:[#allocation7 + $0x10] sm:$0xff]
        %v940 = vld [vmem:[#allocation7 + $0x18] sm:$0xff]
        %v941 = vld [vmem:[#allocation7 + $0x20] sm:$0xff]
        %v942 = vld [vmem:[#allocation7 + $0x28] sm:$0xff]
        %v943 = vld [vmem:[#allocation7 + $0x30] sm:$0xff]
        %v944 = vld [vmem:[#allocation7 + $0x38] sm:$0xff]
        %v945 = vld [vmem:[#allocation7 + $0x40] sm:$0xff]
        %v946 = vld [vmem:[#allocation7 + $0x48] sm:$0xff]
        %v947 = vld [vmem:[#allocation7 + $0x50] sm:$0xff]
        %v948 = vld [vmem:[#allocation7 + $0x58] sm:$0xff]
        %v949 = vld [vmem:[#allocation7 + $0x60] sm:$0xff]
        %v950 = vld [vmem:[#allocation7 + $0x68] sm:$0xff]
        %v951 = vld [vmem:[#allocation7 + $0x70] sm:$0xff]
        %v952 = vld [vmem:[#allocation7 + $0x78] sm:$0xff]
        %v953 = vld [vmem:[#allocation7 + $0x80] sm:$0xff]
        %v954 = vld [vmem:[#allocation7 + $0x88] sm:$0xff]
        %v955 = vld [vmem:[#allocation7 + $0x90] sm:$0xff]
        %v956 = vld [vmem:[#allocation7 + $0x98] sm:$0xff]
        %v957 = vld [vmem:[#allocation7 + $0xa0] sm:$0xff]
        %v958 = vld [vmem:[#allocation7 + $0xa8] sm:$0xff]
        %v959 = vld [vmem:[#allocation7 + $0xb0] sm:$0xff]
        %v960 = vld [vmem:[#allocation7 + $0xb8] sm:$0xff]
        %v961 = vld [vmem:[#allocation7 + $0xc0] sm:$0xff]
        %v962 = vld [vmem:[#allocation7 + $0xc8] sm:$0xff]
        %v963 = vld [vmem:[#allocation7 + $0xd0] sm:$0xff]
        %v964 = vld [vmem:[#allocation7 + $0xd8] sm:$0xff]
        %v965 = vld [vmem:[#allocation7 + $0xe0] sm:$0xff]
        %v966 = vld [vmem:[#allocation7 + $0xe8] sm:$0xff]
        %v967 = vld [vmem:[#allocation7 + $0xf0] sm:$0xff]
        %v968 = vld [vmem:[#allocation7 + $0xf8] sm:$0xff]
        %v969 = vld [vmem:[#allocation7 + $0x100] sm:$0xff]
        %v970 = vld [vmem:[#allocation7 + $0x108] sm:$0xff]
        %v971 = vld [vmem:[#allocation7 + $0x110] sm:$0xff]
        %v972 = vld [vmem:[#allocation7 + $0x118] sm:$0xff]
        %v973 = vld [vmem:[#allocation7 + $0x120] sm:$0xff]
        %v974 = vld [vmem:[#allocation7 + $0x128] sm:$0xff]
        %v975 = vld [vmem:[#allocation7 + $0x130] sm:$0xff]
        %v976 = vld [vmem:[#allocation7 + $0x138] sm:$0xff]
        %v977 = vld [vmem:[#allocation7 + $0x140] sm:$0xff]
        %v978 = vld [vmem:[#allocation7 + $0x148] sm:$0xff]
        %v979 = vld [vmem:[#allocation7 + $0x150] sm:$0xff]
        %v980 = vld [vmem:[#allocation7 + $0x158] sm:$0xff]
        %v981 = vld [vmem:[#allocation7 + $0x160] sm:$0xff]
        %v982 = vld [vmem:[#allocation7 + $0x168] sm:$0xff]
        %v983 = vld [vmem:[#allocation7 + $0x170] sm:$0xff]
        %v984 = vld [vmem:[#allocation7 + $0x178] sm:$0xff]
        %v985 = vld [vmem:[#allocation7 + $0x180] sm:$0xff]
        %v986 = vld [vmem:[#allocation7 + $0x188] sm:$0xff]
        %v987 = vld [vmem:[#allocation7 + $0x190] sm:$0xff]
        %v988 = vld [vmem:[#allocation7 + $0x198] sm:$0xff]
        %v989 = vld [vmem:[#allocation7 + $0x1a0] sm:$0xff]
        %v990 = vld [vmem:[#allocation7 + $0x1a8] sm:$0xff]
        %v991 = vld [vmem:[#allocation7 + $0x1b0] sm:$0xff]
        %v992 = vld [vmem:[#allocation7 + $0x1b8] sm:$0xff]
        %v993 = vld [vmem:[#allocation7 + $0x1c0] sm:$0xff]
        %v994 = vld [vmem:[#allocation7 + $0x1c8] sm:$0xff]
        %v995 = vld [vmem:[#allocation7 + $0x1d0] sm:$0xff]
        %v996 = vld [vmem:[#allocation7 + $0x1d8] sm:$0xff]
        %v997 = vld [vmem:[#allocation7 + $0x1e0] sm:$0xff]
        %v998 = vld [vmem:[#allocation7 + $0x1e8] sm:$0xff]
        %v999 = vld [vmem:[#allocation7 + $0x1f0] sm:$0xff]
        %v1000 = vld [vmem:[#allocation7 + $0x1f8] sm:$0xff]
        %1001 = vmatprep.subr.mxu0 %v938
        %1002 = vmatpush1.msra.mxu0 %v937
        %1003 = vmatprep.subr.mxu0 %v940
        %1004 = vmatpush1.msra.mxu0 %v939
        %1005 = vmatprep.subr.mxu0 %v942
        %1006 = vmatpush1.msra.mxu0 %v941
        %1007 = vmatprep.subr.mxu0 %v944
        %1008 = vmatpush1.msra.mxu0 %v943
        %1009 = vmatprep.subr.mxu0 %v946
        %1010 = vmatpush1.msra.mxu0 %v945
        %1011 = vmatprep.subr.mxu0 %v948
        %1012 = vmatpush1.msra.mxu0 %v947
        %1013 = vmatprep.subr.mxu0 %v950
        %1014 = vmatpush1.msra.mxu0 %v949
        %1015 = vmatprep.subr.mxu0 %v952
        %1016 = vmatpush1.msra.mxu0 %v951
        %1017 = vmatprep.subr.mxu0 %v954
        %1018 = vmatpush1.msra.mxu0 %v953
        %1019 = vmatprep.subr.mxu0 %v956
        %1020 = vmatpush1.msra.mxu0 %v955
        %1021 = vmatprep.subr.mxu0 %v958
        %1022 = vmatpush1.msra.mxu0 %v957
        %1023 = vmatprep.subr.mxu0 %v960
        %1024 = vmatpush1.msra.mxu0 %v959
        %1025 = vmatprep.subr.mxu0 %v962
        %1026 = vmatpush1.msra.mxu0 %v961
        %1027 = vmatprep.subr.mxu0 %v964
        %1028 = vmatpush1.msra.mxu0 %v963
        %1029 = vmatprep.subr.mxu0 %v966
        %1030 = vmatpush1.msra.mxu0 %v965
        %1031 = vmatprep.subr.mxu0 %v968
        %1032 = vmatpush1.msra.mxu0 %v967
        %1033 = vmatprep.subr.mxu0 %v970
        %1034 = vmatpush1.msra.mxu0 %v969
        %1035 = vmatprep.subr.mxu0 %v972
        %1036 = vmatpush1.msra.mxu0 %v971
        %1037 = vmatprep.subr.mxu0 %v974
        %1038 = vmatpush1.msra.mxu0 %v973
        %1039 = vmatprep.subr.mxu0 %v976
        %1040 = vmatpush1.msra.mxu0 %v975
        %1041 = vmatprep.subr.mxu0 %v978
        %1042 = vmatpush1.msra.mxu0 %v977
        %1043 = vmatprep.subr.mxu0 %v980
        %1044 = vmatpush1.msra.mxu0 %v979
        %1045 = vmatprep.subr.mxu0 %v982
        %1046 = vmatpush1.msra.mxu0 %v981
        %1047 = vmatprep.subr.mxu0 %v984
        %1048 = vmatpush1.msra.mxu0 %v983
        %1049 = vmatprep.subr.mxu0 %v986
        %1050 = vmatpush1.msra.mxu0 %v985
        %1051 = vmatprep.subr.mxu0 %v988
        %1052 = vmatpush1.msra.mxu0 %v987
        %1053 = vmatprep.subr.mxu0 %v990
        %1054 = vmatpush1.msra.mxu0 %v989
        %1055 = vmatprep.subr.mxu0 %v992
        %1056 = vmatpush1.msra.mxu0 %v991
        %1057 = vmatprep.subr.mxu0 %v994
        %1058 = vmatpush1.msra.mxu0 %v993
        %1059 = vmatprep.subr.mxu0 %v996
        %1060 = vmatpush1.msra.mxu0 %v995
        %1061 = vmatprep.subr.mxu0 %v998
        %1062 = vmatpush1.msra.mxu0 %v997
        %1063 = vmatprep.subr.mxu0 %v1000
        %1064 = vmatpush1.msra.mxu0 %v999
        %1065 = vmatprep.mubr.f32.mxu0 %v810
        %1066 = vmatmul.mubr.f32.gmra.mrb[0].mxu0 %v809
        %v1067 = vpop.f32.mrb[0].mxu0
        %v1068 = vadd.f32 0.0, %v1067
        %v1069 = vpop.f32.mrb[0].mxu0
        %v1070 = vadd.f32 0.0, %v1069
        %1071 = vmatprep.mubr.f32.mxu0 %v812
        %1072 = vmatmul.mubr.f32.gmra.mrb[0].mxu0 %v811
        %v1073 = vpop.f32.mrb[0].mxu0
        %v1074 = vadd.f32 0.0, %v1073
        %v1075 = vpop.f32.mrb[0].mxu0
        %v1076 = vadd.f32 0.0, %v1075
        %1077 = vmatprep.mubr.f32.mxu0 %v814
        %1078 = vmatmul.mubr.f32.gmra.mrb[0].mxu0 %v813
        %v1079 = vpop.f32.mrb[0].mxu0
        %v1080 = vadd.f32 0.0, %v1079
        %v1081 = vpop.f32.mrb[0].mxu0
        %v1082 = vadd.f32 0.0, %v1081
        %1083 = vmatprep.mubr.f32.mxu0 %v816
        %1084 = vmatmul.mubr.f32.gmra.mrb[0].mxu0 %v815
        %v1085 = vpop.f32.mrb[0].mxu0
        %v1086 = vadd.f32 0.0, %v1085
        %v1087 = vpop.f32.mrb[0].mxu0
        %v1088 = vadd.f32 0.0, %v1087
        %1089 = vmatprep.mubr.f32.mxu0 %v818
        %1090 = vmatmul.mubr.f32.gmra.mrb[0].mxu0 %v817
        %v1091 = vpop.f32.mrb[0].mxu0
        %v1092 = vadd.f32 0.0, %v1091
        %v1093 = vpop.f32.mrb[0].mxu0
        %v1094 = vadd.f32 0.0, %v1093
        %1095 = vmatprep.mubr.f32.mxu0 %v820
        %1096 = vmatmul.mubr.f32.gmra.mrb[0].mxu0 %v819
        %v1097 = vpop.f32.mrb[0].mxu0
        %v1098 = vadd.f32 0.0, %v1097
        %v1099 = vpop.f32.mrb[0].mxu0
        %v1100 = vadd.f32 0.0, %v1099
        %1101 = vmatprep.mubr.f32.mxu0 %v822
        %1102 = vmatmul.mubr.f32.gmra.mrb[0].mxu0 %v821
        %v1103 = vpop.f32.mrb[0].mxu0
        %v1104 = vadd.f32 0.0, %v1103
        %v1105 = vpop.f32.mrb[0].mxu0
        %v1106 = vadd.f32 0.0, %v1105
        %1107 = vmatprep.mubr.f32.mxu0 %v824
        %1108 = vmatmul.mubr.f32.gmra.mrb[0].mxu0 %v823
        %v1109 = vpop.f32.mrb[0].mxu0
        %v1110 = vadd.f32 0.0, %v1109
        %v1111 = vpop.f32.mrb[0].mxu0
        %v1112 = vadd.f32 0.0, %v1111
        %1113 = vmatprep.mubr.f32.mxu0 %v826
        %1114 = vmatmul.mubr.f32.gmra.mrb[0].mxu0 %v825
        %v1115 = vpop.f32.mrb[0].mxu0
        %v1116 = vadd.f32 0.0, %v1115
        %v1117 = vpop.f32.mrb[0].mxu0
        %v1118 = vadd.f32 0.0, %v1117
        %1119 = vmatprep.mubr.f32.mxu0 %v828
        %1120 = vmatmul.mubr.f32.gmra.mrb[0].mxu0 %v827
        %v1121 = vpop.f32.mrb[0].mxu0
        %v1122 = vadd.f32 0.0, %v1121
        %v1123 = vpop.f32.mrb[0].mxu0
        %v1124 = vadd.f32 0.0, %v1123
        %1125 = vmatprep.mubr.f32.mxu0 %v830
        %1126 = vmatmul.mubr.f32.gmra.mrb[0].mxu0 %v829
        %v1127 = vpop.f32.mrb[0].mxu0
        %v1128 = vadd.f32 0.0, %v1127
        %v1129 = vpop.f32.mrb[0].mxu0
        %v1130 = vadd.f32 0.0, %v1129
        %1131 = vmatprep.mubr.f32.mxu0 %v832
        %1132 = vmatmul.mubr.f32.gmra.mrb[0].mxu0 %v831
        %v1133 = vpop.f32.mrb[0].mxu0
        %v1134 = vadd.f32 0.0, %v1133
        %v1135 = vpop.f32.mrb[0].mxu0
        %v1136 = vadd.f32 0.0, %v1135
        %1137 = vmatprep.mubr.f32.mxu0 %v834
        %1138 = vmatmul.mubr.f32.gmra.mrb[0].mxu0 %v833
        %v1139 = vpop.f32.mrb[0].mxu0
        %v1140 = vadd.f32 0.0, %v1139
        %v1141 = vpop.f32.mrb[0].mxu0
        %v1142 = vadd.f32 0.0, %v1141
        %1143 = vmatprep.mubr.f32.mxu0 %v836
        %1144 = vmatmul.mubr.f32.gmra.mrb[0].mxu0 %v835
        %v1145 = vpop.f32.mrb[0].mxu0
        %v1146 = vadd.f32 0.0, %v1145
        %v1147 = vpop.f32.mrb[0].mxu0
        %v1148 = vadd.f32 0.0, %v1147
        %1149 = vmatprep.mubr.f32.mxu0 %v838
        %1150 = vmatmul.mubr.f32.gmra.mrb[0].mxu0 %v837
        %v1151 = vpop.f32.mrb[0].mxu0
        %v1152 = vadd.f32 0.0, %v1151
        %v1153 = vpop.f32.mrb[0].mxu0
        %v1154 = vadd.f32 0.0, %v1153
        %1155 = vmatprep.mubr.f32.mxu0 %v840
        %1156 = vmatmul.mubr.f32.gmra.mrb[0].mxu0 %v839
        %v1157 = vpop.f32.mrb[0].mxu0
        %v1158 = vadd.f32 0.0, %v1157
        %v1159 = vpop.f32.mrb[0].mxu0
        %v1160 = vadd.f32 0.0, %v1159
        %1161 = vmatprep.mubr.f32.mxu0 %v842
        %1162 = vmatmul.mubr.f32.gmra.mrb[0].mxu0 %v841
        %v1163 = vpop.f32.mrb[0].mxu0
        %v1164 = vadd.f32 0.0, %v1163
        %v1165 = vpop.f32.mrb[0].mxu0
        %v1166 = vadd.f32 0.0, %v1165
        %1167 = vmatprep.mubr.f32.mxu0 %v844
        %1168 = vmatmul.mubr.f32.gmra.mrb[0].mxu0 %v843
        %v1169 = vpop.f32.mrb[0].mxu0
        %v1170 = vadd.f32 0.0, %v1169
        %v1171 = vpop.f32.mrb[0].mxu0
        %v1172 = vadd.f32 0.0, %v1171
        %1173 = vmatprep.mubr.f32.mxu0 %v846
        %1174 = vmatmul.mubr.f32.gmra.mrb[0].mxu0 %v845
        %v1175 = vpop.f32.mrb[0].mxu0
        %v1176 = vadd.f32 0.0, %v1175
        %v1177 = vpop.f32.mrb[0].mxu0
        %v1178 = vadd.f32 0.0, %v1177
        %1179 = vmatprep.mubr.f32.mxu0 %v848
        %1180 = vmatmul.mubr.f32.gmra.mrb[0].mxu0 %v847
        %v1181 = vpop.f32.mrb[0].mxu0
        %v1182 = vadd.f32 0.0, %v1181
        %v1183 = vpop.f32.mrb[0].mxu0
        %v1184 = vadd.f32 0.0, %v1183
        %1185 = vmatprep.mubr.f32.mxu0 %v850
        %1186 = vmatmul.mubr.f32.gmra.mrb[0].mxu0 %v849
        %v1187 = vpop.f32.mrb[0].mxu0
        %v1188 = vadd.f32 0.0, %v1187
        %v1189 = vpop.f32.mrb[0].mxu0
        %v1190 = vadd.f32 0.0, %v1189
        %1191 = vmatprep.mubr.f32.mxu0 %v852
        %1192 = vmatmul.mubr.f32.gmra.mrb[0].mxu0 %v851
        %v1193 = vpop.f32.mrb[0].mxu0
        %v1194 = vadd.f32 0.0, %v1193
        %v1195 = vpop.f32.mrb[0].mxu0
        %v1196 = vadd.f32 0.0, %v1195
        %1197 = vmatprep.mubr.f32.mxu0 %v854
        %1198 = vmatmul.mubr.f32.gmra.mrb[0].mxu0 %v853
        %v1199 = vpop.f32.mrb[0].mxu0
        %v1200 = vadd.f32 0.0, %v1199
        %v1201 = vpop.f32.mrb[0].mxu0
        %v1202 = vadd.f32 0.0, %v1201
        %1203 = vmatprep.mubr.f32.mxu0 %v856
        %1204 = vmatmul.mubr.f32.gmra.mrb[0].mxu0 %v855
        %v1205 = vpop.f32.mrb[0].mxu0
        %v1206 = vadd.f32 0.0, %v1205
        %v1207 = vpop.f32.mrb[0].mxu0
        %v1208 = vadd.f32 0.0, %v1207
        %1209 = vmatprep.mubr.f32.mxu0 %v858
        %1210 = vmatmul.mubr.f32.gmra.mrb[0].mxu0 %v857
        %v1211 = vpop.f32.mrb[0].mxu0
        %v1212 = vadd.f32 0.0, %v1211
        %v1213 = vpop.f32.mrb[0].mxu0
        %v1214 = vadd.f32 0.0, %v1213
        %1215 = vmatprep.mubr.f32.mxu0 %v860
        %1216 = vmatmul.mubr.f32.gmra.mrb[0].mxu0 %v859
        %v1217 = vpop.f32.mrb[0].mxu0
        %v1218 = vadd.f32 0.0, %v1217
        %v1219 = vpop.f32.mrb[0].mxu0
        %v1220 = vadd.f32 0.0, %v1219
        %1221 = vmatprep.mubr.f32.mxu0 %v862
        %1222 = vmatmul.mubr.f32.gmra.mrb[0].mxu0 %v861
        %v1223 = vpop.f32.mrb[0].mxu0
        %v1224 = vadd.f32 0.0, %v1223
        %v1225 = vpop.f32.mrb[0].mxu0
        %v1226 = vadd.f32 0.0, %v1225
        %1227 = vmatprep.mubr.f32.mxu0 %v864
        %1228 = vmatmul.mubr.f32.gmra.mrb[0].mxu0 %v863
        %v1229 = vpop.f32.mrb[0].mxu0
        %v1230 = vadd.f32 0.0, %v1229
        %v1231 = vpop.f32.mrb[0].mxu0
        %v1232 = vadd.f32 0.0, %v1231
        %1233 = vmatprep.mubr.f32.mxu0 %v866
        %1234 = vmatmul.mubr.f32.gmra.mrb[0].mxu0 %v865
        %v1235 = vpop.f32.mrb[0].mxu0
        %v1236 = vadd.f32 0.0, %v1235
        %v1237 = vpop.f32.mrb[0].mxu0
        %v1238 = vadd.f32 0.0, %v1237
        %1239 = vmatprep.mubr.f32.mxu0 %v868
        %1240 = vmatmul.mubr.f32.gmra.mrb[0].mxu0 %v867
        %v1241 = vpop.f32.mrb[0].mxu0
        %v1242 = vadd.f32 0.0, %v1241
        %v1243 = vpop.f32.mrb[0].mxu0
        %v1244 = vadd.f32 0.0, %v1243
        %1245 = vmatprep.mubr.f32.mxu0 %v870
        %1246 = vmatmul.mubr.f32.gmra.mrb[0].mxu0 %v869
        %v1247 = vpop.f32.mrb[0].mxu0
        %v1248 = vadd.f32 0.0, %v1247
        %v1249 = vpop.f32.mrb[0].mxu0
        %v1250 = vadd.f32 0.0, %v1249
        %1251 = vmatprep.mubr.f32.mxu0 %v872
        %1252 = vmatmul.mubr.f32.gmra.mrb[0].mxu0 %v871
        %v1253 = vpop.f32.mrb[0].mxu0
        %v1254 = vadd.f32 0.0, %v1253
        %v1255 = vpop.f32.mrb[0].mxu0
        %v1256 = vadd.f32 0.0, %v1255
        %1257 = vdwg.mxu0
        %v1258 = vadd.f32 %v873, %v1068
        %v1259 = vadd.f32 %v874, %v1070
        %v1260 = vadd.f32 %v875, %v1074
        %v1261 = vadd.f32 %v876, %v1076
        %v1262 = vadd.f32 %v877, %v1080
        %v1263 = vadd.f32 %v878, %v1082
        %v1264 = vadd.f32 %v879, %v1086
        %v1265 = vadd.f32 %v880, %v1088
        %v1266 = vadd.f32 %v881, %v1092
        %v1267 = vadd.f32 %v882, %v1094
        %v1268 = vadd.f32 %v883, %v1098
        %v1269 = vadd.f32 %v884, %v1100
        %v1270 = vadd.f32 %v885, %v1104
        %v1271 = vadd.f32 %v886, %v1106
        %v1272 = vadd.f32 %v887, %v1110
        %v1273 = vadd.f32 %v888, %v1112
        %v1274 = vadd.f32 %v889, %v1116
        %v1275 = vadd.f32 %v890, %v1118
        %v1276 = vadd.f32 %v891, %v1122
        %v1277 = vadd.f32 %v892, %v1124
        %v1278 = vadd.f32 %v893, %v1128
        %v1279 = vadd.f32 %v894, %v1130
        %v1280 = vadd.f32 %v895, %v1134
        %v1281 = vadd.f32 %v896, %v1136
        %v1282 = vadd.f32 %v897, %v1140
        %v1283 = vadd.f32 %v898, %v1142
        %v1284 = vadd.f32 %v899, %v1146
        %v1285 = vadd.f32 %v900, %v1148
        %v1286 = vadd.f32 %v901, %v1152
        %v1287 = vadd.f32 %v902, %v1154
        %v1288 = vadd.f32 %v903, %v1158
        %v1289 = vadd.f32 %v904, %v1160
        %v1290 = vadd.f32 %v905, %v1164
        %v1291 = vadd.f32 %v906, %v1166
        %v1292 = vadd.f32 %v907, %v1170
        %v1293 = vadd.f32 %v908, %v1172
        %v1294 = vadd.f32 %v909, %v1176
        %v1295 = vadd.f32 %v910, %v1178
        %v1296 = vadd.f32 %v911, %v1182
        %v1297 = vadd.f32 %v912, %v1184
        %v1298 = vadd.f32 %v913, %v1188
        %v1299 = vadd.f32 %v914, %v1190
        %v1300 = vadd.f32 %v915, %v1194
        %v1301 = vadd.f32 %v916, %v1196
        %v1302 = vadd.f32 %v917, %v1200
        %v1303 = vadd.f32 %v918, %v1202
        %v1304 = vadd.f32 %v919, %v1206
        %v1305 = vadd.f32 %v920, %v1208
        %v1306 = vadd.f32 %v921, %v1212
        %v1307 = vadd.f32 %v922, %v1214
        %v1308 = vadd.f32 %v923, %v1218
        %v1309 = vadd.f32 %v924, %v1220
        %v1310 = vadd.f32 %v925, %v1224
        %v1311 = vadd.f32 %v926, %v1226
        %v1312 = vadd.f32 %v927, %v1230
        %v1313 = vadd.f32 %v928, %v1232
        %v1314 = vadd.f32 %v929, %v1236
        %v1315 = vadd.f32 %v930, %v1238
        %v1316 = vadd.f32 %v931, %v1242
        %v1317 = vadd.f32 %v932, %v1244
        %v1318 = vadd.f32 %v933, %v1248
        %v1319 = vadd.f32 %v934, %v1250
        %v1320 = vadd.f32 %v935, %v1254
        %v1321 = vadd.f32 %v936, %v1256
        %1322 = vst [vmem:[#allocation2] sm:$0xff] %v1258
        %1323 = vst [vmem:[#allocation2 + $0x8] sm:$0xff] %v1259
        %1324 = vst [vmem:[#allocation2 + $0x10] sm:$0xff] %v1260
        %1325 = vst [vmem:[#allocation2 + $0x18] sm:$0xff] %v1261
        %1326 = vst [vmem:[#allocation2 + $0x20] sm:$0xff] %v1262
        %1327 = vst [vmem:[#allocation2 + $0x28] sm:$0xff] %v1263
        %1328 = vst [vmem:[#allocation2 + $0x30] sm:$0xff] %v1264
        %1329 = vst [vmem:[#allocation2 + $0x38] sm:$0xff] %v1265
        %1330 = vst [vmem:[#allocation2 + $0x40] sm:$0xff] %v1266
        %1331 = vst [vmem:[#allocation2 + $0x48] sm:$0xff] %v1267
        %1332 = vst [vmem:[#allocation2 + $0x50] sm:$0xff] %v1268
        %1333 = vst [vmem:[#allocation2 + $0x58] sm:$0xff] %v1269
        %1334 = vst [vmem:[#allocation2 + $0x60] sm:$0xff] %v1270
        %1335 = vst [vmem:[#allocation2 + $0x68] sm:$0xff] %v1271
        %1336 = vst [vmem:[#allocation2 + $0x70] sm:$0xff] %v1272
        %1337 = vst [vmem:[#allocation2 + $0x78] sm:$0xff] %v1273
        %1338 = vst [vmem:[#allocation2 + $0x80] sm:$0xff] %v1274
        %1339 = vst [vmem:[#allocation2 + $0x88] sm:$0xff] %v1275
        %1340 = vst [vmem:[#allocation2 + $0x90] sm:$0xff] %v1276
        %1341 = vst [vmem:[#allocation2 + $0x98] sm:$0xff] %v1277
        %1342 = vst [vmem:[#allocation2 + $0xa0] sm:$0xff] %v1278
        %1343 = vst [vmem:[#allocation2 + $0xa8] sm:$0xff] %v1279
        %1344 = vst [vmem:[#allocation2 + $0xb0] sm:$0xff] %v1280
        %1345 = vst [vmem:[#allocation2 + $0xb8] sm:$0xff] %v1281
        %1346 = vst [vmem:[#allocation2 + $0xc0] sm:$0xff] %v1282
        %1347 = vst [vmem:[#allocation2 + $0xc8] sm:$0xff] %v1283
        %1348 = vst [vmem:[#allocation2 + $0xd0] sm:$0xff] %v1284
        %1349 = vst [vmem:[#allocation2 + $0xd8] sm:$0xff] %v1285
        %1350 = vst [vmem:[#allocation2 + $0xe0] sm:$0xff] %v1286
        %1351 = vst [vmem:[#allocation2 + $0xe8] sm:$0xff] %v1287
        %1352 = vst [vmem:[#allocation2 + $0xf0] sm:$0xff] %v1288
        %1353 = vst [vmem:[#allocation2 + $0xf8] sm:$0xff] %v1289
        %1354 = vst [vmem:[#allocation2 + $0x100] sm:$0xff] %v1290
        %1355 = vst [vmem:[#allocation2 + $0x108] sm:$0xff] %v1291
        %1356 = vst [vmem:[#allocation2 + $0x110] sm:$0xff] %v1292
        %1357 = vst [vmem:[#allocation2 + $0x118] sm:$0xff] %v1293
        %1358 = vst [vmem:[#allocation2 + $0x120] sm:$0xff] %v1294
        %1359 = vst [vmem:[#allocation2 + $0x128] sm:$0xff] %v1295
        %1360 = vst [vmem:[#allocation2 + $0x130] sm:$0xff] %v1296
        %1361 = vst [vmem:[#allocation2 + $0x138] sm:$0xff] %v1297
        %1362 = vst [vmem:[#allocation2 + $0x140] sm:$0xff] %v1298
        %1363 = vst [vmem:[#allocation2 + $0x148] sm:$0xff] %v1299
        %1364 = vst [vmem:[#allocation2 + $0x150] sm:$0xff] %v1300
        %1365 = vst [vmem:[#allocation2 + $0x158] sm:$0xff] %v1301
        %1366 = vst [vmem:[#allocation2 + $0x160] sm:$0xff] %v1302
        %1367 = vst [vmem:[#allocation2 + $0x168] sm:$0xff] %v1303
        %1368 = vst [vmem:[#allocation2 + $0x170] sm:$0xff] %v1304
        %1369 = vst [vmem:[#allocation2 + $0x178] sm:$0xff] %v1305
        %1370 = vst [vmem:[#allocation2 + $0x180] sm:$0xff] %v1306
        %1371 = vst [vmem:[#allocation2 + $0x188] sm:$0xff] %v1307
        %1372 = vst [vmem:[#allocation2 + $0x190] sm:$0xff] %v1308
        %1373 = vst [vmem:[#allocation2 + $0x198] sm:$0xff] %v1309
        %1374 = vst [vmem:[#allocation2 + $0x1a0] sm:$0xff] %v1310
        %1375 = vst [vmem:[#allocation2 + $0x1a8] sm:$0xff] %v1311
        %1376 = vst [vmem:[#allocation2 + $0x1b0] sm:$0xff] %v1312
        %1377 = vst [vmem:[#allocation2 + $0x1b8] sm:$0xff] %v1313
        %1378 = vst [vmem:[#allocation2 + $0x1c0] sm:$0xff] %v1314
        %1379 = vst [vmem:[#allocation2 + $0x1c8] sm:$0xff] %v1315
        %1380 = vst [vmem:[#allocation2 + $0x1d0] sm:$0xff] %v1316
        %1381 = vst [vmem:[#allocation2 + $0x1d8] sm:$0xff] %v1317
        %1382 = vst [vmem:[#allocation2 + $0x1e0] sm:$0xff] %v1318
        %1383 = vst [vmem:[#allocation2 + $0x1e8] sm:$0xff] %v1319
        %1384 = vst [vmem:[#allocation2 + $0x1f0] sm:$0xff] %v1320
        %1385 = vst [vmem:[#allocation2 + $0x1f8] sm:$0xff] %v1321
        // Predicated region
        $region49: #{compute_w_sp_t.2} parent=31 // pred_check
          %p1386 = pneg %p309
        $region50: #{compute_w_sp_t.2} parent=31 // pred_check_branch
          %1388 = sbr.rel (%p1386) target = $region52
        $region51: #{compute_w_sp_t.2} parent=31 // pred_region
          %v1389 = vld [vmem:[#allocation2] sm:$0xff]
          %v1390 = vld [vmem:[#allocation2 + $0x8] sm:$0xff]
          %v1391 = vld [vmem:[#allocation2 + $0x10] sm:$0xff]
          %v1392 = vld [vmem:[#allocation2 + $0x18] sm:$0xff]
          %v1393 = vld [vmem:[#allocation2 + $0x20] sm:$0xff]
          %v1394 = vld [vmem:[#allocation2 + $0x28] sm:$0xff]
          %v1395 = vld [vmem:[#allocation2 + $0x30] sm:$0xff]
          %v1396 = vld [vmem:[#allocation2 + $0x38] sm:$0xff]
          %v1397 = vld [vmem:[#allocation2 + $0x40] sm:$0xff]
          %v1398 = vld [vmem:[#allocation2 + $0x48] sm:$0xff]
          %v1399 = vld [vmem:[#allocation2 + $0x50] sm:$0xff]
          %v1400 = vld [vmem:[#allocation2 + $0x58] sm:$0xff]
          %v1401 = vld [vmem:[#allocation2 + $0x60] sm:$0xff]
          %v1402 = vld [vmem:[#allocation2 + $0x68] sm:$0xff]
          %v1403 = vld [vmem:[#allocation2 + $0x70] sm:$0xff]
          %v1404 = vld [vmem:[#allocation2 + $0x78] sm:$0xff]
          %v1405 = vld [vmem:[#allocation2 + $0x80] sm:$0xff]
          %v1406 = vld [vmem:[#allocation2 + $0x88] sm:$0xff]
          %v1407 = vld [vmem:[#allocation2 + $0x90] sm:$0xff]
          %v1408 = vld [vmem:[#allocation2 + $0x98] sm:$0xff]
          %v1409 = vld [vmem:[#allocation2 + $0xa0] sm:$0xff]
          %v1410 = vld [vmem:[#allocation2 + $0xa8] sm:$0xff]
          %v1411 = vld [vmem:[#allocation2 + $0xb0] sm:$0xff]
          %v1412 = vld [vmem:[#allocation2 + $0xb8] sm:$0xff]
          %v1413 = vld [vmem:[#allocation2 + $0xc0] sm:$0xff]
          %v1414 = vld [vmem:[#allocation2 + $0xc8] sm:$0xff]
          %v1415 = vld [vmem:[#allocation2 + $0xd0] sm:$0xff]
          %v1416 = vld [vmem:[#allocation2 + $0xd8] sm:$0xff]
          %v1417 = vld [vmem:[#allocation2 + $0xe0] sm:$0xff]
          %v1418 = vld [vmem:[#allocation2 + $0xe8] sm:$0xff]
          %v1419 = vld [vmem:[#allocation2 + $0xf0] sm:$0xff]
          %v1420 = vld [vmem:[#allocation2 + $0xf8] sm:$0xff]
          %v1421 = vld [vmem:[#allocation2 + $0x100] sm:$0xff]
          %v1422 = vld [vmem:[#allocation2 + $0x108] sm:$0xff]
          %v1423 = vld [vmem:[#allocation2 + $0x110] sm:$0xff]
          %v1424 = vld [vmem:[#allocation2 + $0x118] sm:$0xff]
          %v1425 = vld [vmem:[#allocation2 + $0x120] sm:$0xff]
          %v1426 = vld [vmem:[#allocation2 + $0x128] sm:$0xff]
          %v1427 = vld [vmem:[#allocation2 + $0x130] sm:$0xff]
          %v1428 = vld [vmem:[#allocation2 + $0x138] sm:$0xff]
          %v1429 = vld [vmem:[#allocation2 + $0x140] sm:$0xff]
          %v1430 = vld [vmem:[#allocation2 + $0x148] sm:$0xff]
          %v1431 = vld [vmem:[#allocation2 + $0x150] sm:$0xff]
          %v1432 = vld [vmem:[#allocation2 + $0x158] sm:$0xff]
          %v1433 = vld [vmem:[#allocation2 + $0x160] sm:$0xff]
          %v1434 = vld [vmem:[#allocation2 + $0x168] sm:$0xff]
          %v1435 = vld [vmem:[#allocation2 + $0x170] sm:$0xff]
          %v1436 = vld [vmem:[#allocation2 + $0x178] sm:$0xff]
          %v1437 = vld [vmem:[#allocation2 + $0x180] sm:$0xff]
          %v1438 = vld [vmem:[#allocation2 + $0x188] sm:$0xff]
          %v1439 = vld [vmem:[#allocation2 + $0x190] sm:$0xff]
          %v1440 = vld [vmem:[#allocation2 + $0x198] sm:$0xff]
          %v1441 = vld [vmem:[#allocation2 + $0x1a0] sm:$0xff]
          %v1442 = vld [vmem:[#allocation2 + $0x1a8] sm:$0xff]
          %v1443 = vld [vmem:[#allocation2 + $0x1b0] sm:$0xff]
          %v1444 = vld [vmem:[#allocation2 + $0x1b8] sm:$0xff]
          %v1445 = vld [vmem:[#allocation2 + $0x1c0] sm:$0xff]
          %v1446 = vld [vmem:[#allocation2 + $0x1c8] sm:$0xff]
          %v1447 = vld [vmem:[#allocation2 + $0x1d0] sm:$0xff]
          %v1448 = vld [vmem:[#allocation2 + $0x1d8] sm:$0xff]
          %v1449 = vld [vmem:[#allocation2 + $0x1e0] sm:$0xff]
          %v1450 = vld [vmem:[#allocation2 + $0x1e8] sm:$0xff]
          %v1451 = vld [vmem:[#allocation2 + $0x1f0] sm:$0xff]
          %v1452 = vld [vmem:[#allocation2 + $0x1f8] sm:$0xff]
          %1453 = vst [vmem:[%s304] sm:$0xff] %v1389
          %1454 = vst [vmem:[%s304 + $0x8] sm:$0xff] %v1390
          %1455 = vst [vmem:[%s304 + $0x10] sm:$0xff] %v1391
          %1456 = vst [vmem:[%s304 + $0x18] sm:$0xff] %v1392
          %1457 = vst [vmem:[%s304 + $0x20] sm:$0xff] %v1393
          %1458 = vst [vmem:[%s304 + $0x28] sm:$0xff] %v1394
          %1459 = vst [vmem:[%s304 + $0x30] sm:$0xff] %v1395
          %1460 = vst [vmem:[%s304 + $0x38] sm:$0xff] %v1396
          %1461 = vst [vmem:[%s304 + $0x40] sm:$0xff] %v1397
          %1462 = vst [vmem:[%s304 + $0x48] sm:$0xff] %v1398
          %1463 = vst [vmem:[%s304 + $0x50] sm:$0xff] %v1399
          %1464 = vst [vmem:[%s304 + $0x58] sm:$0xff] %v1400
          %1465 = vst [vmem:[%s304 + $0x60] sm:$0xff] %v1401
          %1466 = vst [vmem:[%s304 + $0x68] sm:$0xff] %v1402
          %1467 = vst [vmem:[%s304 + $0x70] sm:$0xff] %v1403
          %1468 = vst [vmem:[%s304 + $0x78] sm:$0xff] %v1404
          %1469 = vst [vmem:[%s304 + $0x80] sm:$0xff] %v1405
          %1470 = vst [vmem:[%s304 + $0x88] sm:$0xff] %v1406
          %1471 = vst [vmem:[%s304 + $0x90] sm:$0xff] %v1407
          %1472 = vst [vmem:[%s304 + $0x98] sm:$0xff] %v1408
          %1473 = vst [vmem:[%s304 + $0xa0] sm:$0xff] %v1409
          %1474 = vst [vmem:[%s304 + $0xa8] sm:$0xff] %v1410
          %1475 = vst [vmem:[%s304 + $0xb0] sm:$0xff] %v1411
          %1476 = vst [vmem:[%s304 + $0xb8] sm:$0xff] %v1412
          %1477 = vst [vmem:[%s304 + $0xc0] sm:$0xff] %v1413
          %1478 = vst [vmem:[%s304 + $0xc8] sm:$0xff] %v1414
          %1479 = vst [vmem:[%s304 + $0xd0] sm:$0xff] %v1415
          %1480 = vst [vmem:[%s304 + $0xd8] sm:$0xff] %v1416
          %1481 = vst [vmem:[%s304 + $0xe0] sm:$0xff] %v1417
          %1482 = vst [vmem:[%s304 + $0xe8] sm:$0xff] %v1418
          %1483 = vst [vmem:[%s304 + $0xf0] sm:$0xff] %v1419
          %1484 = vst [vmem:[%s304 + $0xf8] sm:$0xff] %v1420
          %1485 = vst [vmem:[%s304 + $0x100] sm:$0xff] %v1421
          %1486 = vst [vmem:[%s304 + $0x108] sm:$0xff] %v1422
          %1487 = vst [vmem:[%s304 + $0x110] sm:$0xff] %v1423
          %1488 = vst [vmem:[%s304 + $0x118] sm:$0xff] %v1424
          %1489 = vst [vmem:[%s304 + $0x120] sm:$0xff] %v1425
          %1490 = vst [vmem:[%s304 + $0x128] sm:$0xff] %v1426
          %1491 = vst [vmem:[%s304 + $0x130] sm:$0xff] %v1427
          %1492 = vst [vmem:[%s304 + $0x138] sm:$0xff] %v1428
          %1493 = vst [vmem:[%s304 + $0x140] sm:$0xff] %v1429
          %1494 = vst [vmem:[%s304 + $0x148] sm:$0xff] %v1430
          %1495 = vst [vmem:[%s304 + $0x150] sm:$0xff] %v1431
          %1496 = vst [vmem:[%s304 + $0x158] sm:$0xff] %v1432
          %1497 = vst [vmem:[%s304 + $0x160] sm:$0xff] %v1433
          %1498 = vst [vmem:[%s304 + $0x168] sm:$0xff] %v1434
          %1499 = vst [vmem:[%s304 + $0x170] sm:$0xff] %v1435
          %1500 = vst [vmem:[%s304 + $0x178] sm:$0xff] %v1436
          %1501 = vst [vmem:[%s304 + $0x180] sm:$0xff] %v1437
          %1502 = vst [vmem:[%s304 + $0x188] sm:$0xff] %v1438
          %1503 = vst [vmem:[%s304 + $0x190] sm:$0xff] %v1439
          %1504 = vst [vmem:[%s304 + $0x198] sm:$0xff] %v1440
          %1505 = vst [vmem:[%s304 + $0x1a0] sm:$0xff] %v1441
          %1506 = vst [vmem:[%s304 + $0x1a8] sm:$0xff] %v1442
          %1507 = vst [vmem:[%s304 + $0x1b0] sm:$0xff] %v1443
          %1508 = vst [vmem:[%s304 + $0x1b8] sm:$0xff] %v1444
          %1509 = vst [vmem:[%s304 + $0x1c0] sm:$0xff] %v1445
          %1510 = vst [vmem:[%s304 + $0x1c8] sm:$0xff] %v1446
          %1511 = vst [vmem:[%s304 + $0x1d0] sm:$0xff] %v1447
          %1512 = vst [vmem:[%s304 + $0x1d8] sm:$0xff] %v1448
          %1513 = vst [vmem:[%s304 + $0x1e0] sm:$0xff] %v1449
          %1514 = vst [vmem:[%s304 + $0x1e8] sm:$0xff] %v1450
          %1515 = vst [vmem:[%s304 + $0x1f0] sm:$0xff] %v1451
          %1516 = vst [vmem:[%s304 + $0x1f8] sm:$0xff] %v1452
        $region52: #{compute_w_sp_t.2} parent=31 // pred_fallthru
          _
        %s1517 = smul.u32 32, %s25
        %s1518 = smul.u32 2, %s26
        %p1519 = scmp.lt.s32.totalorder %s1517, 63
        %s1520 = scalar_select %p1519, %s1517, 63
        %p1521 = scmp.lt.s32.totalorder %s1518, 1
        %s1522 = scalar_select %p1521, %s1518, 1
        %s1523 = smul.addr %s1520, 2
        %s1524 = sadd.s32 %s1522, %s1523
        %s1525 = smul.addr %s1524, 8
        %s1526 = scalar_lea.vmem %s3, %s1525
        // Predicated region
        $region53: #{compute_w_sp_t.2} parent=31 // pred_check
          %p1527 = pneg %p143
        $region54: #{compute_w_sp_t.2} parent=31 // pred_check_branch
          %1529 = sbr.rel (%p1527) target = $region56
        $region55: #{compute_w_sp_t.2} parent=31 // pred_region
          %s1530 = smul.u32 32, %s25
          %s1531 = smul.u32 2, %s26
        $region56: #{compute_w_sp_t.2} parent=31 // pred_fallthru
          _
      $region32: #{compute_w_sp_t.2} parent=5 // pred_fallthru
        _
      %p1532 = scmp.le.s32.totalorder 2, %s15
      // Predicated region
      $region57: #{compute_w_sp_t.2} parent=5 // pred_check
        %p1533 = pneg %p1532
      $region58: #{compute_w_sp_t.2} parent=5 // pred_check_branch
        %1535 = sbr.rel (%p1533) target = $region60
      $region59: #{compute_w_sp_t.2} parent=5 // pred_region
        %s1536 = ssub.s32 %s15, 2
        // Predicated region
        $region61: #{compute_w_sp_t.2} parent=59 // pred_check
          %p1537 = pneg %p149
        $region62: #{compute_w_sp_t.2} parent=59 // pred_check_branch
          %1539 = sbr.rel (%p1537) target = $region64
        $region63: #{compute_w_sp_t.2} parent=59 // pred_region
          %s1540 = smul.u32 32, %s28
          %s1541 = smul.u32 2, %s29
          %p1542 = scmp.lt.s32.totalorder %s1540, 63
          %s1543 = scalar_select %p1542, %s1540, 63
          %p1544 = scmp.lt.s32.totalorder %s1541, 1
          %s1545 = scalar_select %p1544, %s1541, 1
          %s1546 = smul.addr %s1543, 2
          %s1547 = sadd.s32 %s1545, %s1546
          %s1548 = smul.addr %s1547, 8
          %s1549 = scalar_lea.vmem %s3, %s1548
        $region64: #{compute_w_sp_t.2} parent=59 // pred_fallthru
          _
      $region60: #{compute_w_sp_t.2} parent=5 // pred_fallthru
        _
    $region6: #{compute_w_sp_t.2} parent=1 // loop_footer
      %s19 = sadd.s32 1, %s15
    $region7: #{compute_w_sp_t.2} parent=1 // loop_footer_branch
      %14 = sbr.rel target = $region3
    $region8: #{compute_w_sp_t.2} parent=1 // loop_exit
      _
    %1550 = vsyncpa [#allocation4], 1
    %s1551 = scalar_lea.sflag [#allocation4], 1
    %1552 = vsyncpa %s1551, 1
    %1553 = vsyncpa [#allocation6], 1
    %s1554 = scalar_lea.sflag [#allocation6], 1
    %1555 = vsyncpa %s1554, 1

</llo_original>
